<compile_context>
chip_gen: v5e
topology: v5e:2x2
jax: 0.10.0
libtpu: 0.0.40
codegen_flags: <defaults>
</compile_context>

<pallas_src>
import math

import jax
import jax.numpy as jnp
from jax.experimental import pallas as pl
from jax.experimental.pallas import tpu as pltpu


def _pe_sine_kernel(chan_ref, pos_ref, o_ref):
    # chan_ref: (C, 4)   lanes: [x_coef, y_coef, phase_off, pad]
    # pos_ref:  (2, HWp) rows:  [x_emb, y_emb]
    # o_ref:    (TB, C, HWp)
    x_coef = chan_ref[:, 0:1]          # (C, 1)
    y_coef = chan_ref[:, 1:2]          # (C, 1)
    ph_off = chan_ref[:, 2:3]          # (C, 1)
    x_emb = pos_ref[0:1, :]            # (1, HWp)
    y_emb = pos_ref[1:2, :]            # (1, HWp)

    # 2 mul + 2 add on the VPU, one sin on the EUP per output element
    # (cos channels are handled by the +pi/2 phase offset).
    phase = x_coef * x_emb + y_coef * y_emb + ph_off        # (C, HWp)
    pe = jnp.sin(phase).astype(o_ref.dtype)                 # (C, HWp)

    # Unrolled static per-batch stores: stream straight from the pe vregs
    # instead of materializing a (TB, C, HWp) broadcast temporary.
    for t in range(o_ref.shape[0]):
        o_ref[t] = pe


def position_embedding_sine(x, *, num_pos_feats=64, temperature=10000.0,
                            normalize=False, scale=None, maxH=30, maxW=30,
                            batch_tile=16):
    """Forward of PositionEmbeddingSine: returns (B, 2*num_pos_feats, maxH, maxW)."""
    if scale is not None and not normalize:
        raise ValueError("normalize should be True if scale is passed")
    if scale is None:
        scale = 2.0 * math.pi

    B = int(x.shape[0])
    F = num_pos_feats
    C = 2 * F
    H, W = maxH, maxW
    HW = H * W
    HWp = ((HW + 127) // 128) * 128            # lane-dense, 128-aligned flat dim

    # ---- per-channel fused tables (mirrors _gen_pos_buffer's constants) -----
    c = jnp.arange(C, dtype=jnp.int32)
    c_mod = jnp.where(c < F, c, c - F)                               # dim_t index
    exponent = (2 * (c_mod // 2)).astype(jnp.float32) / float(F)
    dim_t = jnp.float32(temperature) ** exponent                     # (C,)
    inv_freq = 1.0 / dim_t
    is_x = (c >= F).astype(jnp.float32)                              # x- vs y-channel
    is_cos = ((c_mod % 2) == 1).astype(jnp.float32)                  # cos vs sin
    x_coef = is_x * inv_freq
    y_coef = (1.0 - is_x) * inv_freq
    phase_off = is_cos * (math.pi / 2.0)                             # cos(t)=sin(t+pi/2)
    chan_tbl = jnp.stack(
        [x_coef, y_coef, phase_off, jnp.zeros_like(x_coef)], axis=1)  # (C, 4)

    # ---- per-position table (cumsum-of-ones row/col coords, padded) ---------
    p = jnp.arange(HWp, dtype=jnp.int32)
    valid = p < HW
    y_emb = jnp.where(valid, p // W + 1, 0).astype(jnp.float32)
    x_emb = jnp.where(valid, p % W + 1, 0).astype(jnp.float32)
    if normalize:
        eps = 1e-6
        y_emb = y_emb / (float(H) + eps) * scale
        x_emb = x_emb / (float(W) + eps) * scale
    pos_tbl = jnp.stack([x_emb, y_emb], axis=0)                      # (2, HWp)

    # ---- VMEM- and TensorCore-aware batch tile -------------------------------
    row_bytes = C * HWp * 4
    vmem_out_budget = 24 * 1024 * 1024          # for the double-buffered out block
    tb_cap = max(1, vmem_out_budget // (2 * row_bytes))
    tb_cap = min(tb_cap, batch_tile, B)
    if B >= 2:                                  # keep grid length >= 2 for v7x TCs
        tb_cap = min(tb_cap, pl.cdiv(B, 2))
    tb_cap = max(1, tb_cap)
    TB = max(d for d in range(1, tb_cap + 1) if B % d == 0)   # TB divides B
    grid = (B // TB,)

    cost = pl.CostEstimate(
        flops=4 * (B // TB) * C * HWp,
        transcendentals=(B // TB) * C * HWp,
        bytes_accessed=4 * (B * C * HWp + C * 4 + 2 * HWp),
    )

    out_flat = pl.pallas_call(
        _pe_sine_kernel,
        out_shape=jax.ShapeDtypeStruct((B, C, HWp), jnp.float32),
        grid_spec=pltpu.PrefetchScalarGridSpec(
            num_scalar_prefetch=0,
            grid=grid,
            in_specs=[
                pl.BlockSpec((C, 4), lambda b: (0, 0)),     # per-channel table (resident)
                pl.BlockSpec((2, HWp), lambda b: (0, 0)),   # per-position table (resident)
            ],
            out_specs=pl.BlockSpec((TB, C, HWp), lambda b: (b, 0, 0)),
        ),
        compiler_params=pltpu.CompilerParams(
            dimension_semantics=("parallel",),    # shard batch blocks across v7x TCs
            vmem_limit_bytes=32 * 1024 * 1024,    # TB was derived to fit well below this
        ),
        cost_estimate=cost,
    )(chan_tbl, pos_tbl)

    if HWp != HW:
        out_flat = out_flat[:, :, :HW]            # only when H*W is not 128-aligned
    return out_flat.reshape(B, C, H, W)


# ---- pure-JAX reference, mirroring the PyTorch _gen_pos_buffer --------------
def _gen_pos_buffer_ref(num_pos_feats, temperature, normalize, scale, maxH, maxW):
    eyes = jnp.ones((1, maxH, maxW), dtype=jnp.float32)
    y_embed = jnp.cumsum(eyes, axis=1)
    x_embed = jnp.cumsum(eyes, axis=2)
    if normalize:
        eps = 1e-6
        y_embed = y_embed / (y_embed[:, -1:, :] + eps) * scale
        x_embed = x_embed / (x_embed[:, :, -1:] + eps) * scale
    dim_t = jnp.arange(num_pos_feats, dtype=jnp.float32)
    dim_t = temperature ** (2.0 * jnp.floor(dim_t / 2.0) / num_pos_feats)
    pos_x = x_embed[:, :, :, None] / dim_t
    pos_y = y_embed[:, :, :, None] / dim_t
    pos_x = jnp.stack((jnp.sin(pos_x[:, :, :, 0::2]), jnp.cos(pos_x[:, :, :, 1::2])),
                      axis=4).reshape(1, maxH, maxW, -1)
    pos_y = jnp.stack((jnp.sin(pos_y[:, :, :, 0::2]), jnp.cos(pos_y[:, :, :, 1::2])),
                      axis=4).reshape(1, maxH, maxW, -1)
    pos = jnp.concatenate((pos_y, pos_x), axis=3).transpose(0, 3, 1, 2)
    return pos


if __name__ == "__main__":
    # Small, module-consistent shapes: input feature map (B, C, H, W); only the
    # batch size matters for the forward. pe is (1, 2*64, 16, 16).
    B, Cin, Hin, Win = 2, 4, 16, 16
    num_pos_feats, temperature, normalize = 64, 10000.0, False
    maxH = maxW = 16

    key = jax.random.PRNGKey(0)
    x = jax.random.normal(key, (B, Cin, Hin, Win), dtype=jnp.float32)

    out = position_embedding_sine(
        x, num_pos_feats=num_pos_feats, temperature=temperature,
        normalize=normalize, scale=None, maxH=maxH, maxW=maxW)
    out = jax.block_until_ready(out)

    pe_ref = _gen_pos_buffer_ref(num_pos_feats, temperature, normalize,
                                 2.0 * math.pi, maxH, maxW)
    ref = jnp.tile(pe_ref, (B, 1, 1, 1))

    assert out.shape == (B, 2 * num_pos_feats, maxH, maxW)
    assert jnp.allclose(out, ref, atol=1e-4, rtol=1e-5), "mismatch vs reference"

    print("KERNEL_OK")
</pallas_src>

<mosaic_0001>
module attributes {stable_mosaic.version = 11 : i64} {
  func.func @_pe_sine_kernel(%arg0: i32, %arg1: memref<128x4xf32, #tpu.memory_space<vmem>>, %arg2: memref<2x256xf32, #tpu.memory_space<vmem>>, %arg3: memref<1x128x256xf32, #tpu.memory_space<vmem>>) attributes {dimension_semantics = [#tpu.dimension_semantics<parallel>], iteration_bounds = array<i64: 2>, scalar_prefetch = 0 : i64, scratch_operands = 0 : i64, tpu.core_type = #tpu.core_type<tc>, window_params = [{pipeline_mode = #tpu.pipeline_mode<synchronous>, transform_indices = @transform_0, window_bounds = array<i64: 128, 4>}, {pipeline_mode = #tpu.pipeline_mode<synchronous>, transform_indices = @transform_1, window_bounds = array<i64: 2, 256>}, {transform_indices = @transform_2, window_bounds = array<i64: 1, 128, 256>}]} {
    %c0 = arith.constant 0 : index
    %c0_0 = arith.constant 0 : index
    %0 = vector.load %arg1[%c0, %c0_0] : memref<128x4xf32, #tpu.memory_space<vmem>>, vector<128x1xf32>
    %c0_1 = arith.constant 0 : index
    %c1 = arith.constant 1 : index
    %1 = vector.load %arg1[%c0_1, %c1] : memref<128x4xf32, #tpu.memory_space<vmem>>, vector<128x1xf32>
    %c0_2 = arith.constant 0 : index
    %c2 = arith.constant 2 : index
    %2 = vector.load %arg1[%c0_2, %c2] : memref<128x4xf32, #tpu.memory_space<vmem>>, vector<128x1xf32>
    %c0_3 = arith.constant 0 : index
    %c0_4 = arith.constant 0 : index
    %3 = vector.load %arg2[%c0_3, %c0_4] : memref<2x256xf32, #tpu.memory_space<vmem>>, vector<1x256xf32>
    %c1_5 = arith.constant 1 : index
    %c0_6 = arith.constant 0 : index
    %4 = vector.load %arg2[%c1_5, %c0_6] : memref<2x256xf32, #tpu.memory_space<vmem>>, vector<1x256xf32>
    %5 = vector.broadcast %0 : vector<128x1xf32> to vector<128x256xf32>
    %6 = vector.broadcast %3 : vector<1x256xf32> to vector<128x256xf32>
    %7 = arith.mulf %5, %6 : vector<128x256xf32>
    %8 = vector.broadcast %1 : vector<128x1xf32> to vector<128x256xf32>
    %9 = vector.broadcast %4 : vector<1x256xf32> to vector<128x256xf32>
    %10 = arith.mulf %8, %9 : vector<128x256xf32>
    %11 = arith.addf %7, %10 : vector<128x256xf32>
    %12 = vector.broadcast %2 : vector<128x1xf32> to vector<128x256xf32>
    %13 = arith.addf %11, %12 : vector<128x256xf32>
    %14 = math.sin %13 : vector<128x256xf32>
    %c0_7 = arith.constant 0 : index
    %c0_8 = arith.constant 0 : index
    %c0_9 = arith.constant 0 : index
    %15 = vector.load %arg3[%c0_7, %c0_8, %c0_9] : memref<1x128x256xf32, #tpu.memory_space<vmem>>, vector<1x128x256xf32>
    %16 = vector.shape_cast %15 : vector<1x128x256xf32> to vector<128x256xf32>
    %17 = vector.shape_cast %14 : vector<128x256xf32> to vector<1x128x256xf32>
    tpu.vector_store %arg3[%c0_7, %c0_8, %c0_9], %17 {strides = array<i32>} : memref<1x128x256xf32, #tpu.memory_space<vmem>>, vector<1x128x256xf32>,
    return
  }
  func.func @transform_0(%arg0: i32) -> (i32, i32) {
    %c0_i32 = arith.constant 0 : i32
    %c0_i32_0 = arith.constant 0 : i32
    %c0_i32_1 = arith.constant 0 : i32
    return %c0_i32, %c0_i32_0 : i32, i32
  }
  func.func @transform_1(%arg0: i32) -> (i32, i32) {
    %c0_i32 = arith.constant 0 : i32
    %c0_i32_0 = arith.constant 0 : i32
    %c0_i32_1 = arith.constant 0 : i32
    return %c0_i32, %c0_i32_0 : i32, i32
  }
  func.func @transform_2(%arg0: i32) -> (i32, i32, i32) {
    %c0_i32 = arith.constant 0 : i32
    %c0_i32_0 = arith.constant 0 : i32
    %c0_i32_1 = arith.constant 0 : i32
    return %arg0, %c0_i32, %c0_i32_0 : i32, i32, i32
  }
}

</mosaic_0001>

<llo_original>
// kernel: tpu_custom_call.1
$region0: #{tpu_custom_call.1}
  #allocation0 [shape = 'u32[]', space=smem, size = 0x4, offset = 0x4, fixed_abs, tag = 'smem constant byte address 0x4 - core index']
  #allocation1 [shape = 'u32[72,128]{1,0:T(1,128)}', space=vmem, size = 0x9000, scoped, tag = 'internal scratch']
  %s0 = inlined_call_operand.vmem [shape: f32[128,4], index: 0, kind: input, shape index: {}]
  %s1 = inlined_call_operand.vmem [shape: f32[2,256], index: 1, kind: input, shape index: {}]
  %s2 = inlined_call_operand.hbm [shape: f32[2,128,256], index: 2, kind: output, shape index: {}]
  %s3 = sld [smem:[#allocation0]]
  $region41: #{tpu_custom_call.1} parent=0
    _
  %s5 = ssub.s32 1, %s3
  %s6 = scalar_select 0, %s5, %s3
  $region1: #{tpu_custom_call.1} parent=0
    #allocation2 [shape = 'u8[262144]{0}', space=vmem, size = 0x40000, scoped, tag = 'output window, operand 0']
    #allocation3 [shape = 's32[2]{0}', space=sflag, size = 0x8, scoped, tag = 'scoped memory for tpu_custom_call.1']
    %7 = vsyncpa [#allocation3], 0
    %s8 = scalar_lea.sflag [#allocation3], 1
    %9 = vsyncpa %s8, 0
    loop: start=0, step=1, limit=4
    $region2: #{tpu_custom_call.1} parent=1 // loop_pre_header
      _
    $region3: #{tpu_custom_call.1} parent=1 // loop_header
      %s11 = sphi 0, %s15
      %p12 = scmp.ge.s32.totalorder %s11, 4
      %s19 = sphi 0, %s19
      %s21 = sphi 0, %s19
      %s22 = sphi 0, %s21
      %s36 = sphi 0, %s22
      %s40 = sphi 0, %s40
      %s42 = sphi 0, %s40
      %s43 = sphi 0, %s42
      %s57 = sphi 0, %s43
      %s63 = sphi 0, %s65
      %s66 = sphi 0, %s63
      %s67 = sphi 0, %s66
      %s83 = sphi 0, %s67
    $region4: #{tpu_custom_call.1} parent=1 // loop_header_branch
      %14 = sbr.rel (%p12) target = $region8
    $region5: #{tpu_custom_call.1} parent=1 // loop_body
      %s16 = ssub.s32 %s11, 1
      %s17 = ssub.s32 %s11, 2
      %s18 = sadd.s32 %s11, 1
      %s20 = sadd.s32 %s19, 1
      %p23 = scmp.eq.s32.totalorder %s11, 1
      %p24 = scmp.ne.s32.totalorder %s19, %s21
      %p25 = scmp.eq.s32.totalorder %s11, 0
      %p26 = por %p24, %p25
      %p27 = scmp.ne.s32.totalorder %s19, %s21
      %p28 = scmp.eq.s32.totalorder %s16, 1
      %p29 = por %p27, %p28
      %p30 = scmp.ne.s32.totalorder %s21, %s22
      %p31 = scmp.eq.s32.totalorder %s16, 0
      %p32 = por %p30, %p31
      %p33 = scmp.ne.s32.totalorder %s21, %s22
      %p34 = scmp.eq.s32.totalorder %s17, 1
      %p35 = por %p33, %p34
      %p37 = scmp.ne.s32.totalorder %s22, %s36
      %p38 = scmp.eq.s32.totalorder %s17, 0
      %p39 = por %p37, %p38
      %s41 = sadd.s32 %s40, 1
      %p44 = scmp.eq.s32.totalorder %s11, 1
      %p45 = scmp.ne.s32.totalorder %s40, %s42
      %p46 = scmp.eq.s32.totalorder %s11, 0
      %p47 = por %p45, %p46
      %p48 = scmp.ne.s32.totalorder %s40, %s42
      %p49 = scmp.eq.s32.totalorder %s16, 1
      %p50 = por %p48, %p49
      %p51 = scmp.ne.s32.totalorder %s42, %s43
      %p52 = scmp.eq.s32.totalorder %s16, 0
      %p53 = por %p51, %p52
      %p54 = scmp.ne.s32.totalorder %s42, %s43
      %p55 = scmp.eq.s32.totalorder %s17, 1
      %p56 = por %p54, %p55
      %p58 = scmp.ne.s32.totalorder %s43, %s57
      %p59 = scmp.eq.s32.totalorder %s17, 0
      %p60 = por %p58, %p59
      %s61 = ssub.s32 %s11, %s18
      %p62 = scmp.eq.s32.totalorder %s61, 0
      %s64 = sadd.s32 %s63, 1
      %s65 = scalar_select %p62, %s63, %s64
      %p68 = pneg %p62
      %p69 = scmp.eq.s32.totalorder %s11, 1
      %p70 = por %p68, %p69
      %p71 = scmp.ne.s32.totalorder %s63, %s66
      %p72 = scmp.eq.s32.totalorder %s11, 0
      %p73 = por %p71, %p72
      %p74 = scmp.ne.s32.totalorder %s63, %s66
      %p75 = scmp.eq.s32.totalorder %s16, 1
      %p76 = por %p74, %p75
      %p77 = scmp.ne.s32.totalorder %s66, %s67
      %p78 = scmp.eq.s32.totalorder %s16, 0
      %p79 = por %p77, %p78
      %p80 = scmp.ne.s32.totalorder %s66, %s67
      %p81 = scmp.eq.s32.totalorder %s17, 1
      %p82 = por %p80, %p81
      %p84 = scmp.ne.s32.totalorder %s67, %s83
      %p85 = scmp.eq.s32.totalorder %s17, 0
      %p86 = por %p84, %p85
      %p87 = scmp.le.s32.totalorder 1, %s11
      %p88 = scmp.lt.s32.totalorder %s11, 3
      %p89 = pnand %p87, %p88
      %p90 = pneg %p89
      // Predicated region
      $region9: #{tpu_custom_call.1} parent=5 // pred_check
        _
      $region10: #{tpu_custom_call.1} parent=5 // pred_check_branch
        %92 = sbr.rel (%p89) target = $region12
      $region11: #{tpu_custom_call.1} parent=5 // pred_region
        %s93 = ssub.s32 %s11, 1
        // Predicated region
        $region13: #{tpu_custom_call.1} parent=11 // pred_check
          %p94 = pneg %p32
        $region14: #{tpu_custom_call.1} parent=11 // pred_check_branch
          %96 = sbr.rel (%p94) target = $region16
        $region15: #{tpu_custom_call.1} parent=11 // pred_region
          _
        $region16: #{tpu_custom_call.1} parent=11 // pred_fallthru
          _
        // Predicated region
        $region17: #{tpu_custom_call.1} parent=11 // pred_check
          %p97 = pneg %p53
        $region18: #{tpu_custom_call.1} parent=11 // pred_check_branch
          %99 = sbr.rel (%p97) target = $region20
        $region19: #{tpu_custom_call.1} parent=11 // pred_region
          _
        $region20: #{tpu_custom_call.1} parent=11 // pred_fallthru
          _
      $region12: #{tpu_custom_call.1} parent=5 // pred_fallthru
        _
      %p100 = scmp.lt.s32.totalorder %s11, 2
      // Predicated region
      $region21: #{tpu_custom_call.1} parent=5 // pred_check
        %p101 = pneg %p100
      $region22: #{tpu_custom_call.1} parent=5 // pred_check_branch
        %103 = sbr.rel (%p101) target = $region24
      $region23: #{tpu_custom_call.1} parent=5 // pred_region
        _
      $region24: #{tpu_custom_call.1} parent=5 // pred_fallthru
        _
      %p104 = scmp.le.s32.totalorder 1, %s11
      %p105 = scmp.lt.s32.totalorder %s11, 3
      %p106 = pnand %p104, %p105
      %p107 = pneg %p106
      // Predicated region
      $region25: #{tpu_custom_call.1} parent=5 // pred_check
        _
      $region26: #{tpu_custom_call.1} parent=5 // pred_check_branch
        %109 = sbr.rel (%p106) target = $region28
      $region27: #{tpu_custom_call.1} parent=5 // pred_region
        %s110 = ssub.s32 %s11, 1
        %p111 = pneg %p32
        %p112 = pneg %p29
        %p113 = pneg %p53
        %p114 = pneg %p50
        %p115 = pneg %p79
        %p116 = pneg %p76
        %s117 = sand.u32 %s66, 1
        %s118 = scalar_lea.sflag [#allocation3], %s117
        %s119 = sand.u32 %s66, 1
        %s120 = smul.addr %s119, 256
        %s121 = scalar_lea.vmem [#allocation2], %s120
        %v122 = vld [vmem:[%s0] sm:$0xff]
        %v123 = vld [vmem:[%s0 + $0x8] sm:$0xff]
        %v124 = vld [vmem:[%s0 + $0x10] sm:$0xff]
        %v125 = vld [vmem:[%s0 + $0x18] sm:$0xff]
        %v126 = vld [vmem:[%s0 + $0x20] sm:$0xff]
        %v127 = vld [vmem:[%s0 + $0x28] sm:$0xff]
        %v128 = vld [vmem:[%s0 + $0x30] sm:$0xff]
        %v129 = vld [vmem:[%s0 + $0x38] sm:$0xff]
        %v130 = vld [vmem:[%s0 + $0x40] sm:$0xff]
        %v131 = vld [vmem:[%s0 + $0x48] sm:$0xff]
        %v132 = vld [vmem:[%s0 + $0x50] sm:$0xff]
        %v133 = vld [vmem:[%s0 + $0x58] sm:$0xff]
        %v134 = vld [vmem:[%s0 + $0x60] sm:$0xff]
        %v135 = vld [vmem:[%s0 + $0x68] sm:$0xff]
        %v136 = vld [vmem:[%s0 + $0x70] sm:$0xff]
        %v137 = vld [vmem:[%s0 + $0x78] sm:$0xff]
        %v138 = vld [vmem:[%s1] ss:$2 sm:$0x3]
        %s139 = scalar_lea.vmem %s1, 1
        %v140 = vld [vmem:[%s139] ss:$2 sm:$0x3]
        %142 = vset.pattern.permute.xlu0 0
        %143 = vperm.xlu0 %142, %v122
        %v144 = vpop.permute.xlu0 %143
        %147 = vset.pattern.permute.xlu0 0
        %148 = vperm.xlu0 %147, %v123
        %v149 = vpop.permute.xlu0 %148
        %152 = vset.pattern.permute.xlu0 0
        %153 = vperm.xlu0 %152, %v124
        %v154 = vpop.permute.xlu0 %153
        %157 = vset.pattern.permute.xlu0 0
        %158 = vperm.xlu0 %157, %v125
        %v159 = vpop.permute.xlu0 %158
        %162 = vset.pattern.permute.xlu0 0
        %163 = vperm.xlu0 %162, %v126
        %v164 = vpop.permute.xlu0 %163
        %167 = vset.pattern.permute.xlu0 0
        %168 = vperm.xlu0 %167, %v127
        %v169 = vpop.permute.xlu0 %168
        %172 = vset.pattern.permute.xlu0 0
        %173 = vperm.xlu0 %172, %v128
        %v174 = vpop.permute.xlu0 %173
        %177 = vset.pattern.permute.xlu0 0
        %178 = vperm.xlu0 %177, %v129
        %v179 = vpop.permute.xlu0 %178
        %182 = vset.pattern.permute.xlu0 0
        %183 = vperm.xlu0 %182, %v130
        %v184 = vpop.permute.xlu0 %183
        %187 = vset.pattern.permute.xlu0 0
        %188 = vperm.xlu0 %187, %v131
        %v189 = vpop.permute.xlu0 %188
        %192 = vset.pattern.permute.xlu0 0
        %193 = vperm.xlu0 %192, %v132
        %v194 = vpop.permute.xlu0 %193
        %197 = vset.pattern.permute.xlu0 0
        %198 = vperm.xlu0 %197, %v133
        %v199 = vpop.permute.xlu0 %198
        %202 = vset.pattern.permute.xlu0 0
        %203 = vperm.xlu0 %202, %v134
        %v204 = vpop.permute.xlu0 %203
        %207 = vset.pattern.permute.xlu0 0
        %208 = vperm.xlu0 %207, %v135
        %v209 = vpop.permute.xlu0 %208
        %212 = vset.pattern.permute.xlu0 0
        %213 = vperm.xlu0 %212, %v136
        %v214 = vpop.permute.xlu0 %213
        %217 = vset.pattern.permute.xlu0 0
        %218 = vperm.xlu0 %217, %v137
        %v219 = vpop.permute.xlu0 %218
        %v222 = vperm.slane %v138, 0
        %v223 = vperm.slane %v138, 1
        %v226 = vmul.f32 %v144, %v222
        %v227 = vmul.f32 %v144, %v223
        %v228 = vmul.f32 %v149, %v222
        %v229 = vmul.f32 %v149, %v223
        %v230 = vmul.f32 %v154, %v222
        %v231 = vmul.f32 %v154, %v223
        %v232 = vmul.f32 %v159, %v222
        %v233 = vmul.f32 %v159, %v223
        %v234 = vmul.f32 %v164, %v222
        %v235 = vmul.f32 %v164, %v223
        %v236 = vmul.f32 %v169, %v222
        %v237 = vmul.f32 %v169, %v223
        %v238 = vmul.f32 %v174, %v222
        %v239 = vmul.f32 %v174, %v223
        %v240 = vmul.f32 %v179, %v222
        %v241 = vmul.f32 %v179, %v223
        %v242 = vmul.f32 %v184, %v222
        %v243 = vmul.f32 %v184, %v223
        %v244 = vmul.f32 %v189, %v222
        %v245 = vmul.f32 %v189, %v223
        %v246 = vmul.f32 %v194, %v222
        %v247 = vmul.f32 %v194, %v223
        %v248 = vmul.f32 %v199, %v222
        %v249 = vmul.f32 %v199, %v223
        %v250 = vmul.f32 %v204, %v222
        %v251 = vmul.f32 %v204, %v223
        %v252 = vmul.f32 %v209, %v222
        %v253 = vmul.f32 %v209, %v223
        %v254 = vmul.f32 %v214, %v222
        %v255 = vmul.f32 %v214, %v223
        %v256 = vmul.f32 %v219, %v222
        %v257 = vmul.f32 %v219, %v223
        %258 = vset.pattern.permute.xlu0 1
        %259 = vperm.xlu0 %258, %v122
        %v260 = vpop.permute.xlu0 %259
        %262 = vset.pattern.permute.xlu0 1
        %263 = vperm.xlu0 %262, %v123
        %v264 = vpop.permute.xlu0 %263
        %266 = vset.pattern.permute.xlu0 1
        %267 = vperm.xlu0 %266, %v124
        %v268 = vpop.permute.xlu0 %267
        %270 = vset.pattern.permute.xlu0 1
        %271 = vperm.xlu0 %270, %v125
        %v272 = vpop.permute.xlu0 %271
        %274 = vset.pattern.permute.xlu0 1
        %275 = vperm.xlu0 %274, %v126
        %v276 = vpop.permute.xlu0 %275
        %278 = vset.pattern.permute.xlu0 1
        %279 = vperm.xlu0 %278, %v127
        %v280 = vpop.permute.xlu0 %279
        %282 = vset.pattern.permute.xlu0 1
        %283 = vperm.xlu0 %282, %v128
        %v284 = vpop.permute.xlu0 %283
        %286 = vset.pattern.permute.xlu0 1
        %287 = vperm.xlu0 %286, %v129
        %v288 = vpop.permute.xlu0 %287
        %290 = vset.pattern.permute.xlu0 1
        %291 = vperm.xlu0 %290, %v130
        %v292 = vpop.permute.xlu0 %291
        %294 = vset.pattern.permute.xlu0 1
        %295 = vperm.xlu0 %294, %v131
        %v296 = vpop.permute.xlu0 %295
        %298 = vset.pattern.permute.xlu0 1
        %299 = vperm.xlu0 %298, %v132
        %v300 = vpop.permute.xlu0 %299
        %302 = vset.pattern.permute.xlu0 1
        %303 = vperm.xlu0 %302, %v133
        %v304 = vpop.permute.xlu0 %303
        %306 = vset.pattern.permute.xlu0 1
        %307 = vperm.xlu0 %306, %v134
        %v308 = vpop.permute.xlu0 %307
        %310 = vset.pattern.permute.xlu0 1
        %311 = vperm.xlu0 %310, %v135
        %v312 = vpop.permute.xlu0 %311
        %314 = vset.pattern.permute.xlu0 1
        %315 = vperm.xlu0 %314, %v136
        %v316 = vpop.permute.xlu0 %315
        %318 = vset.pattern.permute.xlu0 1
        %319 = vperm.xlu0 %318, %v137
        %v320 = vpop.permute.xlu0 %319
        %v323 = vperm.slane %v140, 0
        %v324 = vperm.slane %v140, 1
        %v327 = vmul.f32 %v260, %v323
        %v328 = vmul.f32 %v260, %v324
        %v329 = vmul.f32 %v264, %v323
        %v330 = vmul.f32 %v264, %v324
        %v331 = vmul.f32 %v268, %v323
        %v332 = vmul.f32 %v268, %v324
        %v333 = vmul.f32 %v272, %v323
        %v334 = vmul.f32 %v272, %v324
        %v335 = vmul.f32 %v276, %v323
        %v336 = vmul.f32 %v276, %v324
        %v337 = vmul.f32 %v280, %v323
        %v338 = vmul.f32 %v280, %v324
        %v339 = vmul.f32 %v284, %v323
        %v340 = vmul.f32 %v284, %v324
        %v341 = vmul.f32 %v288, %v323
        %v342 = vmul.f32 %v288, %v324
        %v343 = vmul.f32 %v292, %v323
        %v344 = vmul.f32 %v292, %v324
        %v345 = vmul.f32 %v296, %v323
        %v346 = vmul.f32 %v296, %v324
        %v347 = vmul.f32 %v300, %v323
        %v348 = vmul.f32 %v300, %v324
        %v349 = vmul.f32 %v304, %v323
        %v350 = vmul.f32 %v304, %v324
        %v351 = vmul.f32 %v308, %v323
        %v352 = vmul.f32 %v308, %v324
        %v353 = vmul.f32 %v312, %v323
        %v354 = vmul.f32 %v312, %v324
        %v355 = vmul.f32 %v316, %v323
        %v356 = vmul.f32 %v316, %v324
        %v357 = vmul.f32 %v320, %v323
        %v358 = vmul.f32 %v320, %v324
        %v359 = vadd.f32 %v226, %v327
        %v360 = vadd.f32 %v227, %v328
        %v361 = vadd.f32 %v228, %v329
        %v362 = vadd.f32 %v229, %v330
        %v363 = vadd.f32 %v230, %v331
        %v364 = vadd.f32 %v231, %v332
        %v365 = vadd.f32 %v232, %v333
        %v366 = vadd.f32 %v233, %v334
        %v367 = vadd.f32 %v234, %v335
        %v368 = vadd.f32 %v235, %v336
        %v369 = vadd.f32 %v236, %v337
        %v370 = vadd.f32 %v237, %v338
        %v371 = vadd.f32 %v238, %v339
        %v372 = vadd.f32 %v239, %v340
        %v373 = vadd.f32 %v240, %v341
        %v374 = vadd.f32 %v241, %v342
        %v375 = vadd.f32 %v242, %v343
        %v376 = vadd.f32 %v243, %v344
        %v377 = vadd.f32 %v244, %v345
        %v378 = vadd.f32 %v245, %v346
        %v379 = vadd.f32 %v246, %v347
        %v380 = vadd.f32 %v247, %v348
        %v381 = vadd.f32 %v248, %v349
        %v382 = vadd.f32 %v249, %v350
        %v383 = vadd.f32 %v250, %v351
        %v384 = vadd.f32 %v251, %v352
        %v385 = vadd.f32 %v252, %v353
        %v386 = vadd.f32 %v253, %v354
        %v387 = vadd.f32 %v254, %v355
        %v388 = vadd.f32 %v255, %v356
        %v389 = vadd.f32 %v256, %v357
        %v390 = vadd.f32 %v257, %v358
        %391 = vset.pattern.permute.xlu0 2
        %392 = vperm.xlu0 %391, %v122
        %v393 = vpop.permute.xlu0 %392
        %395 = vset.pattern.permute.xlu0 2
        %396 = vperm.xlu0 %395, %v123
        %v397 = vpop.permute.xlu0 %396
        %399 = vset.pattern.permute.xlu0 2
        %400 = vperm.xlu0 %399, %v124
        %v401 = vpop.permute.xlu0 %400
        %403 = vset.pattern.permute.xlu0 2
        %404 = vperm.xlu0 %403, %v125
        %v405 = vpop.permute.xlu0 %404
        %407 = vset.pattern.permute.xlu0 2
        %408 = vperm.xlu0 %407, %v126
        %v409 = vpop.permute.xlu0 %408
        %411 = vset.pattern.permute.xlu0 2
        %412 = vperm.xlu0 %411, %v127
        %v413 = vpop.permute.xlu0 %412
        %415 = vset.pattern.permute.xlu0 2
        %416 = vperm.xlu0 %415, %v128
        %v417 = vpop.permute.xlu0 %416
        %419 = vset.pattern.permute.xlu0 2
        %420 = vperm.xlu0 %419, %v129
        %v421 = vpop.permute.xlu0 %420
        %423 = vset.pattern.permute.xlu0 2
        %424 = vperm.xlu0 %423, %v130
        %v425 = vpop.permute.xlu0 %424
        %427 = vset.pattern.permute.xlu0 2
        %428 = vperm.xlu0 %427, %v131
        %v429 = vpop.permute.xlu0 %428
        %431 = vset.pattern.permute.xlu0 2
        %432 = vperm.xlu0 %431, %v132
        %v433 = vpop.permute.xlu0 %432
        %435 = vset.pattern.permute.xlu0 2
        %436 = vperm.xlu0 %435, %v133
        %v437 = vpop.permute.xlu0 %436
        %439 = vset.pattern.permute.xlu0 2
        %440 = vperm.xlu0 %439, %v134
        %v441 = vpop.permute.xlu0 %440
        %443 = vset.pattern.permute.xlu0 2
        %444 = vperm.xlu0 %443, %v135
        %v445 = vpop.permute.xlu0 %444
        %447 = vset.pattern.permute.xlu0 2
        %448 = vperm.xlu0 %447, %v136
        %v449 = vpop.permute.xlu0 %448
        %451 = vset.pattern.permute.xlu0 2
        %452 = vperm.xlu0 %451, %v137
        %v453 = vpop.permute.xlu0 %452
        %v455 = vadd.f32 %v359, %v393
        %v456 = vadd.f32 %v360, %v393
        %v457 = vadd.f32 %v361, %v397
        %v458 = vadd.f32 %v362, %v397
        %v459 = vadd.f32 %v363, %v401
        %v460 = vadd.f32 %v364, %v401
        %v461 = vadd.f32 %v365, %v405
        %v462 = vadd.f32 %v366, %v405
        %v463 = vadd.f32 %v367, %v409
        %v464 = vadd.f32 %v368, %v409
        %v465 = vadd.f32 %v369, %v413
        %v466 = vadd.f32 %v370, %v413
        %v467 = vadd.f32 %v371, %v417
        %v468 = vadd.f32 %v372, %v417
        %v469 = vadd.f32 %v373, %v421
        %v470 = vadd.f32 %v374, %v421
        %v471 = vadd.f32 %v375, %v425
        %v472 = vadd.f32 %v376, %v425
        %v473 = vadd.f32 %v377, %v429
        %v474 = vadd.f32 %v378, %v429
        %v475 = vadd.f32 %v379, %v433
        %v476 = vadd.f32 %v380, %v433
        %v477 = vadd.f32 %v381, %v437
        %v478 = vadd.f32 %v382, %v437
        %v479 = vadd.f32 %v383, %v441
        %v480 = vadd.f32 %v384, %v441
        %v481 = vadd.f32 %v385, %v445
        %v482 = vadd.f32 %v386, %v445
        %v483 = vadd.f32 %v387, %v449
        %v484 = vadd.f32 %v388, %v449
        %v485 = vadd.f32 %v389, %v453
        %v486 = vadd.f32 %v390, %v453
        %v487 = vand.u32 2147483647, %v455
        %vm488 = vcmp.le.f32.partialorder %v487, 0.7853982
        %vm489 = vcmp.lt.s32.totalorder %v455, 0
        %v490 = vand.u32 %v455, 2139095040
        %v491 = vshrl.u32 %v490, 23
        %v492 = vsub.s32 %v491, 127
        %v493 = vand.u32 2147483647, %v455
        %v494 = vand.u32 %v493, 8388607
        %v495 = vor.u32 %v494, 8388608
        %v496 = vsub.s32 0, %v495
        %v497 = vadd.s32 %v492, 1
        %vm498 = vcmp.gt.s32.totalorder %v497, 0
        %v499 = vsel %vm498, %v497, 0
        %v500 = vshrl.u32 %v499, 5
        %v501 = vand.u32 %v499, 31
        %v502 = vsub.s32 32, %v501
        %v503 = vshrl.u32 683565275, %v502
        %v504 = vshll.u32 683565275, %v501
        %v505 = vshrl.u32 2475754826, %v502
        %v506 = vor.u32 %v504, %v505
        %v507 = vshll.u32 2475754826, %v501
        %v508 = vshrl.u32 2131351028, %v502
        %v509 = vor.u32 %v507, %v508
        %v510 = vshll.u32 2131351028, %v501
        %v511 = vshrl.u32 2102212464, %v502
        %v512 = vor.u32 %v510, %v511
        %v513 = vshll.u32 2102212464, %v501
        %v514 = vshrl.u32 920167782, %v502
        %v515 = vor.u32 %v513, %v514
        %v516 = vshll.u32 920167782, %v501
        %v517 = vshrl.u32 1326507024, %v502
        %v518 = vor.u32 %v516, %v517
        %vm519 = vcmp.lt.s32.totalorder %v500, 1
        %vm520 = vcmp.lt.s32.totalorder %v500, 2
        %vm521 = vcmp.lt.s32.totalorder %v500, 3
        %vm522 = vcmp.lt.s32.totalorder %v500, 4
        %v523 = vsel %vm519, %v503, %v506
        %v524 = vsel %vm522, %v512, 2102212464
        %v525 = vsel %vm521, %v509, %v524
        %v526 = vsel %vm520, %v523, %v525
        %v527 = vsel %vm519, %v506, %v509
        %v528 = vsel %vm522, %v515, 920167782
        %v529 = vsel %vm521, %v512, %v528
        %v530 = vsel %vm520, %v527, %v529
        %v531 = vsel %vm519, %v509, %v512
        %v532 = vsel %vm522, %v518, 1326507024
        %v533 = vsel %vm521, %v515, %v532
        %v534 = vsel %vm520, %v531, %v533
        %v535 = vshll.u32 %v495, 8
        %v536 = vand.u32 %v535, 65535
        %v537 = vshrl.u32 %v535, 16
        %v538 = vand.u32 %v534, 65535
        %v539 = vshrl.u32 %v534, 16
        %v540 = vmul.u32 %v536, %v538
        %v541 = vmul.u32 %v536, %v539
        %v542 = vmul.u32 %v537, %v538
        %v543 = vmul.u32 %v537, %v539
        %v544 = vshll.u32 %v541, 16
        %v545 = vshrl.u32 %v541, 16
        %v546 = vshll.u32 %v542, 16
        %v547 = vshrl.u32 %v542, 16
        %vm548 = vc.u32 %v540, %v544
        %v549 = vsel %vm548, 1, 0
        %v550 = vadd.s32 %v540, %v544
        %v551 = vadd.s32 %v543, %v549
        %vm552 = vc.u32 %v550, %v546
        %v553 = vsel %vm552, 1, 0
        %v554 = vadd.s32 %v550, %v546
        %v555 = vadd.s32 %v551, %v553
        %v556 = vadd.s32 %v555, %v545
        %v557 = vadd.s32 %v556, %v547
        %v558 = vand.u32 %v535, 65535
        %v559 = vshrl.u32 %v535, 16
        %v560 = vand.u32 %v530, 65535
        %v561 = vshrl.u32 %v530, 16
        %v562 = vmul.u32 %v558, %v560
        %v563 = vmul.u32 %v558, %v561
        %v564 = vmul.u32 %v559, %v560
        %v565 = vmul.u32 %v559, %v561
        %v566 = vshll.u32 %v563, 16
        %v567 = vshrl.u32 %v563, 16
        %v568 = vshll.u32 %v564, 16
        %v569 = vshrl.u32 %v564, 16
        %vm570 = vc.u32 %v562, %v566
        %v571 = vsel %vm570, 1, 0
        %v572 = vadd.s32 %v562, %v566
        %v573 = vadd.s32 %v565, %v571
        %vm574 = vc.u32 %v572, %v568
        %v575 = vsel %vm574, 1, 0
        %v576 = vadd.s32 %v572, %v568
        %v577 = vadd.s32 %v573, %v575
        %v578 = vadd.s32 %v577, %v567
        %v579 = vadd.s32 %v578, %v569
        %v580 = vmul.u32 %v535, %v526
        %v581 = vadd.s32 %v557, %v576
        %vm582 = vc.u32 %v557, %v576
        %v583 = vadd.s32 %v579, 1
        %v584 = vsel %vm582, %v583, %v579
        %v585 = vadd.s32 %v580, %v584
        %v586 = vadd.s32 %v585, 536870912
        %v587 = vshrl.u32 %v586, 30
        %v588 = vshll.u32 %v587, 30
        %v589 = vsub.s32 %v585, %v588
        %vm590 = vcmp.lt.s32.totalorder %v589, 0
        %v591 = vsub.s32 0, %v589
        %v592 = vsel %vm590, %v591, %v589
        %v593 = vclz %v592
        %v594 = vsub.s32 %v593, 2
        %vm595 = vcmp.gt.s32.totalorder 0, %v594
        %v596 = vsel %vm595, 0, %v594
        %v597 = vsub.s32 32, %v596
        %v598 = vshll.u32 %v589, %v596
        %v599 = vshrl.u32 %v581, %v597
        %v600 = vor.u32 %v598, %v599
        %v601 = vsub.s32 4294967266, %v596
        %v602 = vadd.s32 %v601, 127
        %v603 = vshll.u32 %v602, 23
        %v604 = vor.u32 4788187, %v603
        %v605 = vand.u32 2147483647, %v604
        %v607 = vcvt.s32.f32 %v600
        %v608 = vmul.f32 %v607, %v605
        %v609 = vxor.u32 %v608, 2147483648
        %v610 = vsel %vm489, %v609, %v608
        %v611 = vsub.s32 4, %v587
        %v612 = vsel %vm489, %v611, %v587
        %v613 = vsel %vm488, %v455, %v610
        %v614 = vsel %vm488, 0, %v612
        %v615 = vmul.f32 %v613, %v613
        %v616 = vmul.f32 %v615, -0.001358992
        %v617 = vadd.f32 %v616, 0.041655596
        %v618 = vmul.f32 %v615, %v617
        %v619 = vadd.f32 %v618, -0.4999988
        %v620 = vmul.f32 %v615, %v619
        %v621 = vadd.f32 1.0, %v620
        %v622 = vmul.f32 %v613, %v613
        %v623 = vmul.f32 %v622, -0.00019511016
        %v624 = vadd.f32 %v623, 0.008332121
        %v625 = vmul.f32 %v622, %v624
        %v626 = vadd.f32 %v625, -0.16666654
        %v627 = vmul.f32 %v622, %v626
        %v628 = vadd.f32 %v627, 1.0
        %v629 = vmul.f32 %v628, %v613
        %vm630 = vweird.f32 %v455
        %v631 = vadd.s32 %v614, 3
        %v632 = vand.u32 %v631, 3
        %vm633 = vcmp.lt.s32.totalorder %v632, 2
        %vm634 = vcmp.eq.s32.totalorder %v632, 0
        %v635 = vxor.u32 %v629, 2147483648
        %v636 = vsel %vm634, %v621, %v635
        %vm637 = vcmp.eq.s32.totalorder %v632, 2
        %v638 = vxor.u32 %v621, 2147483648
        %v639 = vsel %vm637, %v638, %v629
        %v640 = vsel %vm633, %v636, %v639
        %v641 = vsel %vm630, nan, %v640
        %v642 = vand.u32 2147483647, %v456
        %vm643 = vcmp.le.f32.partialorder %v642, 0.7853982
        %vm644 = vcmp.lt.s32.totalorder %v456, 0
        %v645 = vand.u32 %v456, 2139095040
        %v646 = vshrl.u32 %v645, 23
        %v647 = vsub.s32 %v646, 127
        %v648 = vand.u32 2147483647, %v456
        %v649 = vand.u32 %v648, 8388607
        %v650 = vor.u32 %v649, 8388608
        %v651 = vsub.s32 0, %v650
        %v652 = vadd.s32 %v647, 1
        %vm653 = vcmp.gt.s32.totalorder %v652, 0
        %v654 = vsel %vm653, %v652, 0
        %v655 = vshrl.u32 %v654, 5
        %v656 = vand.u32 %v654, 31
        %v657 = vsub.s32 32, %v656
        %v658 = vshrl.u32 683565275, %v657
        %v659 = vshll.u32 683565275, %v656
        %v660 = vshrl.u32 2475754826, %v657
        %v661 = vor.u32 %v659, %v660
        %v662 = vshll.u32 2475754826, %v656
        %v663 = vshrl.u32 2131351028, %v657
        %v664 = vor.u32 %v662, %v663
        %v665 = vshll.u32 2131351028, %v656
        %v666 = vshrl.u32 2102212464, %v657
        %v667 = vor.u32 %v665, %v666
        %v668 = vshll.u32 2102212464, %v656
        %v669 = vshrl.u32 920167782, %v657
        %v670 = vor.u32 %v668, %v669
        %v671 = vshll.u32 920167782, %v656
        %v672 = vshrl.u32 1326507024, %v657
        %v673 = vor.u32 %v671, %v672
        %vm674 = vcmp.lt.s32.totalorder %v655, 1
        %vm675 = vcmp.lt.s32.totalorder %v655, 2
        %vm676 = vcmp.lt.s32.totalorder %v655, 3
        %vm677 = vcmp.lt.s32.totalorder %v655, 4
        %v678 = vsel %vm674, %v658, %v661
        %v679 = vsel %vm677, %v667, 2102212464
        %v680 = vsel %vm676, %v664, %v679
        %v681 = vsel %vm675, %v678, %v680
        %v682 = vsel %vm674, %v661, %v664
        %v683 = vsel %vm677, %v670, 920167782
        %v684 = vsel %vm676, %v667, %v683
        %v685 = vsel %vm675, %v682, %v684
        %v686 = vsel %vm674, %v664, %v667
        %v687 = vsel %vm677, %v673, 1326507024
        %v688 = vsel %vm676, %v670, %v687
        %v689 = vsel %vm675, %v686, %v688
        %v690 = vshll.u32 %v650, 8
        %v691 = vand.u32 %v690, 65535
        %v692 = vshrl.u32 %v690, 16
        %v693 = vand.u32 %v689, 65535
        %v694 = vshrl.u32 %v689, 16
        %v695 = vmul.u32 %v691, %v693
        %v696 = vmul.u32 %v691, %v694
        %v697 = vmul.u32 %v692, %v693
        %v698 = vmul.u32 %v692, %v694
        %v699 = vshll.u32 %v696, 16
        %v700 = vshrl.u32 %v696, 16
        %v701 = vshll.u32 %v697, 16
        %v702 = vshrl.u32 %v697, 16
        %vm703 = vc.u32 %v695, %v699
        %v704 = vsel %vm703, 1, 0
        %v705 = vadd.s32 %v695, %v699
        %v706 = vadd.s32 %v698, %v704
        %vm707 = vc.u32 %v705, %v701
        %v708 = vsel %vm707, 1, 0
        %v709 = vadd.s32 %v705, %v701
        %v710 = vadd.s32 %v706, %v708
        %v711 = vadd.s32 %v710, %v700
        %v712 = vadd.s32 %v711, %v702
        %v713 = vand.u32 %v690, 65535
        %v714 = vshrl.u32 %v690, 16
        %v715 = vand.u32 %v685, 65535
        %v716 = vshrl.u32 %v685, 16
        %v717 = vmul.u32 %v713, %v715
        %v718 = vmul.u32 %v713, %v716
        %v719 = vmul.u32 %v714, %v715
        %v720 = vmul.u32 %v714, %v716
        %v721 = vshll.u32 %v718, 16
        %v722 = vshrl.u32 %v718, 16
        %v723 = vshll.u32 %v719, 16
        %v724 = vshrl.u32 %v719, 16
        %vm725 = vc.u32 %v717, %v721
        %v726 = vsel %vm725, 1, 0
        %v727 = vadd.s32 %v717, %v721
        %v728 = vadd.s32 %v720, %v726
        %vm729 = vc.u32 %v727, %v723
        %v730 = vsel %vm729, 1, 0
        %v731 = vadd.s32 %v727, %v723
        %v732 = vadd.s32 %v728, %v730
        %v733 = vadd.s32 %v732, %v722
        %v734 = vadd.s32 %v733, %v724
        %v735 = vmul.u32 %v690, %v681
        %v736 = vadd.s32 %v712, %v731
        %vm737 = vc.u32 %v712, %v731
        %v738 = vadd.s32 %v734, 1
        %v739 = vsel %vm737, %v738, %v734
        %v740 = vadd.s32 %v735, %v739
        %v741 = vadd.s32 %v740, 536870912
        %v742 = vshrl.u32 %v741, 30
        %v743 = vshll.u32 %v742, 30
        %v744 = vsub.s32 %v740, %v743
        %vm745 = vcmp.lt.s32.totalorder %v744, 0
        %v746 = vsub.s32 0, %v744
        %v747 = vsel %vm745, %v746, %v744
        %v748 = vclz %v747
        %v749 = vsub.s32 %v748, 2
        %vm750 = vcmp.gt.s32.totalorder 0, %v749
        %v751 = vsel %vm750, 0, %v749
        %v752 = vsub.s32 32, %v751
        %v753 = vshll.u32 %v744, %v751
        %v754 = vshrl.u32 %v736, %v752
        %v755 = vor.u32 %v753, %v754
        %v756 = vsub.s32 4294967266, %v751
        %v757 = vadd.s32 %v756, 127
        %v758 = vshll.u32 %v757, 23
        %v759 = vor.u32 4788187, %v758
        %v760 = vand.u32 2147483647, %v759
        %v762 = vcvt.s32.f32 %v755
        %v763 = vmul.f32 %v762, %v760
        %v764 = vxor.u32 %v763, 2147483648
        %v765 = vsel %vm644, %v764, %v763
        %v766 = vsub.s32 4, %v742
        %v767 = vsel %vm644, %v766, %v742
        %v768 = vsel %vm643, %v456, %v765
        %v769 = vsel %vm643, 0, %v767
        %v770 = vmul.f32 %v768, %v768
        %v771 = vmul.f32 %v770, -0.001358992
        %v772 = vadd.f32 %v771, 0.041655596
        %v773 = vmul.f32 %v770, %v772
        %v774 = vadd.f32 %v773, -0.4999988
        %v775 = vmul.f32 %v770, %v774
        %v776 = vadd.f32 1.0, %v775
        %v777 = vmul.f32 %v768, %v768
        %v778 = vmul.f32 %v777, -0.00019511016
        %v779 = vadd.f32 %v778, 0.008332121
        %v780 = vmul.f32 %v777, %v779
        %v781 = vadd.f32 %v780, -0.16666654
        %v782 = vmul.f32 %v777, %v781
        %v783 = vadd.f32 %v782, 1.0
        %v784 = vmul.f32 %v783, %v768
        %vm785 = vweird.f32 %v456
        %v786 = vadd.s32 %v769, 3
        %v787 = vand.u32 %v786, 3
        %vm788 = vcmp.lt.s32.totalorder %v787, 2
        %vm789 = vcmp.eq.s32.totalorder %v787, 0
        %v790 = vxor.u32 %v784, 2147483648
        %v791 = vsel %vm789, %v776, %v790
        %vm792 = vcmp.eq.s32.totalorder %v787, 2
        %v793 = vxor.u32 %v776, 2147483648
        %v794 = vsel %vm792, %v793, %v784
        %v795 = vsel %vm788, %v791, %v794
        %v796 = vsel %vm785, nan, %v795
        %v797 = vand.u32 2147483647, %v457
        %vm798 = vcmp.le.f32.partialorder %v797, 0.7853982
        %vm799 = vcmp.lt.s32.totalorder %v457, 0
        %v800 = vand.u32 %v457, 2139095040
        %v801 = vshrl.u32 %v800, 23
        %v802 = vsub.s32 %v801, 127
        %v803 = vand.u32 2147483647, %v457
        %v804 = vand.u32 %v803, 8388607
        %v805 = vor.u32 %v804, 8388608
        %v806 = vsub.s32 0, %v805
        %v807 = vadd.s32 %v802, 1
        %vm808 = vcmp.gt.s32.totalorder %v807, 0
        %v809 = vsel %vm808, %v807, 0
        %v810 = vshrl.u32 %v809, 5
        %v811 = vand.u32 %v809, 31
        %v812 = vsub.s32 32, %v811
        %v813 = vshrl.u32 683565275, %v812
        %v814 = vshll.u32 683565275, %v811
        %v815 = vshrl.u32 2475754826, %v812
        %v816 = vor.u32 %v814, %v815
        %v817 = vshll.u32 2475754826, %v811
        %v818 = vshrl.u32 2131351028, %v812
        %v819 = vor.u32 %v817, %v818
        %v820 = vshll.u32 2131351028, %v811
        %v821 = vshrl.u32 2102212464, %v812
        %v822 = vor.u32 %v820, %v821
        %v823 = vshll.u32 2102212464, %v811
        %v824 = vshrl.u32 920167782, %v812
        %v825 = vor.u32 %v823, %v824
        %v826 = vshll.u32 920167782, %v811
        %v827 = vshrl.u32 1326507024, %v812
        %v828 = vor.u32 %v826, %v827
        %vm829 = vcmp.lt.s32.totalorder %v810, 1
        %vm830 = vcmp.lt.s32.totalorder %v810, 2
        %vm831 = vcmp.lt.s32.totalorder %v810, 3
        %vm832 = vcmp.lt.s32.totalorder %v810, 4
        %v833 = vsel %vm829, %v813, %v816
        %v834 = vsel %vm832, %v822, 2102212464
        %v835 = vsel %vm831, %v819, %v834
        %v836 = vsel %vm830, %v833, %v835
        %v837 = vsel %vm829, %v816, %v819
        %v838 = vsel %vm832, %v825, 920167782
        %v839 = vsel %vm831, %v822, %v838
        %v840 = vsel %vm830, %v837, %v839
        %v841 = vsel %vm829, %v819, %v822
        %v842 = vsel %vm832, %v828, 1326507024
        %v843 = vsel %vm831, %v825, %v842
        %v844 = vsel %vm830, %v841, %v843
        %v845 = vshll.u32 %v805, 8
        %v846 = vand.u32 %v845, 65535
        %v847 = vshrl.u32 %v845, 16
        %v848 = vand.u32 %v844, 65535
        %v849 = vshrl.u32 %v844, 16
        %v850 = vmul.u32 %v846, %v848
        %v851 = vmul.u32 %v846, %v849
        %v852 = vmul.u32 %v847, %v848
        %v853 = vmul.u32 %v847, %v849
        %v854 = vshll.u32 %v851, 16
        %v855 = vshrl.u32 %v851, 16
        %v856 = vshll.u32 %v852, 16
        %v857 = vshrl.u32 %v852, 16
        %vm858 = vc.u32 %v850, %v854
        %v859 = vsel %vm858, 1, 0
        %v860 = vadd.s32 %v850, %v854
        %v861 = vadd.s32 %v853, %v859
        %vm862 = vc.u32 %v860, %v856
        %v863 = vsel %vm862, 1, 0
        %v864 = vadd.s32 %v860, %v856
        %v865 = vadd.s32 %v861, %v863
        %v866 = vadd.s32 %v865, %v855
        %v867 = vadd.s32 %v866, %v857
        %v868 = vand.u32 %v845, 65535
        %v869 = vshrl.u32 %v845, 16
        %v870 = vand.u32 %v840, 65535
        %v871 = vshrl.u32 %v840, 16
        %v872 = vmul.u32 %v868, %v870
        %v873 = vmul.u32 %v868, %v871
        %v874 = vmul.u32 %v869, %v870
        %v875 = vmul.u32 %v869, %v871
        %v876 = vshll.u32 %v873, 16
        %v877 = vshrl.u32 %v873, 16
        %v878 = vshll.u32 %v874, 16
        %v879 = vshrl.u32 %v874, 16
        %vm880 = vc.u32 %v872, %v876
        %v881 = vsel %vm880, 1, 0
        %v882 = vadd.s32 %v872, %v876
        %v883 = vadd.s32 %v875, %v881
        %vm884 = vc.u32 %v882, %v878
        %v885 = vsel %vm884, 1, 0
        %v886 = vadd.s32 %v882, %v878
        %v887 = vadd.s32 %v883, %v885
        %v888 = vadd.s32 %v887, %v877
        %v889 = vadd.s32 %v888, %v879
        %v890 = vmul.u32 %v845, %v836
        %v891 = vadd.s32 %v867, %v886
        %vm892 = vc.u32 %v867, %v886
        %v893 = vadd.s32 %v889, 1
        %v894 = vsel %vm892, %v893, %v889
        %v895 = vadd.s32 %v890, %v894
        %v896 = vadd.s32 %v895, 536870912
        %v897 = vshrl.u32 %v896, 30
        %v898 = vshll.u32 %v897, 30
        %v899 = vsub.s32 %v895, %v898
        %vm900 = vcmp.lt.s32.totalorder %v899, 0
        %v901 = vsub.s32 0, %v899
        %v902 = vsel %vm900, %v901, %v899
        %v903 = vclz %v902
        %v904 = vsub.s32 %v903, 2
        %vm905 = vcmp.gt.s32.totalorder 0, %v904
        %v906 = vsel %vm905, 0, %v904
        %v907 = vsub.s32 32, %v906
        %v908 = vshll.u32 %v899, %v906
        %v909 = vshrl.u32 %v891, %v907
        %v910 = vor.u32 %v908, %v909
        %v911 = vsub.s32 4294967266, %v906
        %v912 = vadd.s32 %v911, 127
        %v913 = vshll.u32 %v912, 23
        %v914 = vor.u32 4788187, %v913
        %v915 = vand.u32 2147483647, %v914
        %v917 = vcvt.s32.f32 %v910
        %v918 = vmul.f32 %v917, %v915
        %v919 = vxor.u32 %v918, 2147483648
        %v920 = vsel %vm799, %v919, %v918
        %v921 = vsub.s32 4, %v897
        %v922 = vsel %vm799, %v921, %v897
        %v923 = vsel %vm798, %v457, %v920
        %v924 = vsel %vm798, 0, %v922
        %v925 = vmul.f32 %v923, %v923
        %v926 = vmul.f32 %v925, -0.001358992
        %v927 = vadd.f32 %v926, 0.041655596
        %v928 = vmul.f32 %v925, %v927
        %v929 = vadd.f32 %v928, -0.4999988
        %v930 = vmul.f32 %v925, %v929
        %v931 = vadd.f32 1.0, %v930
        %v932 = vmul.f32 %v923, %v923
        %v933 = vmul.f32 %v932, -0.00019511016
        %v934 = vadd.f32 %v933, 0.008332121
        %v935 = vmul.f32 %v932, %v934
        %v936 = vadd.f32 %v935, -0.16666654
        %v937 = vmul.f32 %v932, %v936
        %v938 = vadd.f32 %v937, 1.0
        %v939 = vmul.f32 %v938, %v923
        %vm940 = vweird.f32 %v457
        %v941 = vadd.s32 %v924, 3
        %v942 = vand.u32 %v941, 3
        %vm943 = vcmp.lt.s32.totalorder %v942, 2
        %vm944 = vcmp.eq.s32.totalorder %v942, 0
        %v945 = vxor.u32 %v939, 2147483648
        %v946 = vsel %vm944, %v931, %v945
        %vm947 = vcmp.eq.s32.totalorder %v942, 2
        %v948 = vxor.u32 %v931, 2147483648
        %v949 = vsel %vm947, %v948, %v939
        %v950 = vsel %vm943, %v946, %v949
        %v951 = vsel %vm940, nan, %v950
        %v952 = vand.u32 2147483647, %v458
        %vm953 = vcmp.le.f32.partialorder %v952, 0.7853982
        %vm954 = vcmp.lt.s32.totalorder %v458, 0
        %v955 = vand.u32 %v458, 2139095040
        %v956 = vshrl.u32 %v955, 23
        %v957 = vsub.s32 %v956, 127
        %v958 = vand.u32 2147483647, %v458
        %v959 = vand.u32 %v958, 8388607
        %v960 = vor.u32 %v959, 8388608
        %v961 = vsub.s32 0, %v960
        %v962 = vadd.s32 %v957, 1
        %vm963 = vcmp.gt.s32.totalorder %v962, 0
        %v964 = vsel %vm963, %v962, 0
        %v965 = vshrl.u32 %v964, 5
        %v966 = vand.u32 %v964, 31
        %v967 = vsub.s32 32, %v966
        %v968 = vshrl.u32 683565275, %v967
        %v969 = vshll.u32 683565275, %v966
        %v970 = vshrl.u32 2475754826, %v967
        %v971 = vor.u32 %v969, %v970
        %v972 = vshll.u32 2475754826, %v966
        %v973 = vshrl.u32 2131351028, %v967
        %v974 = vor.u32 %v972, %v973
        %v975 = vshll.u32 2131351028, %v966
        %v976 = vshrl.u32 2102212464, %v967
        %v977 = vor.u32 %v975, %v976
        %v978 = vshll.u32 2102212464, %v966
        %v979 = vshrl.u32 920167782, %v967
        %v980 = vor.u32 %v978, %v979
        %v981 = vshll.u32 920167782, %v966
        %v982 = vshrl.u32 1326507024, %v967
        %v983 = vor.u32 %v981, %v982
        %vm984 = vcmp.lt.s32.totalorder %v965, 1
        %vm985 = vcmp.lt.s32.totalorder %v965, 2
        %vm986 = vcmp.lt.s32.totalorder %v965, 3
        %vm987 = vcmp.lt.s32.totalorder %v965, 4
        %v988 = vsel %vm984, %v968, %v971
        %v989 = vsel %vm987, %v977, 2102212464
        %v990 = vsel %vm986, %v974, %v989
        %v991 = vsel %vm985, %v988, %v990
        %v992 = vsel %vm984, %v971, %v974
        %v993 = vsel %vm987, %v980, 920167782
        %v994 = vsel %vm986, %v977, %v993
        %v995 = vsel %vm985, %v992, %v994
        %v996 = vsel %vm984, %v974, %v977
        %v997 = vsel %vm987, %v983, 1326507024
        %v998 = vsel %vm986, %v980, %v997
        %v999 = vsel %vm985, %v996, %v998
        %v1000 = vshll.u32 %v960, 8
        %v1001 = vand.u32 %v1000, 65535
        %v1002 = vshrl.u32 %v1000, 16
        %v1003 = vand.u32 %v999, 65535
        %v1004 = vshrl.u32 %v999, 16
        %v1005 = vmul.u32 %v1001, %v1003
        %v1006 = vmul.u32 %v1001, %v1004
        %v1007 = vmul.u32 %v1002, %v1003
        %v1008 = vmul.u32 %v1002, %v1004
        %v1009 = vshll.u32 %v1006, 16
        %v1010 = vshrl.u32 %v1006, 16
        %v1011 = vshll.u32 %v1007, 16
        %v1012 = vshrl.u32 %v1007, 16
        %vm1013 = vc.u32 %v1005, %v1009
        %v1014 = vsel %vm1013, 1, 0
        %v1015 = vadd.s32 %v1005, %v1009
        %v1016 = vadd.s32 %v1008, %v1014
        %vm1017 = vc.u32 %v1015, %v1011
        %v1018 = vsel %vm1017, 1, 0
        %v1019 = vadd.s32 %v1015, %v1011
        %v1020 = vadd.s32 %v1016, %v1018
        %v1021 = vadd.s32 %v1020, %v1010
        %v1022 = vadd.s32 %v1021, %v1012
        %v1023 = vand.u32 %v1000, 65535
        %v1024 = vshrl.u32 %v1000, 16
        %v1025 = vand.u32 %v995, 65535
        %v1026 = vshrl.u32 %v995, 16
        %v1027 = vmul.u32 %v1023, %v1025
        %v1028 = vmul.u32 %v1023, %v1026
        %v1029 = vmul.u32 %v1024, %v1025
        %v1030 = vmul.u32 %v1024, %v1026
        %v1031 = vshll.u32 %v1028, 16
        %v1032 = vshrl.u32 %v1028, 16
        %v1033 = vshll.u32 %v1029, 16
        %v1034 = vshrl.u32 %v1029, 16
        %vm1035 = vc.u32 %v1027, %v1031
        %v1036 = vsel %vm1035, 1, 0
        %v1037 = vadd.s32 %v1027, %v1031
        %v1038 = vadd.s32 %v1030, %v1036
        %vm1039 = vc.u32 %v1037, %v1033
        %v1040 = vsel %vm1039, 1, 0
        %v1041 = vadd.s32 %v1037, %v1033
        %v1042 = vadd.s32 %v1038, %v1040
        %v1043 = vadd.s32 %v1042, %v1032
        %v1044 = vadd.s32 %v1043, %v1034
        %v1045 = vmul.u32 %v1000, %v991
        %v1046 = vadd.s32 %v1022, %v1041
        %vm1047 = vc.u32 %v1022, %v1041
        %v1048 = vadd.s32 %v1044, 1
        %v1049 = vsel %vm1047, %v1048, %v1044
        %v1050 = vadd.s32 %v1045, %v1049
        %v1051 = vadd.s32 %v1050, 536870912
        %v1052 = vshrl.u32 %v1051, 30
        %v1053 = vshll.u32 %v1052, 30
        %v1054 = vsub.s32 %v1050, %v1053
        %vm1055 = vcmp.lt.s32.totalorder %v1054, 0
        %v1056 = vsub.s32 0, %v1054
        %v1057 = vsel %vm1055, %v1056, %v1054
        %v1058 = vclz %v1057
        %v1059 = vsub.s32 %v1058, 2
        %vm1060 = vcmp.gt.s32.totalorder 0, %v1059
        %v1061 = vsel %vm1060, 0, %v1059
        %v1062 = vsub.s32 32, %v1061
        %v1063 = vshll.u32 %v1054, %v1061
        %v1064 = vshrl.u32 %v1046, %v1062
        %v1065 = vor.u32 %v1063, %v1064
        %v1066 = vsub.s32 4294967266, %v1061
        %v1067 = vadd.s32 %v1066, 127
        %v1068 = vshll.u32 %v1067, 23
        %v1069 = vor.u32 4788187, %v1068
        %v1070 = vand.u32 2147483647, %v1069
        %v1072 = vcvt.s32.f32 %v1065
        %v1073 = vmul.f32 %v1072, %v1070
        %v1074 = vxor.u32 %v1073, 2147483648
        %v1075 = vsel %vm954, %v1074, %v1073
        %v1076 = vsub.s32 4, %v1052
        %v1077 = vsel %vm954, %v1076, %v1052
        %v1078 = vsel %vm953, %v458, %v1075
        %v1079 = vsel %vm953, 0, %v1077
        %v1080 = vmul.f32 %v1078, %v1078
        %v1081 = vmul.f32 %v1080, -0.001358992
        %v1082 = vadd.f32 %v1081, 0.041655596
        %v1083 = vmul.f32 %v1080, %v1082
        %v1084 = vadd.f32 %v1083, -0.4999988
        %v1085 = vmul.f32 %v1080, %v1084
        %v1086 = vadd.f32 1.0, %v1085
        %v1087 = vmul.f32 %v1078, %v1078
        %v1088 = vmul.f32 %v1087, -0.00019511016
        %v1089 = vadd.f32 %v1088, 0.008332121
        %v1090 = vmul.f32 %v1087, %v1089
        %v1091 = vadd.f32 %v1090, -0.16666654
        %v1092 = vmul.f32 %v1087, %v1091
        %v1093 = vadd.f32 %v1092, 1.0
        %v1094 = vmul.f32 %v1093, %v1078
        %vm1095 = vweird.f32 %v458
        %v1096 = vadd.s32 %v1079, 3
        %v1097 = vand.u32 %v1096, 3
        %vm1098 = vcmp.lt.s32.totalorder %v1097, 2
        %vm1099 = vcmp.eq.s32.totalorder %v1097, 0
        %v1100 = vxor.u32 %v1094, 2147483648
        %v1101 = vsel %vm1099, %v1086, %v1100
        %vm1102 = vcmp.eq.s32.totalorder %v1097, 2
        %v1103 = vxor.u32 %v1086, 2147483648
        %v1104 = vsel %vm1102, %v1103, %v1094
        %v1105 = vsel %vm1098, %v1101, %v1104
        %v1106 = vsel %vm1095, nan, %v1105
        %v1107 = vand.u32 2147483647, %v459
        %vm1108 = vcmp.le.f32.partialorder %v1107, 0.7853982
        %vm1109 = vcmp.lt.s32.totalorder %v459, 0
        %v1110 = vand.u32 %v459, 2139095040
        %v1111 = vshrl.u32 %v1110, 23
        %v1112 = vsub.s32 %v1111, 127
        %v1113 = vand.u32 2147483647, %v459
        %v1114 = vand.u32 %v1113, 8388607
        %v1115 = vor.u32 %v1114, 8388608
        %v1116 = vsub.s32 0, %v1115
        %v1117 = vadd.s32 %v1112, 1
        %vm1118 = vcmp.gt.s32.totalorder %v1117, 0
        %v1119 = vsel %vm1118, %v1117, 0
        %v1120 = vshrl.u32 %v1119, 5
        %v1121 = vand.u32 %v1119, 31
        %v1122 = vsub.s32 32, %v1121
        %v1123 = vshrl.u32 683565275, %v1122
        %v1124 = vshll.u32 683565275, %v1121
        %v1125 = vshrl.u32 2475754826, %v1122
        %v1126 = vor.u32 %v1124, %v1125
        %v1127 = vshll.u32 2475754826, %v1121
        %v1128 = vshrl.u32 2131351028, %v1122
        %v1129 = vor.u32 %v1127, %v1128
        %v1130 = vshll.u32 2131351028, %v1121
        %v1131 = vshrl.u32 2102212464, %v1122
        %v1132 = vor.u32 %v1130, %v1131
        %v1133 = vshll.u32 2102212464, %v1121
        %v1134 = vshrl.u32 920167782, %v1122
        %v1135 = vor.u32 %v1133, %v1134
        %v1136 = vshll.u32 920167782, %v1121
        %v1137 = vshrl.u32 1326507024, %v1122
        %v1138 = vor.u32 %v1136, %v1137
        %vm1139 = vcmp.lt.s32.totalorder %v1120, 1
        %vm1140 = vcmp.lt.s32.totalorder %v1120, 2
        %vm1141 = vcmp.lt.s32.totalorder %v1120, 3
        %vm1142 = vcmp.lt.s32.totalorder %v1120, 4
        %v1143 = vsel %vm1139, %v1123, %v1126
        %v1144 = vsel %vm1142, %v1132, 2102212464
        %v1145 = vsel %vm1141, %v1129, %v1144
        %v1146 = vsel %vm1140, %v1143, %v1145
        %v1147 = vsel %vm1139, %v1126, %v1129
        %v1148 = vsel %vm1142, %v1135, 920167782
        %v1149 = vsel %vm1141, %v1132, %v1148
        %v1150 = vsel %vm1140, %v1147, %v1149
        %v1151 = vsel %vm1139, %v1129, %v1132
        %v1152 = vsel %vm1142, %v1138, 1326507024
        %v1153 = vsel %vm1141, %v1135, %v1152
        %v1154 = vsel %vm1140, %v1151, %v1153
        %v1155 = vshll.u32 %v1115, 8
        %v1156 = vand.u32 %v1155, 65535
        %v1157 = vshrl.u32 %v1155, 16
        %v1158 = vand.u32 %v1154, 65535
        %v1159 = vshrl.u32 %v1154, 16
        %v1160 = vmul.u32 %v1156, %v1158
        %v1161 = vmul.u32 %v1156, %v1159
        %v1162 = vmul.u32 %v1157, %v1158
        %v1163 = vmul.u32 %v1157, %v1159
        %v1164 = vshll.u32 %v1161, 16
        %v1165 = vshrl.u32 %v1161, 16
        %v1166 = vshll.u32 %v1162, 16
        %v1167 = vshrl.u32 %v1162, 16
        %vm1168 = vc.u32 %v1160, %v1164
        %v1169 = vsel %vm1168, 1, 0
        %v1170 = vadd.s32 %v1160, %v1164
        %v1171 = vadd.s32 %v1163, %v1169
        %vm1172 = vc.u32 %v1170, %v1166
        %v1173 = vsel %vm1172, 1, 0
        %v1174 = vadd.s32 %v1170, %v1166
        %v1175 = vadd.s32 %v1171, %v1173
        %v1176 = vadd.s32 %v1175, %v1165
        %v1177 = vadd.s32 %v1176, %v1167
        %v1178 = vand.u32 %v1155, 65535
        %v1179 = vshrl.u32 %v1155, 16
        %v1180 = vand.u32 %v1150, 65535
        %v1181 = vshrl.u32 %v1150, 16
        %v1182 = vmul.u32 %v1178, %v1180
        %v1183 = vmul.u32 %v1178, %v1181
        %v1184 = vmul.u32 %v1179, %v1180
        %v1185 = vmul.u32 %v1179, %v1181
        %v1186 = vshll.u32 %v1183, 16
        %v1187 = vshrl.u32 %v1183, 16
        %v1188 = vshll.u32 %v1184, 16
        %v1189 = vshrl.u32 %v1184, 16
        %vm1190 = vc.u32 %v1182, %v1186
        %v1191 = vsel %vm1190, 1, 0
        %v1192 = vadd.s32 %v1182, %v1186
        %v1193 = vadd.s32 %v1185, %v1191
        %vm1194 = vc.u32 %v1192, %v1188
        %v1195 = vsel %vm1194, 1, 0
        %v1196 = vadd.s32 %v1192, %v1188
        %v1197 = vadd.s32 %v1193, %v1195
        %v1198 = vadd.s32 %v1197, %v1187
        %v1199 = vadd.s32 %v1198, %v1189
        %v1200 = vmul.u32 %v1155, %v1146
        %v1201 = vadd.s32 %v1177, %v1196
        %vm1202 = vc.u32 %v1177, %v1196
        %v1203 = vadd.s32 %v1199, 1
        %v1204 = vsel %vm1202, %v1203, %v1199
        %v1205 = vadd.s32 %v1200, %v1204
        %v1206 = vadd.s32 %v1205, 536870912
        %v1207 = vshrl.u32 %v1206, 30
        %v1208 = vshll.u32 %v1207, 30
        %v1209 = vsub.s32 %v1205, %v1208
        %vm1210 = vcmp.lt.s32.totalorder %v1209, 0
        %v1211 = vsub.s32 0, %v1209
        %v1212 = vsel %vm1210, %v1211, %v1209
        %v1213 = vclz %v1212
        %v1214 = vsub.s32 %v1213, 2
        %vm1215 = vcmp.gt.s32.totalorder 0, %v1214
        %v1216 = vsel %vm1215, 0, %v1214
        %v1217 = vsub.s32 32, %v1216
        %v1218 = vshll.u32 %v1209, %v1216
        %v1219 = vshrl.u32 %v1201, %v1217
        %v1220 = vor.u32 %v1218, %v1219
        %v1221 = vsub.s32 4294967266, %v1216
        %v1222 = vadd.s32 %v1221, 127
        %v1223 = vshll.u32 %v1222, 23
        %v1224 = vor.u32 4788187, %v1223
        %v1225 = vand.u32 2147483647, %v1224
        %v1227 = vcvt.s32.f32 %v1220
        %v1228 = vmul.f32 %v1227, %v1225
        %v1229 = vxor.u32 %v1228, 2147483648
        %v1230 = vsel %vm1109, %v1229, %v1228
        %v1231 = vsub.s32 4, %v1207
        %v1232 = vsel %vm1109, %v1231, %v1207
        %v1233 = vsel %vm1108, %v459, %v1230
        %v1234 = vsel %vm1108, 0, %v1232
        %v1235 = vmul.f32 %v1233, %v1233
        %v1236 = vmul.f32 %v1235, -0.001358992
        %v1237 = vadd.f32 %v1236, 0.041655596
        %v1238 = vmul.f32 %v1235, %v1237
        %v1239 = vadd.f32 %v1238, -0.4999988
        %v1240 = vmul.f32 %v1235, %v1239
        %v1241 = vadd.f32 1.0, %v1240
        %v1242 = vmul.f32 %v1233, %v1233
        %v1243 = vmul.f32 %v1242, -0.00019511016
        %v1244 = vadd.f32 %v1243, 0.008332121
        %v1245 = vmul.f32 %v1242, %v1244
        %v1246 = vadd.f32 %v1245, -0.16666654
        %v1247 = vmul.f32 %v1242, %v1246
        %v1248 = vadd.f32 %v1247, 1.0
        %v1249 = vmul.f32 %v1248, %v1233
        %vm1250 = vweird.f32 %v459
        %v1251 = vadd.s32 %v1234, 3
        %v1252 = vand.u32 %v1251, 3
        %vm1253 = vcmp.lt.s32.totalorder %v1252, 2
        %vm1254 = vcmp.eq.s32.totalorder %v1252, 0
        %v1255 = vxor.u32 %v1249, 2147483648
        %v1256 = vsel %vm1254, %v1241, %v1255
        %vm1257 = vcmp.eq.s32.totalorder %v1252, 2
        %v1258 = vxor.u32 %v1241, 2147483648
        %v1259 = vsel %vm1257, %v1258, %v1249
        %v1260 = vsel %vm1253, %v1256, %v1259
        %v1261 = vsel %vm1250, nan, %v1260
        %v1262 = vand.u32 2147483647, %v460
        %vm1263 = vcmp.le.f32.partialorder %v1262, 0.7853982
        %vm1264 = vcmp.lt.s32.totalorder %v460, 0
        %v1265 = vand.u32 %v460, 2139095040
        %v1266 = vshrl.u32 %v1265, 23
        %v1267 = vsub.s32 %v1266, 127
        %v1268 = vand.u32 2147483647, %v460
        %v1269 = vand.u32 %v1268, 8388607
        %v1270 = vor.u32 %v1269, 8388608
        %v1271 = vsub.s32 0, %v1270
        %v1272 = vadd.s32 %v1267, 1
        %vm1273 = vcmp.gt.s32.totalorder %v1272, 0
        %v1274 = vsel %vm1273, %v1272, 0
        %v1275 = vshrl.u32 %v1274, 5
        %v1276 = vand.u32 %v1274, 31
        %v1277 = vsub.s32 32, %v1276
        %v1278 = vshrl.u32 683565275, %v1277
        %v1279 = vshll.u32 683565275, %v1276
        %v1280 = vshrl.u32 2475754826, %v1277
        %v1281 = vor.u32 %v1279, %v1280
        %v1282 = vshll.u32 2475754826, %v1276
        %v1283 = vshrl.u32 2131351028, %v1277
        %v1284 = vor.u32 %v1282, %v1283
        %v1285 = vshll.u32 2131351028, %v1276
        %v1286 = vshrl.u32 2102212464, %v1277
        %v1287 = vor.u32 %v1285, %v1286
        %v1288 = vshll.u32 2102212464, %v1276
        %v1289 = vshrl.u32 920167782, %v1277
        %v1290 = vor.u32 %v1288, %v1289
        %v1291 = vshll.u32 920167782, %v1276
        %v1292 = vshrl.u32 1326507024, %v1277
        %v1293 = vor.u32 %v1291, %v1292
        %vm1294 = vcmp.lt.s32.totalorder %v1275, 1
        %vm1295 = vcmp.lt.s32.totalorder %v1275, 2
        %vm1296 = vcmp.lt.s32.totalorder %v1275, 3
        %vm1297 = vcmp.lt.s32.totalorder %v1275, 4
        %v1298 = vsel %vm1294, %v1278, %v1281
        %v1299 = vsel %vm1297, %v1287, 2102212464
        %v1300 = vsel %vm1296, %v1284, %v1299
        %v1301 = vsel %vm1295, %v1298, %v1300
        %v1302 = vsel %vm1294, %v1281, %v1284
        %v1303 = vsel %vm1297, %v1290, 920167782
        %v1304 = vsel %vm1296, %v1287, %v1303
        %v1305 = vsel %vm1295, %v1302, %v1304
        %v1306 = vsel %vm1294, %v1284, %v1287
        %v1307 = vsel %vm1297, %v1293, 1326507024
        %v1308 = vsel %vm1296, %v1290, %v1307
        %v1309 = vsel %vm1295, %v1306, %v1308
        %v1310 = vshll.u32 %v1270, 8
        %v1311 = vand.u32 %v1310, 65535
        %v1312 = vshrl.u32 %v1310, 16
        %v1313 = vand.u32 %v1309, 65535
        %v1314 = vshrl.u32 %v1309, 16
        %v1315 = vmul.u32 %v1311, %v1313
        %v1316 = vmul.u32 %v1311, %v1314
        %v1317 = vmul.u32 %v1312, %v1313
        %v1318 = vmul.u32 %v1312, %v1314
        %v1319 = vshll.u32 %v1316, 16
        %v1320 = vshrl.u32 %v1316, 16
        %v1321 = vshll.u32 %v1317, 16
        %v1322 = vshrl.u32 %v1317, 16
        %vm1323 = vc.u32 %v1315, %v1319
        %v1324 = vsel %vm1323, 1, 0
        %v1325 = vadd.s32 %v1315, %v1319
        %v1326 = vadd.s32 %v1318, %v1324
        %vm1327 = vc.u32 %v1325, %v1321
        %v1328 = vsel %vm1327, 1, 0
        %v1329 = vadd.s32 %v1325, %v1321
        %v1330 = vadd.s32 %v1326, %v1328
        %v1331 = vadd.s32 %v1330, %v1320
        %v1332 = vadd.s32 %v1331, %v1322
        %v1333 = vand.u32 %v1310, 65535
        %v1334 = vshrl.u32 %v1310, 16
        %v1335 = vand.u32 %v1305, 65535
        %v1336 = vshrl.u32 %v1305, 16
        %v1337 = vmul.u32 %v1333, %v1335
        %v1338 = vmul.u32 %v1333, %v1336
        %v1339 = vmul.u32 %v1334, %v1335
        %v1340 = vmul.u32 %v1334, %v1336
        %v1341 = vshll.u32 %v1338, 16
        %v1342 = vshrl.u32 %v1338, 16
        %v1343 = vshll.u32 %v1339, 16
        %v1344 = vshrl.u32 %v1339, 16
        %vm1345 = vc.u32 %v1337, %v1341
        %v1346 = vsel %vm1345, 1, 0
        %v1347 = vadd.s32 %v1337, %v1341
        %v1348 = vadd.s32 %v1340, %v1346
        %vm1349 = vc.u32 %v1347, %v1343
        %v1350 = vsel %vm1349, 1, 0
        %v1351 = vadd.s32 %v1347, %v1343
        %v1352 = vadd.s32 %v1348, %v1350
        %v1353 = vadd.s32 %v1352, %v1342
        %v1354 = vadd.s32 %v1353, %v1344
        %v1355 = vmul.u32 %v1310, %v1301
        %v1356 = vadd.s32 %v1332, %v1351
        %vm1357 = vc.u32 %v1332, %v1351
        %v1358 = vadd.s32 %v1354, 1
        %v1359 = vsel %vm1357, %v1358, %v1354
        %v1360 = vadd.s32 %v1355, %v1359
        %v1361 = vadd.s32 %v1360, 536870912
        %v1362 = vshrl.u32 %v1361, 30
        %v1363 = vshll.u32 %v1362, 30
        %v1364 = vsub.s32 %v1360, %v1363
        %vm1365 = vcmp.lt.s32.totalorder %v1364, 0
        %v1366 = vsub.s32 0, %v1364
        %v1367 = vsel %vm1365, %v1366, %v1364
        %v1368 = vclz %v1367
        %v1369 = vsub.s32 %v1368, 2
        %vm1370 = vcmp.gt.s32.totalorder 0, %v1369
        %v1371 = vsel %vm1370, 0, %v1369
        %v1372 = vsub.s32 32, %v1371
        %v1373 = vshll.u32 %v1364, %v1371
        %v1374 = vshrl.u32 %v1356, %v1372
        %v1375 = vor.u32 %v1373, %v1374
        %v1376 = vsub.s32 4294967266, %v1371
        %v1377 = vadd.s32 %v1376, 127
        %v1378 = vshll.u32 %v1377, 23
        %v1379 = vor.u32 4788187, %v1378
        %v1380 = vand.u32 2147483647, %v1379
        %v1382 = vcvt.s32.f32 %v1375
        %v1383 = vmul.f32 %v1382, %v1380
        %v1384 = vxor.u32 %v1383, 2147483648
        %v1385 = vsel %vm1264, %v1384, %v1383
        %v1386 = vsub.s32 4, %v1362
        %v1387 = vsel %vm1264, %v1386, %v1362
        %v1388 = vsel %vm1263, %v460, %v1385
        %v1389 = vsel %vm1263, 0, %v1387
        %v1390 = vmul.f32 %v1388, %v1388
        %v1391 = vmul.f32 %v1390, -0.001358992
        %v1392 = vadd.f32 %v1391, 0.041655596
        %v1393 = vmul.f32 %v1390, %v1392
        %v1394 = vadd.f32 %v1393, -0.4999988
        %v1395 = vmul.f32 %v1390, %v1394
        %v1396 = vadd.f32 1.0, %v1395
        %v1397 = vmul.f32 %v1388, %v1388
        %v1398 = vmul.f32 %v1397, -0.00019511016
        %v1399 = vadd.f32 %v1398, 0.008332121
        %v1400 = vmul.f32 %v1397, %v1399
        %v1401 = vadd.f32 %v1400, -0.16666654
        %v1402 = vmul.f32 %v1397, %v1401
        %v1403 = vadd.f32 %v1402, 1.0
        %v1404 = vmul.f32 %v1403, %v1388
        %vm1405 = vweird.f32 %v460
        %v1406 = vadd.s32 %v1389, 3
        %v1407 = vand.u32 %v1406, 3
        %vm1408 = vcmp.lt.s32.totalorder %v1407, 2
        %vm1409 = vcmp.eq.s32.totalorder %v1407, 0
        %v1410 = vxor.u32 %v1404, 2147483648
        %v1411 = vsel %vm1409, %v1396, %v1410
        %vm1412 = vcmp.eq.s32.totalorder %v1407, 2
        %v1413 = vxor.u32 %v1396, 2147483648
        %v1414 = vsel %vm1412, %v1413, %v1404
        %v1415 = vsel %vm1408, %v1411, %v1414
        %v1416 = vsel %vm1405, nan, %v1415
        %v1417 = vand.u32 2147483647, %v461
        %vm1418 = vcmp.le.f32.partialorder %v1417, 0.7853982
        %vm1419 = vcmp.lt.s32.totalorder %v461, 0
        %v1420 = vand.u32 %v461, 2139095040
        %v1421 = vshrl.u32 %v1420, 23
        %v1422 = vsub.s32 %v1421, 127
        %v1423 = vand.u32 2147483647, %v461
        %v1424 = vand.u32 %v1423, 8388607
        %v1425 = vor.u32 %v1424, 8388608
        %v1426 = vsub.s32 0, %v1425
        %v1427 = vadd.s32 %v1422, 1
        %vm1428 = vcmp.gt.s32.totalorder %v1427, 0
        %v1429 = vsel %vm1428, %v1427, 0
        %v1430 = vshrl.u32 %v1429, 5
        %v1431 = vand.u32 %v1429, 31
        %v1432 = vsub.s32 32, %v1431
        %v1433 = vshrl.u32 683565275, %v1432
        %v1434 = vshll.u32 683565275, %v1431
        %v1435 = vshrl.u32 2475754826, %v1432
        %v1436 = vor.u32 %v1434, %v1435
        %v1437 = vshll.u32 2475754826, %v1431
        %v1438 = vshrl.u32 2131351028, %v1432
        %v1439 = vor.u32 %v1437, %v1438
        %v1440 = vshll.u32 2131351028, %v1431
        %v1441 = vshrl.u32 2102212464, %v1432
        %v1442 = vor.u32 %v1440, %v1441
        %v1443 = vshll.u32 2102212464, %v1431
        %v1444 = vshrl.u32 920167782, %v1432
        %v1445 = vor.u32 %v1443, %v1444
        %v1446 = vshll.u32 920167782, %v1431
        %v1447 = vshrl.u32 1326507024, %v1432
        %v1448 = vor.u32 %v1446, %v1447
        %vm1449 = vcmp.lt.s32.totalorder %v1430, 1
        %vm1450 = vcmp.lt.s32.totalorder %v1430, 2
        %vm1451 = vcmp.lt.s32.totalorder %v1430, 3
        %vm1452 = vcmp.lt.s32.totalorder %v1430, 4
        %v1453 = vsel %vm1449, %v1433, %v1436
        %v1454 = vsel %vm1452, %v1442, 2102212464
        %v1455 = vsel %vm1451, %v1439, %v1454
        %v1456 = vsel %vm1450, %v1453, %v1455
        %v1457 = vsel %vm1449, %v1436, %v1439
        %v1458 = vsel %vm1452, %v1445, 920167782
        %v1459 = vsel %vm1451, %v1442, %v1458
        %v1460 = vsel %vm1450, %v1457, %v1459
        %v1461 = vsel %vm1449, %v1439, %v1442
        %v1462 = vsel %vm1452, %v1448, 1326507024
        %v1463 = vsel %vm1451, %v1445, %v1462
        %v1464 = vsel %vm1450, %v1461, %v1463
        %v1465 = vshll.u32 %v1425, 8
        %v1466 = vand.u32 %v1465, 65535
        %v1467 = vshrl.u32 %v1465, 16
        %v1468 = vand.u32 %v1464, 65535
        %v1469 = vshrl.u32 %v1464, 16
        %v1470 = vmul.u32 %v1466, %v1468
        %v1471 = vmul.u32 %v1466, %v1469
        %v1472 = vmul.u32 %v1467, %v1468
        %v1473 = vmul.u32 %v1467, %v1469
        %v1474 = vshll.u32 %v1471, 16
        %v1475 = vshrl.u32 %v1471, 16
        %v1476 = vshll.u32 %v1472, 16
        %v1477 = vshrl.u32 %v1472, 16
        %vm1478 = vc.u32 %v1470, %v1474
        %v1479 = vsel %vm1478, 1, 0
        %v1480 = vadd.s32 %v1470, %v1474
        %v1481 = vadd.s32 %v1473, %v1479
        %vm1482 = vc.u32 %v1480, %v1476
        %v1483 = vsel %vm1482, 1, 0
        %v1484 = vadd.s32 %v1480, %v1476
        %v1485 = vadd.s32 %v1481, %v1483
        %v1486 = vadd.s32 %v1485, %v1475
        %v1487 = vadd.s32 %v1486, %v1477
        %v1488 = vand.u32 %v1465, 65535
        %v1489 = vshrl.u32 %v1465, 16
        %v1490 = vand.u32 %v1460, 65535
        %v1491 = vshrl.u32 %v1460, 16
        %v1492 = vmul.u32 %v1488, %v1490
        %v1493 = vmul.u32 %v1488, %v1491
        %v1494 = vmul.u32 %v1489, %v1490
        %v1495 = vmul.u32 %v1489, %v1491
        %v1496 = vshll.u32 %v1493, 16
        %v1497 = vshrl.u32 %v1493, 16
        %v1498 = vshll.u32 %v1494, 16
        %v1499 = vshrl.u32 %v1494, 16
        %vm1500 = vc.u32 %v1492, %v1496
        %v1501 = vsel %vm1500, 1, 0
        %v1502 = vadd.s32 %v1492, %v1496
        %v1503 = vadd.s32 %v1495, %v1501
        %vm1504 = vc.u32 %v1502, %v1498
        %v1505 = vsel %vm1504, 1, 0
        %v1506 = vadd.s32 %v1502, %v1498
        %v1507 = vadd.s32 %v1503, %v1505
        %v1508 = vadd.s32 %v1507, %v1497
        %v1509 = vadd.s32 %v1508, %v1499
        %v1510 = vmul.u32 %v1465, %v1456
        %v1511 = vadd.s32 %v1487, %v1506
        %vm1512 = vc.u32 %v1487, %v1506
        %v1513 = vadd.s32 %v1509, 1
        %v1514 = vsel %vm1512, %v1513, %v1509
        %v1515 = vadd.s32 %v1510, %v1514
        %v1516 = vadd.s32 %v1515, 536870912
        %v1517 = vshrl.u32 %v1516, 30
        %v1518 = vshll.u32 %v1517, 30
        %v1519 = vsub.s32 %v1515, %v1518
        %vm1520 = vcmp.lt.s32.totalorder %v1519, 0
        %v1521 = vsub.s32 0, %v1519
        %v1522 = vsel %vm1520, %v1521, %v1519
        %v1523 = vclz %v1522
        %v1524 = vsub.s32 %v1523, 2
        %vm1525 = vcmp.gt.s32.totalorder 0, %v1524
        %v1526 = vsel %vm1525, 0, %v1524
        %v1527 = vsub.s32 32, %v1526
        %v1528 = vshll.u32 %v1519, %v1526
        %v1529 = vshrl.u32 %v1511, %v1527
        %v1530 = vor.u32 %v1528, %v1529
        %v1531 = vsub.s32 4294967266, %v1526
        %v1532 = vadd.s32 %v1531, 127
        %v1533 = vshll.u32 %v1532, 23
        %v1534 = vor.u32 4788187, %v1533
        %v1535 = vand.u32 2147483647, %v1534
        %v1537 = vcvt.s32.f32 %v1530
        %v1538 = vmul.f32 %v1537, %v1535
        %v1539 = vxor.u32 %v1538, 2147483648
        %v1540 = vsel %vm1419, %v1539, %v1538
        %v1541 = vsub.s32 4, %v1517
        %v1542 = vsel %vm1419, %v1541, %v1517
        %v1543 = vsel %vm1418, %v461, %v1540
        %v1544 = vsel %vm1418, 0, %v1542
        %v1545 = vmul.f32 %v1543, %v1543
        %v1546 = vmul.f32 %v1545, -0.001358992
        %v1547 = vadd.f32 %v1546, 0.041655596
        %v1548 = vmul.f32 %v1545, %v1547
        %v1549 = vadd.f32 %v1548, -0.4999988
        %v1550 = vmul.f32 %v1545, %v1549
        %v1551 = vadd.f32 1.0, %v1550
        %v1552 = vmul.f32 %v1543, %v1543
        %v1553 = vmul.f32 %v1552, -0.00019511016
        %v1554 = vadd.f32 %v1553, 0.008332121
        %v1555 = vmul.f32 %v1552, %v1554
        %v1556 = vadd.f32 %v1555, -0.16666654
        %v1557 = vmul.f32 %v1552, %v1556
        %v1558 = vadd.f32 %v1557, 1.0
        %v1559 = vmul.f32 %v1558, %v1543
        %vm1560 = vweird.f32 %v461
        %v1561 = vadd.s32 %v1544, 3
        %v1562 = vand.u32 %v1561, 3
        %vm1563 = vcmp.lt.s32.totalorder %v1562, 2
        %vm1564 = vcmp.eq.s32.totalorder %v1562, 0
        %v1565 = vxor.u32 %v1559, 2147483648
        %v1566 = vsel %vm1564, %v1551, %v1565
        %vm1567 = vcmp.eq.s32.totalorder %v1562, 2
        %v1568 = vxor.u32 %v1551, 2147483648
        %v1569 = vsel %vm1567, %v1568, %v1559
        %v1570 = vsel %vm1563, %v1566, %v1569
        %v1571 = vsel %vm1560, nan, %v1570
        %v1572 = vand.u32 2147483647, %v462
        %vm1573 = vcmp.le.f32.partialorder %v1572, 0.7853982
        %vm1574 = vcmp.lt.s32.totalorder %v462, 0
        %v1575 = vand.u32 %v462, 2139095040
        %v1576 = vshrl.u32 %v1575, 23
        %v1577 = vsub.s32 %v1576, 127
        %v1578 = vand.u32 2147483647, %v462
        %v1579 = vand.u32 %v1578, 8388607
        %v1580 = vor.u32 %v1579, 8388608
        %v1581 = vsub.s32 0, %v1580
        %v1582 = vadd.s32 %v1577, 1
        %vm1583 = vcmp.gt.s32.totalorder %v1582, 0
        %v1584 = vsel %vm1583, %v1582, 0
        %v1585 = vshrl.u32 %v1584, 5
        %v1586 = vand.u32 %v1584, 31
        %v1587 = vsub.s32 32, %v1586
        %v1588 = vshrl.u32 683565275, %v1587
        %v1589 = vshll.u32 683565275, %v1586
        %v1590 = vshrl.u32 2475754826, %v1587
        %v1591 = vor.u32 %v1589, %v1590
        %v1592 = vshll.u32 2475754826, %v1586
        %v1593 = vshrl.u32 2131351028, %v1587
        %v1594 = vor.u32 %v1592, %v1593
        %v1595 = vshll.u32 2131351028, %v1586
        %v1596 = vshrl.u32 2102212464, %v1587
        %v1597 = vor.u32 %v1595, %v1596
        %v1598 = vshll.u32 2102212464, %v1586
        %v1599 = vshrl.u32 920167782, %v1587
        %v1600 = vor.u32 %v1598, %v1599
        %v1601 = vshll.u32 920167782, %v1586
        %v1602 = vshrl.u32 1326507024, %v1587
        %v1603 = vor.u32 %v1601, %v1602
        %vm1604 = vcmp.lt.s32.totalorder %v1585, 1
        %vm1605 = vcmp.lt.s32.totalorder %v1585, 2
        %vm1606 = vcmp.lt.s32.totalorder %v1585, 3
        %vm1607 = vcmp.lt.s32.totalorder %v1585, 4
        %v1608 = vsel %vm1604, %v1588, %v1591
        %v1609 = vsel %vm1607, %v1597, 2102212464
        %v1610 = vsel %vm1606, %v1594, %v1609
        %v1611 = vsel %vm1605, %v1608, %v1610
        %v1612 = vsel %vm1604, %v1591, %v1594
        %v1613 = vsel %vm1607, %v1600, 920167782
        %v1614 = vsel %vm1606, %v1597, %v1613
        %v1615 = vsel %vm1605, %v1612, %v1614
        %v1616 = vsel %vm1604, %v1594, %v1597
        %v1617 = vsel %vm1607, %v1603, 1326507024
        %v1618 = vsel %vm1606, %v1600, %v1617
        %v1619 = vsel %vm1605, %v1616, %v1618
        %v1620 = vshll.u32 %v1580, 8
        %v1621 = vand.u32 %v1620, 65535
        %v1622 = vshrl.u32 %v1620, 16
        %v1623 = vand.u32 %v1619, 65535
        %v1624 = vshrl.u32 %v1619, 16
        %v1625 = vmul.u32 %v1621, %v1623
        %v1626 = vmul.u32 %v1621, %v1624
        %v1627 = vmul.u32 %v1622, %v1623
        %v1628 = vmul.u32 %v1622, %v1624
        %v1629 = vshll.u32 %v1626, 16
        %v1630 = vshrl.u32 %v1626, 16
        %v1631 = vshll.u32 %v1627, 16
        %v1632 = vshrl.u32 %v1627, 16
        %vm1633 = vc.u32 %v1625, %v1629
        %v1634 = vsel %vm1633, 1, 0
        %v1635 = vadd.s32 %v1625, %v1629
        %v1636 = vadd.s32 %v1628, %v1634
        %vm1637 = vc.u32 %v1635, %v1631
        %v1638 = vsel %vm1637, 1, 0
        %v1639 = vadd.s32 %v1635, %v1631
        %v1640 = vadd.s32 %v1636, %v1638
        %v1641 = vadd.s32 %v1640, %v1630
        %v1642 = vadd.s32 %v1641, %v1632
        %v1643 = vand.u32 %v1620, 65535
        %v1644 = vshrl.u32 %v1620, 16
        %v1645 = vand.u32 %v1615, 65535
        %v1646 = vshrl.u32 %v1615, 16
        %v1647 = vmul.u32 %v1643, %v1645
        %v1648 = vmul.u32 %v1643, %v1646
        %v1649 = vmul.u32 %v1644, %v1645
        %v1650 = vmul.u32 %v1644, %v1646
        %v1651 = vshll.u32 %v1648, 16
        %v1652 = vshrl.u32 %v1648, 16
        %v1653 = vshll.u32 %v1649, 16
        %v1654 = vshrl.u32 %v1649, 16
        %vm1655 = vc.u32 %v1647, %v1651
        %v1656 = vsel %vm1655, 1, 0
        %v1657 = vadd.s32 %v1647, %v1651
        %v1658 = vadd.s32 %v1650, %v1656
        %vm1659 = vc.u32 %v1657, %v1653
        %v1660 = vsel %vm1659, 1, 0
        %v1661 = vadd.s32 %v1657, %v1653
        %v1662 = vadd.s32 %v1658, %v1660
        %v1663 = vadd.s32 %v1662, %v1652
        %v1664 = vadd.s32 %v1663, %v1654
        %v1665 = vmul.u32 %v1620, %v1611
        %v1666 = vadd.s32 %v1642, %v1661
        %vm1667 = vc.u32 %v1642, %v1661
        %v1668 = vadd.s32 %v1664, 1
        %v1669 = vsel %vm1667, %v1668, %v1664
        %v1670 = vadd.s32 %v1665, %v1669
        %v1671 = vadd.s32 %v1670, 536870912
        %v1672 = vshrl.u32 %v1671, 30
        %v1673 = vshll.u32 %v1672, 30
        %v1674 = vsub.s32 %v1670, %v1673
        %vm1675 = vcmp.lt.s32.totalorder %v1674, 0
        %v1676 = vsub.s32 0, %v1674
        %v1677 = vsel %vm1675, %v1676, %v1674
        %v1678 = vclz %v1677
        %v1679 = vsub.s32 %v1678, 2
        %vm1680 = vcmp.gt.s32.totalorder 0, %v1679
        %v1681 = vsel %vm1680, 0, %v1679
        %v1682 = vsub.s32 32, %v1681
        %v1683 = vshll.u32 %v1674, %v1681
        %v1684 = vshrl.u32 %v1666, %v1682
        %v1685 = vor.u32 %v1683, %v1684
        %v1686 = vsub.s32 4294967266, %v1681
        %v1687 = vadd.s32 %v1686, 127
        %v1688 = vshll.u32 %v1687, 23
        %v1689 = vor.u32 4788187, %v1688
        %v1690 = vand.u32 2147483647, %v1689
        %v1692 = vcvt.s32.f32 %v1685
        %v1693 = vmul.f32 %v1692, %v1690
        %v1694 = vxor.u32 %v1693, 2147483648
        %v1695 = vsel %vm1574, %v1694, %v1693
        %v1696 = vsub.s32 4, %v1672
        %v1697 = vsel %vm1574, %v1696, %v1672
        %v1698 = vsel %vm1573, %v462, %v1695
        %v1699 = vsel %vm1573, 0, %v1697
        %v1700 = vmul.f32 %v1698, %v1698
        %v1701 = vmul.f32 %v1700, -0.001358992
        %v1702 = vadd.f32 %v1701, 0.041655596
        %v1703 = vmul.f32 %v1700, %v1702
        %v1704 = vadd.f32 %v1703, -0.4999988
        %v1705 = vmul.f32 %v1700, %v1704
        %v1706 = vadd.f32 1.0, %v1705
        %v1707 = vmul.f32 %v1698, %v1698
        %v1708 = vmul.f32 %v1707, -0.00019511016
        %v1709 = vadd.f32 %v1708, 0.008332121
        %v1710 = vmul.f32 %v1707, %v1709
        %v1711 = vadd.f32 %v1710, -0.16666654
        %v1712 = vmul.f32 %v1707, %v1711
        %v1713 = vadd.f32 %v1712, 1.0
        %v1714 = vmul.f32 %v1713, %v1698
        %vm1715 = vweird.f32 %v462
        %v1716 = vadd.s32 %v1699, 3
        %v1717 = vand.u32 %v1716, 3
        %vm1718 = vcmp.lt.s32.totalorder %v1717, 2
        %vm1719 = vcmp.eq.s32.totalorder %v1717, 0
        %v1720 = vxor.u32 %v1714, 2147483648
        %v1721 = vsel %vm1719, %v1706, %v1720
        %vm1722 = vcmp.eq.s32.totalorder %v1717, 2
        %v1723 = vxor.u32 %v1706, 2147483648
        %v1724 = vsel %vm1722, %v1723, %v1714
        %v1725 = vsel %vm1718, %v1721, %v1724
        %v1726 = vsel %vm1715, nan, %v1725
        %v1727 = vand.u32 2147483647, %v463
        %vm1728 = vcmp.le.f32.partialorder %v1727, 0.7853982
        %vm1729 = vcmp.lt.s32.totalorder %v463, 0
        %v1730 = vand.u32 %v463, 2139095040
        %v1731 = vshrl.u32 %v1730, 23
        %v1732 = vsub.s32 %v1731, 127
        %v1733 = vand.u32 2147483647, %v463
        %v1734 = vand.u32 %v1733, 8388607
        %v1735 = vor.u32 %v1734, 8388608
        %v1736 = vsub.s32 0, %v1735
        %v1737 = vadd.s32 %v1732, 1
        %vm1738 = vcmp.gt.s32.totalorder %v1737, 0
        %v1739 = vsel %vm1738, %v1737, 0
        %v1740 = vshrl.u32 %v1739, 5
        %v1741 = vand.u32 %v1739, 31
        %v1742 = vsub.s32 32, %v1741
        %v1743 = vshrl.u32 683565275, %v1742
        %v1744 = vshll.u32 683565275, %v1741
        %v1745 = vshrl.u32 2475754826, %v1742
        %v1746 = vor.u32 %v1744, %v1745
        %v1747 = vshll.u32 2475754826, %v1741
        %v1748 = vshrl.u32 2131351028, %v1742
        %v1749 = vor.u32 %v1747, %v1748
        %v1750 = vshll.u32 2131351028, %v1741
        %v1751 = vshrl.u32 2102212464, %v1742
        %v1752 = vor.u32 %v1750, %v1751
        %v1753 = vshll.u32 2102212464, %v1741
        %v1754 = vshrl.u32 920167782, %v1742
        %v1755 = vor.u32 %v1753, %v1754
        %v1756 = vshll.u32 920167782, %v1741
        %v1757 = vshrl.u32 1326507024, %v1742
        %v1758 = vor.u32 %v1756, %v1757
        %vm1759 = vcmp.lt.s32.totalorder %v1740, 1
        %vm1760 = vcmp.lt.s32.totalorder %v1740, 2
        %vm1761 = vcmp.lt.s32.totalorder %v1740, 3
        %vm1762 = vcmp.lt.s32.totalorder %v1740, 4
        %v1763 = vsel %vm1759, %v1743, %v1746
        %v1764 = vsel %vm1762, %v1752, 2102212464
        %v1765 = vsel %vm1761, %v1749, %v1764
        %v1766 = vsel %vm1760, %v1763, %v1765
        %v1767 = vsel %vm1759, %v1746, %v1749
        %v1768 = vsel %vm1762, %v1755, 920167782
        %v1769 = vsel %vm1761, %v1752, %v1768
        %v1770 = vsel %vm1760, %v1767, %v1769
        %v1771 = vsel %vm1759, %v1749, %v1752
        %v1772 = vsel %vm1762, %v1758, 1326507024
        %v1773 = vsel %vm1761, %v1755, %v1772
        %v1774 = vsel %vm1760, %v1771, %v1773
        %v1775 = vshll.u32 %v1735, 8
        %v1776 = vand.u32 %v1775, 65535
        %v1777 = vshrl.u32 %v1775, 16
        %v1778 = vand.u32 %v1774, 65535
        %v1779 = vshrl.u32 %v1774, 16
        %v1780 = vmul.u32 %v1776, %v1778
        %v1781 = vmul.u32 %v1776, %v1779
        %v1782 = vmul.u32 %v1777, %v1778
        %v1783 = vmul.u32 %v1777, %v1779
        %v1784 = vshll.u32 %v1781, 16
        %v1785 = vshrl.u32 %v1781, 16
        %v1786 = vshll.u32 %v1782, 16
        %v1787 = vshrl.u32 %v1782, 16
        %vm1788 = vc.u32 %v1780, %v1784
        %v1789 = vsel %vm1788, 1, 0
        %v1790 = vadd.s32 %v1780, %v1784
        %v1791 = vadd.s32 %v1783, %v1789
        %vm1792 = vc.u32 %v1790, %v1786
        %v1793 = vsel %vm1792, 1, 0
        %v1794 = vadd.s32 %v1790, %v1786
        %v1795 = vadd.s32 %v1791, %v1793
        %v1796 = vadd.s32 %v1795, %v1785
        %v1797 = vadd.s32 %v1796, %v1787
        %v1798 = vand.u32 %v1775, 65535
        %v1799 = vshrl.u32 %v1775, 16
        %v1800 = vand.u32 %v1770, 65535
        %v1801 = vshrl.u32 %v1770, 16
        %v1802 = vmul.u32 %v1798, %v1800
        %v1803 = vmul.u32 %v1798, %v1801
        %v1804 = vmul.u32 %v1799, %v1800
        %v1805 = vmul.u32 %v1799, %v1801
        %v1806 = vshll.u32 %v1803, 16
        %v1807 = vshrl.u32 %v1803, 16
        %v1808 = vshll.u32 %v1804, 16
        %v1809 = vshrl.u32 %v1804, 16
        %vm1810 = vc.u32 %v1802, %v1806
        %v1811 = vsel %vm1810, 1, 0
        %v1812 = vadd.s32 %v1802, %v1806
        %v1813 = vadd.s32 %v1805, %v1811
        %vm1814 = vc.u32 %v1812, %v1808
        %v1815 = vsel %vm1814, 1, 0
        %v1816 = vadd.s32 %v1812, %v1808
        %v1817 = vadd.s32 %v1813, %v1815
        %v1818 = vadd.s32 %v1817, %v1807
        %v1819 = vadd.s32 %v1818, %v1809
        %v1820 = vmul.u32 %v1775, %v1766
        %v1821 = vadd.s32 %v1797, %v1816
        %vm1822 = vc.u32 %v1797, %v1816
        %v1823 = vadd.s32 %v1819, 1
        %v1824 = vsel %vm1822, %v1823, %v1819
        %v1825 = vadd.s32 %v1820, %v1824
        %v1826 = vadd.s32 %v1825, 536870912
        %v1827 = vshrl.u32 %v1826, 30
        %v1828 = vshll.u32 %v1827, 30
        %v1829 = vsub.s32 %v1825, %v1828
        %vm1830 = vcmp.lt.s32.totalorder %v1829, 0
        %v1831 = vsub.s32 0, %v1829
        %v1832 = vsel %vm1830, %v1831, %v1829
        %v1833 = vclz %v1832
        %v1834 = vsub.s32 %v1833, 2
        %vm1835 = vcmp.gt.s32.totalorder 0, %v1834
        %v1836 = vsel %vm1835, 0, %v1834
        %v1837 = vsub.s32 32, %v1836
        %v1838 = vshll.u32 %v1829, %v1836
        %v1839 = vshrl.u32 %v1821, %v1837
        %v1840 = vor.u32 %v1838, %v1839
        %v1841 = vsub.s32 4294967266, %v1836
        %v1842 = vadd.s32 %v1841, 127
        %v1843 = vshll.u32 %v1842, 23
        %v1844 = vor.u32 4788187, %v1843
        %v1845 = vand.u32 2147483647, %v1844
        %v1847 = vcvt.s32.f32 %v1840
        %v1848 = vmul.f32 %v1847, %v1845
        %v1849 = vxor.u32 %v1848, 2147483648
        %v1850 = vsel %vm1729, %v1849, %v1848
        %v1851 = vsub.s32 4, %v1827
        %v1852 = vsel %vm1729, %v1851, %v1827
        %v1853 = vsel %vm1728, %v463, %v1850
        %v1854 = vsel %vm1728, 0, %v1852
        %v1855 = vmul.f32 %v1853, %v1853
        %v1856 = vmul.f32 %v1855, -0.001358992
        %v1857 = vadd.f32 %v1856, 0.041655596
        %v1858 = vmul.f32 %v1855, %v1857
        %v1859 = vadd.f32 %v1858, -0.4999988
        %v1860 = vmul.f32 %v1855, %v1859
        %v1861 = vadd.f32 1.0, %v1860
        %v1862 = vmul.f32 %v1853, %v1853
        %v1863 = vmul.f32 %v1862, -0.00019511016
        %v1864 = vadd.f32 %v1863, 0.008332121
        %v1865 = vmul.f32 %v1862, %v1864
        %v1866 = vadd.f32 %v1865, -0.16666654
        %v1867 = vmul.f32 %v1862, %v1866
        %v1868 = vadd.f32 %v1867, 1.0
        %v1869 = vmul.f32 %v1868, %v1853
        %vm1870 = vweird.f32 %v463
        %v1871 = vadd.s32 %v1854, 3
        %v1872 = vand.u32 %v1871, 3
        %vm1873 = vcmp.lt.s32.totalorder %v1872, 2
        %vm1874 = vcmp.eq.s32.totalorder %v1872, 0
        %v1875 = vxor.u32 %v1869, 2147483648
        %v1876 = vsel %vm1874, %v1861, %v1875
        %vm1877 = vcmp.eq.s32.totalorder %v1872, 2
        %v1878 = vxor.u32 %v1861, 2147483648
        %v1879 = vsel %vm1877, %v1878, %v1869
        %v1880 = vsel %vm1873, %v1876, %v1879
        %v1881 = vsel %vm1870, nan, %v1880
        %v1882 = vand.u32 2147483647, %v464
        %vm1883 = vcmp.le.f32.partialorder %v1882, 0.7853982
        %vm1884 = vcmp.lt.s32.totalorder %v464, 0
        %v1885 = vand.u32 %v464, 2139095040
        %v1886 = vshrl.u32 %v1885, 23
        %v1887 = vsub.s32 %v1886, 127
        %v1888 = vand.u32 2147483647, %v464
        %v1889 = vand.u32 %v1888, 8388607
        %v1890 = vor.u32 %v1889, 8388608
        %v1891 = vsub.s32 0, %v1890
        %v1892 = vadd.s32 %v1887, 1
        %vm1893 = vcmp.gt.s32.totalorder %v1892, 0
        %v1894 = vsel %vm1893, %v1892, 0
        %v1895 = vshrl.u32 %v1894, 5
        %v1896 = vand.u32 %v1894, 31
        %v1897 = vsub.s32 32, %v1896
        %v1898 = vshrl.u32 683565275, %v1897
        %v1899 = vshll.u32 683565275, %v1896
        %v1900 = vshrl.u32 2475754826, %v1897
        %v1901 = vor.u32 %v1899, %v1900
        %v1902 = vshll.u32 2475754826, %v1896
        %v1903 = vshrl.u32 2131351028, %v1897
        %v1904 = vor.u32 %v1902, %v1903
        %v1905 = vshll.u32 2131351028, %v1896
        %v1906 = vshrl.u32 2102212464, %v1897
        %v1907 = vor.u32 %v1905, %v1906
        %v1908 = vshll.u32 2102212464, %v1896
        %v1909 = vshrl.u32 920167782, %v1897
        %v1910 = vor.u32 %v1908, %v1909
        %v1911 = vshll.u32 920167782, %v1896
        %v1912 = vshrl.u32 1326507024, %v1897
        %v1913 = vor.u32 %v1911, %v1912
        %vm1914 = vcmp.lt.s32.totalorder %v1895, 1
        %vm1915 = vcmp.lt.s32.totalorder %v1895, 2
        %vm1916 = vcmp.lt.s32.totalorder %v1895, 3
        %vm1917 = vcmp.lt.s32.totalorder %v1895, 4
        %v1918 = vsel %vm1914, %v1898, %v1901
        %v1919 = vsel %vm1917, %v1907, 2102212464
        %v1920 = vsel %vm1916, %v1904, %v1919
        %v1921 = vsel %vm1915, %v1918, %v1920
        %v1922 = vsel %vm1914, %v1901, %v1904
        %v1923 = vsel %vm1917, %v1910, 920167782
        %v1924 = vsel %vm1916, %v1907, %v1923
        %v1925 = vsel %vm1915, %v1922, %v1924
        %v1926 = vsel %vm1914, %v1904, %v1907
        %v1927 = vsel %vm1917, %v1913, 1326507024
        %v1928 = vsel %vm1916, %v1910, %v1927
        %v1929 = vsel %vm1915, %v1926, %v1928
        %v1930 = vshll.u32 %v1890, 8
        %v1931 = vand.u32 %v1930, 65535
        %v1932 = vshrl.u32 %v1930, 16
        %v1933 = vand.u32 %v1929, 65535
        %v1934 = vshrl.u32 %v1929, 16
        %v1935 = vmul.u32 %v1931, %v1933
        %v1936 = vmul.u32 %v1931, %v1934
        %v1937 = vmul.u32 %v1932, %v1933
        %v1938 = vmul.u32 %v1932, %v1934
        %v1939 = vshll.u32 %v1936, 16
        %v1940 = vshrl.u32 %v1936, 16
        %v1941 = vshll.u32 %v1937, 16
        %v1942 = vshrl.u32 %v1937, 16
        %vm1943 = vc.u32 %v1935, %v1939
        %v1944 = vsel %vm1943, 1, 0
        %v1945 = vadd.s32 %v1935, %v1939
        %v1946 = vadd.s32 %v1938, %v1944
        %vm1947 = vc.u32 %v1945, %v1941
        %v1948 = vsel %vm1947, 1, 0
        %v1949 = vadd.s32 %v1945, %v1941
        %v1950 = vadd.s32 %v1946, %v1948
        %v1951 = vadd.s32 %v1950, %v1940
        %v1952 = vadd.s32 %v1951, %v1942
        %v1953 = vand.u32 %v1930, 65535
        %v1954 = vshrl.u32 %v1930, 16
        %v1955 = vand.u32 %v1925, 65535
        %v1956 = vshrl.u32 %v1925, 16
        %v1957 = vmul.u32 %v1953, %v1955
        %v1958 = vmul.u32 %v1953, %v1956
        %v1959 = vmul.u32 %v1954, %v1955
        %v1960 = vmul.u32 %v1954, %v1956
        %v1961 = vshll.u32 %v1958, 16
        %v1962 = vshrl.u32 %v1958, 16
        %v1963 = vshll.u32 %v1959, 16
        %v1964 = vshrl.u32 %v1959, 16
        %vm1965 = vc.u32 %v1957, %v1961
        %v1966 = vsel %vm1965, 1, 0
        %v1967 = vadd.s32 %v1957, %v1961
        %v1968 = vadd.s32 %v1960, %v1966
        %vm1969 = vc.u32 %v1967, %v1963
        %v1970 = vsel %vm1969, 1, 0
        %v1971 = vadd.s32 %v1967, %v1963
        %v1972 = vadd.s32 %v1968, %v1970
        %v1973 = vadd.s32 %v1972, %v1962
        %v1974 = vadd.s32 %v1973, %v1964
        %v1975 = vmul.u32 %v1930, %v1921
        %v1976 = vadd.s32 %v1952, %v1971
        %vm1977 = vc.u32 %v1952, %v1971
        %v1978 = vadd.s32 %v1974, 1
        %v1979 = vsel %vm1977, %v1978, %v1974
        %v1980 = vadd.s32 %v1975, %v1979
        %v1981 = vadd.s32 %v1980, 536870912
        %v1982 = vshrl.u32 %v1981, 30
        %v1983 = vshll.u32 %v1982, 30
        %v1984 = vsub.s32 %v1980, %v1983
        %vm1985 = vcmp.lt.s32.totalorder %v1984, 0
        %v1986 = vsub.s32 0, %v1984
        %v1987 = vsel %vm1985, %v1986, %v1984
        %v1988 = vclz %v1987
        %v1989 = vsub.s32 %v1988, 2
        %vm1990 = vcmp.gt.s32.totalorder 0, %v1989
        %v1991 = vsel %vm1990, 0, %v1989
        %v1992 = vsub.s32 32, %v1991
        %v1993 = vshll.u32 %v1984, %v1991
        %v1994 = vshrl.u32 %v1976, %v1992
        %v1995 = vor.u32 %v1993, %v1994
        %v1996 = vsub.s32 4294967266, %v1991
        %v1997 = vadd.s32 %v1996, 127
        %v1998 = vshll.u32 %v1997, 23
        %v1999 = vor.u32 4788187, %v1998
        %v2000 = vand.u32 2147483647, %v1999
        %v2002 = vcvt.s32.f32 %v1995
        %v2003 = vmul.f32 %v2002, %v2000
        %v2004 = vxor.u32 %v2003, 2147483648
        %v2005 = vsel %vm1884, %v2004, %v2003
        %v2006 = vsub.s32 4, %v1982
        %v2007 = vsel %vm1884, %v2006, %v1982
        %v2008 = vsel %vm1883, %v464, %v2005
        %v2009 = vsel %vm1883, 0, %v2007
        %v2010 = vmul.f32 %v2008, %v2008
        %v2011 = vmul.f32 %v2010, -0.001358992
        %v2012 = vadd.f32 %v2011, 0.041655596
        %v2013 = vmul.f32 %v2010, %v2012
        %v2014 = vadd.f32 %v2013, -0.4999988
        %v2015 = vmul.f32 %v2010, %v2014
        %v2016 = vadd.f32 1.0, %v2015
        %v2017 = vmul.f32 %v2008, %v2008
        %v2018 = vmul.f32 %v2017, -0.00019511016
        %v2019 = vadd.f32 %v2018, 0.008332121
        %v2020 = vmul.f32 %v2017, %v2019
        %v2021 = vadd.f32 %v2020, -0.16666654
        %v2022 = vmul.f32 %v2017, %v2021
        %v2023 = vadd.f32 %v2022, 1.0
        %v2024 = vmul.f32 %v2023, %v2008
        %vm2025 = vweird.f32 %v464
        %v2026 = vadd.s32 %v2009, 3
        %v2027 = vand.u32 %v2026, 3
        %vm2028 = vcmp.lt.s32.totalorder %v2027, 2
        %vm2029 = vcmp.eq.s32.totalorder %v2027, 0
        %v2030 = vxor.u32 %v2024, 2147483648
        %v2031 = vsel %vm2029, %v2016, %v2030
        %vm2032 = vcmp.eq.s32.totalorder %v2027, 2
        %v2033 = vxor.u32 %v2016, 2147483648
        %v2034 = vsel %vm2032, %v2033, %v2024
        %v2035 = vsel %vm2028, %v2031, %v2034
        %v2036 = vsel %vm2025, nan, %v2035
        %v2037 = vand.u32 2147483647, %v465
        %vm2038 = vcmp.le.f32.partialorder %v2037, 0.7853982
        %vm2039 = vcmp.lt.s32.totalorder %v465, 0
        %v2040 = vand.u32 %v465, 2139095040
        %v2041 = vshrl.u32 %v2040, 23
        %v2042 = vsub.s32 %v2041, 127
        %v2043 = vand.u32 2147483647, %v465
        %v2044 = vand.u32 %v2043, 8388607
        %v2045 = vor.u32 %v2044, 8388608
        %v2046 = vsub.s32 0, %v2045
        %v2047 = vadd.s32 %v2042, 1
        %vm2048 = vcmp.gt.s32.totalorder %v2047, 0
        %v2049 = vsel %vm2048, %v2047, 0
        %v2050 = vshrl.u32 %v2049, 5
        %v2051 = vand.u32 %v2049, 31
        %v2052 = vsub.s32 32, %v2051
        %v2053 = vshrl.u32 683565275, %v2052
        %v2054 = vshll.u32 683565275, %v2051
        %v2055 = vshrl.u32 2475754826, %v2052
        %v2056 = vor.u32 %v2054, %v2055
        %v2057 = vshll.u32 2475754826, %v2051
        %v2058 = vshrl.u32 2131351028, %v2052
        %v2059 = vor.u32 %v2057, %v2058
        %v2060 = vshll.u32 2131351028, %v2051
        %v2061 = vshrl.u32 2102212464, %v2052
        %v2062 = vor.u32 %v2060, %v2061
        %v2063 = vshll.u32 2102212464, %v2051
        %v2064 = vshrl.u32 920167782, %v2052
        %v2065 = vor.u32 %v2063, %v2064
        %v2066 = vshll.u32 920167782, %v2051
        %v2067 = vshrl.u32 1326507024, %v2052
        %v2068 = vor.u32 %v2066, %v2067
        %vm2069 = vcmp.lt.s32.totalorder %v2050, 1
        %vm2070 = vcmp.lt.s32.totalorder %v2050, 2
        %vm2071 = vcmp.lt.s32.totalorder %v2050, 3
        %vm2072 = vcmp.lt.s32.totalorder %v2050, 4
        %v2073 = vsel %vm2069, %v2053, %v2056
        %v2074 = vsel %vm2072, %v2062, 2102212464
        %v2075 = vsel %vm2071, %v2059, %v2074
        %v2076 = vsel %vm2070, %v2073, %v2075
        %v2077 = vsel %vm2069, %v2056, %v2059
        %v2078 = vsel %vm2072, %v2065, 920167782
        %v2079 = vsel %vm2071, %v2062, %v2078
        %v2080 = vsel %vm2070, %v2077, %v2079
        %v2081 = vsel %vm2069, %v2059, %v2062
        %v2082 = vsel %vm2072, %v2068, 1326507024
        %v2083 = vsel %vm2071, %v2065, %v2082
        %v2084 = vsel %vm2070, %v2081, %v2083
        %v2085 = vshll.u32 %v2045, 8
        %v2086 = vand.u32 %v2085, 65535
        %v2087 = vshrl.u32 %v2085, 16
        %v2088 = vand.u32 %v2084, 65535
        %v2089 = vshrl.u32 %v2084, 16
        %v2090 = vmul.u32 %v2086, %v2088
        %v2091 = vmul.u32 %v2086, %v2089
        %v2092 = vmul.u32 %v2087, %v2088
        %v2093 = vmul.u32 %v2087, %v2089
        %v2094 = vshll.u32 %v2091, 16
        %v2095 = vshrl.u32 %v2091, 16
        %v2096 = vshll.u32 %v2092, 16
        %v2097 = vshrl.u32 %v2092, 16
        %vm2098 = vc.u32 %v2090, %v2094
        %v2099 = vsel %vm2098, 1, 0
        %v2100 = vadd.s32 %v2090, %v2094
        %v2101 = vadd.s32 %v2093, %v2099
        %vm2102 = vc.u32 %v2100, %v2096
        %v2103 = vsel %vm2102, 1, 0
        %v2104 = vadd.s32 %v2100, %v2096
        %v2105 = vadd.s32 %v2101, %v2103
        %v2106 = vadd.s32 %v2105, %v2095
        %v2107 = vadd.s32 %v2106, %v2097
        %v2108 = vand.u32 %v2085, 65535
        %v2109 = vshrl.u32 %v2085, 16
        %v2110 = vand.u32 %v2080, 65535
        %v2111 = vshrl.u32 %v2080, 16
        %v2112 = vmul.u32 %v2108, %v2110
        %v2113 = vmul.u32 %v2108, %v2111
        %v2114 = vmul.u32 %v2109, %v2110
        %v2115 = vmul.u32 %v2109, %v2111
        %v2116 = vshll.u32 %v2113, 16
        %v2117 = vshrl.u32 %v2113, 16
        %v2118 = vshll.u32 %v2114, 16
        %v2119 = vshrl.u32 %v2114, 16
        %vm2120 = vc.u32 %v2112, %v2116
        %v2121 = vsel %vm2120, 1, 0
        %v2122 = vadd.s32 %v2112, %v2116
        %v2123 = vadd.s32 %v2115, %v2121
        %vm2124 = vc.u32 %v2122, %v2118
        %v2125 = vsel %vm2124, 1, 0
        %v2126 = vadd.s32 %v2122, %v2118
        %v2127 = vadd.s32 %v2123, %v2125
        %v2128 = vadd.s32 %v2127, %v2117
        %v2129 = vadd.s32 %v2128, %v2119
        %v2130 = vmul.u32 %v2085, %v2076
        %v2131 = vadd.s32 %v2107, %v2126
        %vm2132 = vc.u32 %v2107, %v2126
        %v2133 = vadd.s32 %v2129, 1
        %v2134 = vsel %vm2132, %v2133, %v2129
        %v2135 = vadd.s32 %v2130, %v2134
        %v2136 = vadd.s32 %v2135, 536870912
        %v2137 = vshrl.u32 %v2136, 30
        %v2138 = vshll.u32 %v2137, 30
        %v2139 = vsub.s32 %v2135, %v2138
        %vm2140 = vcmp.lt.s32.totalorder %v2139, 0
        %v2141 = vsub.s32 0, %v2139
        %v2142 = vsel %vm2140, %v2141, %v2139
        %v2143 = vclz %v2142
        %v2144 = vsub.s32 %v2143, 2
        %vm2145 = vcmp.gt.s32.totalorder 0, %v2144
        %v2146 = vsel %vm2145, 0, %v2144
        %v2147 = vsub.s32 32, %v2146
        %v2148 = vshll.u32 %v2139, %v2146
        %v2149 = vshrl.u32 %v2131, %v2147
        %v2150 = vor.u32 %v2148, %v2149
        %v2151 = vsub.s32 4294967266, %v2146
        %v2152 = vadd.s32 %v2151, 127
        %v2153 = vshll.u32 %v2152, 23
        %v2154 = vor.u32 4788187, %v2153
        %v2155 = vand.u32 2147483647, %v2154
        %v2157 = vcvt.s32.f32 %v2150
        %v2158 = vmul.f32 %v2157, %v2155
        %v2159 = vxor.u32 %v2158, 2147483648
        %v2160 = vsel %vm2039, %v2159, %v2158
        %v2161 = vsub.s32 4, %v2137
        %v2162 = vsel %vm2039, %v2161, %v2137
        %v2163 = vsel %vm2038, %v465, %v2160
        %v2164 = vsel %vm2038, 0, %v2162
        %v2165 = vmul.f32 %v2163, %v2163
        %v2166 = vmul.f32 %v2165, -0.001358992
        %v2167 = vadd.f32 %v2166, 0.041655596
        %v2168 = vmul.f32 %v2165, %v2167
        %v2169 = vadd.f32 %v2168, -0.4999988
        %v2170 = vmul.f32 %v2165, %v2169
        %v2171 = vadd.f32 1.0, %v2170
        %v2172 = vmul.f32 %v2163, %v2163
        %v2173 = vmul.f32 %v2172, -0.00019511016
        %v2174 = vadd.f32 %v2173, 0.008332121
        %v2175 = vmul.f32 %v2172, %v2174
        %v2176 = vadd.f32 %v2175, -0.16666654
        %v2177 = vmul.f32 %v2172, %v2176
        %v2178 = vadd.f32 %v2177, 1.0
        %v2179 = vmul.f32 %v2178, %v2163
        %vm2180 = vweird.f32 %v465
        %v2181 = vadd.s32 %v2164, 3
        %v2182 = vand.u32 %v2181, 3
        %vm2183 = vcmp.lt.s32.totalorder %v2182, 2
        %vm2184 = vcmp.eq.s32.totalorder %v2182, 0
        %v2185 = vxor.u32 %v2179, 2147483648
        %v2186 = vsel %vm2184, %v2171, %v2185
        %vm2187 = vcmp.eq.s32.totalorder %v2182, 2
        %v2188 = vxor.u32 %v2171, 2147483648
        %v2189 = vsel %vm2187, %v2188, %v2179
        %v2190 = vsel %vm2183, %v2186, %v2189
        %v2191 = vsel %vm2180, nan, %v2190
        %v2192 = vand.u32 2147483647, %v466
        %vm2193 = vcmp.le.f32.partialorder %v2192, 0.7853982
        %vm2194 = vcmp.lt.s32.totalorder %v466, 0
        %v2195 = vand.u32 %v466, 2139095040
        %v2196 = vshrl.u32 %v2195, 23
        %v2197 = vsub.s32 %v2196, 127
        %v2198 = vand.u32 2147483647, %v466
        %v2199 = vand.u32 %v2198, 8388607
        %v2200 = vor.u32 %v2199, 8388608
        %v2201 = vsub.s32 0, %v2200
        %v2202 = vadd.s32 %v2197, 1
        %vm2203 = vcmp.gt.s32.totalorder %v2202, 0
        %v2204 = vsel %vm2203, %v2202, 0
        %v2205 = vshrl.u32 %v2204, 5
        %v2206 = vand.u32 %v2204, 31
        %v2207 = vsub.s32 32, %v2206
        %v2208 = vshrl.u32 683565275, %v2207
        %v2209 = vshll.u32 683565275, %v2206
        %v2210 = vshrl.u32 2475754826, %v2207
        %v2211 = vor.u32 %v2209, %v2210
        %v2212 = vshll.u32 2475754826, %v2206
        %v2213 = vshrl.u32 2131351028, %v2207
        %v2214 = vor.u32 %v2212, %v2213
        %v2215 = vshll.u32 2131351028, %v2206
        %v2216 = vshrl.u32 2102212464, %v2207
        %v2217 = vor.u32 %v2215, %v2216
        %v2218 = vshll.u32 2102212464, %v2206
        %v2219 = vshrl.u32 920167782, %v2207
        %v2220 = vor.u32 %v2218, %v2219
        %v2221 = vshll.u32 920167782, %v2206
        %v2222 = vshrl.u32 1326507024, %v2207
        %v2223 = vor.u32 %v2221, %v2222
        %vm2224 = vcmp.lt.s32.totalorder %v2205, 1
        %vm2225 = vcmp.lt.s32.totalorder %v2205, 2
        %vm2226 = vcmp.lt.s32.totalorder %v2205, 3
        %vm2227 = vcmp.lt.s32.totalorder %v2205, 4
        %v2228 = vsel %vm2224, %v2208, %v2211
        %v2229 = vsel %vm2227, %v2217, 2102212464
        %v2230 = vsel %vm2226, %v2214, %v2229
        %v2231 = vsel %vm2225, %v2228, %v2230
        %v2232 = vsel %vm2224, %v2211, %v2214
        %v2233 = vsel %vm2227, %v2220, 920167782
        %v2234 = vsel %vm2226, %v2217, %v2233
        %v2235 = vsel %vm2225, %v2232, %v2234
        %v2236 = vsel %vm2224, %v2214, %v2217
        %v2237 = vsel %vm2227, %v2223, 1326507024
        %v2238 = vsel %vm2226, %v2220, %v2237
        %v2239 = vsel %vm2225, %v2236, %v2238
        %v2240 = vshll.u32 %v2200, 8
        %v2241 = vand.u32 %v2240, 65535
        %v2242 = vshrl.u32 %v2240, 16
        %v2243 = vand.u32 %v2239, 65535
        %v2244 = vshrl.u32 %v2239, 16
        %v2245 = vmul.u32 %v2241, %v2243
        %v2246 = vmul.u32 %v2241, %v2244
        %v2247 = vmul.u32 %v2242, %v2243
        %v2248 = vmul.u32 %v2242, %v2244
        %v2249 = vshll.u32 %v2246, 16
        %v2250 = vshrl.u32 %v2246, 16
        %v2251 = vshll.u32 %v2247, 16
        %v2252 = vshrl.u32 %v2247, 16
        %vm2253 = vc.u32 %v2245, %v2249
        %v2254 = vsel %vm2253, 1, 0
        %v2255 = vadd.s32 %v2245, %v2249
        %v2256 = vadd.s32 %v2248, %v2254
        %vm2257 = vc.u32 %v2255, %v2251
        %v2258 = vsel %vm2257, 1, 0
        %v2259 = vadd.s32 %v2255, %v2251
        %v2260 = vadd.s32 %v2256, %v2258
        %v2261 = vadd.s32 %v2260, %v2250
        %v2262 = vadd.s32 %v2261, %v2252
        %v2263 = vand.u32 %v2240, 65535
        %v2264 = vshrl.u32 %v2240, 16
        %v2265 = vand.u32 %v2235, 65535
        %v2266 = vshrl.u32 %v2235, 16
        %v2267 = vmul.u32 %v2263, %v2265
        %v2268 = vmul.u32 %v2263, %v2266
        %v2269 = vmul.u32 %v2264, %v2265
        %v2270 = vmul.u32 %v2264, %v2266
        %v2271 = vshll.u32 %v2268, 16
        %v2272 = vshrl.u32 %v2268, 16
        %v2273 = vshll.u32 %v2269, 16
        %v2274 = vshrl.u32 %v2269, 16
        %vm2275 = vc.u32 %v2267, %v2271
        %v2276 = vsel %vm2275, 1, 0
        %v2277 = vadd.s32 %v2267, %v2271
        %v2278 = vadd.s32 %v2270, %v2276
        %vm2279 = vc.u32 %v2277, %v2273
        %v2280 = vsel %vm2279, 1, 0
        %v2281 = vadd.s32 %v2277, %v2273
        %v2282 = vadd.s32 %v2278, %v2280
        %v2283 = vadd.s32 %v2282, %v2272
        %v2284 = vadd.s32 %v2283, %v2274
        %v2285 = vmul.u32 %v2240, %v2231
        %v2286 = vadd.s32 %v2262, %v2281
        %vm2287 = vc.u32 %v2262, %v2281
        %v2288 = vadd.s32 %v2284, 1
        %v2289 = vsel %vm2287, %v2288, %v2284
        %v2290 = vadd.s32 %v2285, %v2289
        %v2291 = vadd.s32 %v2290, 536870912
        %v2292 = vshrl.u32 %v2291, 30
        %v2293 = vshll.u32 %v2292, 30
        %v2294 = vsub.s32 %v2290, %v2293
        %vm2295 = vcmp.lt.s32.totalorder %v2294, 0
        %v2296 = vsub.s32 0, %v2294
        %v2297 = vsel %vm2295, %v2296, %v2294
        %v2298 = vclz %v2297
        %v2299 = vsub.s32 %v2298, 2
        %vm2300 = vcmp.gt.s32.totalorder 0, %v2299
        %v2301 = vsel %vm2300, 0, %v2299
        %v2302 = vsub.s32 32, %v2301
        %v2303 = vshll.u32 %v2294, %v2301
        %v2304 = vshrl.u32 %v2286, %v2302
        %v2305 = vor.u32 %v2303, %v2304
        %v2306 = vsub.s32 4294967266, %v2301
        %v2307 = vadd.s32 %v2306, 127
        %v2308 = vshll.u32 %v2307, 23
        %v2309 = vor.u32 4788187, %v2308
        %v2310 = vand.u32 2147483647, %v2309
        %v2312 = vcvt.s32.f32 %v2305
        %v2313 = vmul.f32 %v2312, %v2310
        %v2314 = vxor.u32 %v2313, 2147483648
        %v2315 = vsel %vm2194, %v2314, %v2313
        %v2316 = vsub.s32 4, %v2292
        %v2317 = vsel %vm2194, %v2316, %v2292
        %v2318 = vsel %vm2193, %v466, %v2315
        %v2319 = vsel %vm2193, 0, %v2317
        %v2320 = vmul.f32 %v2318, %v2318
        %v2321 = vmul.f32 %v2320, -0.001358992
        %v2322 = vadd.f32 %v2321, 0.041655596
        %v2323 = vmul.f32 %v2320, %v2322
        %v2324 = vadd.f32 %v2323, -0.4999988
        %v2325 = vmul.f32 %v2320, %v2324
        %v2326 = vadd.f32 1.0, %v2325
        %v2327 = vmul.f32 %v2318, %v2318
        %v2328 = vmul.f32 %v2327, -0.00019511016
        %v2329 = vadd.f32 %v2328, 0.008332121
        %v2330 = vmul.f32 %v2327, %v2329
        %v2331 = vadd.f32 %v2330, -0.16666654
        %v2332 = vmul.f32 %v2327, %v2331
        %v2333 = vadd.f32 %v2332, 1.0
        %v2334 = vmul.f32 %v2333, %v2318
        %vm2335 = vweird.f32 %v466
        %v2336 = vadd.s32 %v2319, 3
        %v2337 = vand.u32 %v2336, 3
        %vm2338 = vcmp.lt.s32.totalorder %v2337, 2
        %vm2339 = vcmp.eq.s32.totalorder %v2337, 0
        %v2340 = vxor.u32 %v2334, 2147483648
        %v2341 = vsel %vm2339, %v2326, %v2340
        %vm2342 = vcmp.eq.s32.totalorder %v2337, 2
        %v2343 = vxor.u32 %v2326, 2147483648
        %v2344 = vsel %vm2342, %v2343, %v2334
        %v2345 = vsel %vm2338, %v2341, %v2344
        %v2346 = vsel %vm2335, nan, %v2345
        %v2347 = vand.u32 2147483647, %v467
        %vm2348 = vcmp.le.f32.partialorder %v2347, 0.7853982
        %vm2349 = vcmp.lt.s32.totalorder %v467, 0
        %v2350 = vand.u32 %v467, 2139095040
        %v2351 = vshrl.u32 %v2350, 23
        %v2352 = vsub.s32 %v2351, 127
        %v2353 = vand.u32 2147483647, %v467
        %v2354 = vand.u32 %v2353, 8388607
        %v2355 = vor.u32 %v2354, 8388608
        %v2356 = vsub.s32 0, %v2355
        %v2357 = vadd.s32 %v2352, 1
        %vm2358 = vcmp.gt.s32.totalorder %v2357, 0
        %v2359 = vsel %vm2358, %v2357, 0
        %v2360 = vshrl.u32 %v2359, 5
        %v2361 = vand.u32 %v2359, 31
        %v2362 = vsub.s32 32, %v2361
        %v2363 = vshrl.u32 683565275, %v2362
        %v2364 = vshll.u32 683565275, %v2361
        %v2365 = vshrl.u32 2475754826, %v2362
        %v2366 = vor.u32 %v2364, %v2365
        %v2367 = vshll.u32 2475754826, %v2361
        %v2368 = vshrl.u32 2131351028, %v2362
        %v2369 = vor.u32 %v2367, %v2368
        %v2370 = vshll.u32 2131351028, %v2361
        %v2371 = vshrl.u32 2102212464, %v2362
        %v2372 = vor.u32 %v2370, %v2371
        %v2373 = vshll.u32 2102212464, %v2361
        %v2374 = vshrl.u32 920167782, %v2362
        %v2375 = vor.u32 %v2373, %v2374
        %v2376 = vshll.u32 920167782, %v2361
        %v2377 = vshrl.u32 1326507024, %v2362
        %v2378 = vor.u32 %v2376, %v2377
        %vm2379 = vcmp.lt.s32.totalorder %v2360, 1
        %vm2380 = vcmp.lt.s32.totalorder %v2360, 2
        %vm2381 = vcmp.lt.s32.totalorder %v2360, 3
        %vm2382 = vcmp.lt.s32.totalorder %v2360, 4
        %v2383 = vsel %vm2379, %v2363, %v2366
        %v2384 = vsel %vm2382, %v2372, 2102212464
        %v2385 = vsel %vm2381, %v2369, %v2384
        %v2386 = vsel %vm2380, %v2383, %v2385
        %v2387 = vsel %vm2379, %v2366, %v2369
        %v2388 = vsel %vm2382, %v2375, 920167782
        %v2389 = vsel %vm2381, %v2372, %v2388
        %v2390 = vsel %vm2380, %v2387, %v2389
        %v2391 = vsel %vm2379, %v2369, %v2372
        %v2392 = vsel %vm2382, %v2378, 1326507024
        %v2393 = vsel %vm2381, %v2375, %v2392
        %v2394 = vsel %vm2380, %v2391, %v2393
        %v2395 = vshll.u32 %v2355, 8
        %v2396 = vand.u32 %v2395, 65535
        %v2397 = vshrl.u32 %v2395, 16
        %v2398 = vand.u32 %v2394, 65535
        %v2399 = vshrl.u32 %v2394, 16
        %v2400 = vmul.u32 %v2396, %v2398
        %v2401 = vmul.u32 %v2396, %v2399
        %v2402 = vmul.u32 %v2397, %v2398
        %v2403 = vmul.u32 %v2397, %v2399
        %v2404 = vshll.u32 %v2401, 16
        %v2405 = vshrl.u32 %v2401, 16
        %v2406 = vshll.u32 %v2402, 16
        %v2407 = vshrl.u32 %v2402, 16
        %vm2408 = vc.u32 %v2400, %v2404
        %v2409 = vsel %vm2408, 1, 0
        %v2410 = vadd.s32 %v2400, %v2404
        %v2411 = vadd.s32 %v2403, %v2409
        %vm2412 = vc.u32 %v2410, %v2406
        %v2413 = vsel %vm2412, 1, 0
        %v2414 = vadd.s32 %v2410, %v2406
        %v2415 = vadd.s32 %v2411, %v2413
        %v2416 = vadd.s32 %v2415, %v2405
        %v2417 = vadd.s32 %v2416, %v2407
        %v2418 = vand.u32 %v2395, 65535
        %v2419 = vshrl.u32 %v2395, 16
        %v2420 = vand.u32 %v2390, 65535
        %v2421 = vshrl.u32 %v2390, 16
        %v2422 = vmul.u32 %v2418, %v2420
        %v2423 = vmul.u32 %v2418, %v2421
        %v2424 = vmul.u32 %v2419, %v2420
        %v2425 = vmul.u32 %v2419, %v2421
        %v2426 = vshll.u32 %v2423, 16
        %v2427 = vshrl.u32 %v2423, 16
        %v2428 = vshll.u32 %v2424, 16
        %v2429 = vshrl.u32 %v2424, 16
        %vm2430 = vc.u32 %v2422, %v2426
        %v2431 = vsel %vm2430, 1, 0
        %v2432 = vadd.s32 %v2422, %v2426
        %v2433 = vadd.s32 %v2425, %v2431
        %vm2434 = vc.u32 %v2432, %v2428
        %v2435 = vsel %vm2434, 1, 0
        %v2436 = vadd.s32 %v2432, %v2428
        %v2437 = vadd.s32 %v2433, %v2435
        %v2438 = vadd.s32 %v2437, %v2427
        %v2439 = vadd.s32 %v2438, %v2429
        %v2440 = vmul.u32 %v2395, %v2386
        %v2441 = vadd.s32 %v2417, %v2436
        %vm2442 = vc.u32 %v2417, %v2436
        %v2443 = vadd.s32 %v2439, 1
        %v2444 = vsel %vm2442, %v2443, %v2439
        %v2445 = vadd.s32 %v2440, %v2444
        %v2446 = vadd.s32 %v2445, 536870912
        %v2447 = vshrl.u32 %v2446, 30
        %v2448 = vshll.u32 %v2447, 30
        %v2449 = vsub.s32 %v2445, %v2448
        %vm2450 = vcmp.lt.s32.totalorder %v2449, 0
        %v2451 = vsub.s32 0, %v2449
        %v2452 = vsel %vm2450, %v2451, %v2449
        %v2453 = vclz %v2452
        %v2454 = vsub.s32 %v2453, 2
        %vm2455 = vcmp.gt.s32.totalorder 0, %v2454
        %v2456 = vsel %vm2455, 0, %v2454
        %v2457 = vsub.s32 32, %v2456
        %v2458 = vshll.u32 %v2449, %v2456
        %v2459 = vshrl.u32 %v2441, %v2457
        %v2460 = vor.u32 %v2458, %v2459
        %v2461 = vsub.s32 4294967266, %v2456
        %v2462 = vadd.s32 %v2461, 127
        %v2463 = vshll.u32 %v2462, 23
        %v2464 = vor.u32 4788187, %v2463
        %v2465 = vand.u32 2147483647, %v2464
        %v2467 = vcvt.s32.f32 %v2460
        %v2468 = vmul.f32 %v2467, %v2465
        %v2469 = vxor.u32 %v2468, 2147483648
        %v2470 = vsel %vm2349, %v2469, %v2468
        %v2471 = vsub.s32 4, %v2447
        %v2472 = vsel %vm2349, %v2471, %v2447
        %v2473 = vsel %vm2348, %v467, %v2470
        %v2474 = vsel %vm2348, 0, %v2472
        %v2475 = vmul.f32 %v2473, %v2473
        %v2476 = vmul.f32 %v2475, -0.001358992
        %v2477 = vadd.f32 %v2476, 0.041655596
        %v2478 = vmul.f32 %v2475, %v2477
        %v2479 = vadd.f32 %v2478, -0.4999988
        %v2480 = vmul.f32 %v2475, %v2479
        %v2481 = vadd.f32 1.0, %v2480
        %v2482 = vmul.f32 %v2473, %v2473
        %v2483 = vmul.f32 %v2482, -0.00019511016
        %v2484 = vadd.f32 %v2483, 0.008332121
        %v2485 = vmul.f32 %v2482, %v2484
        %v2486 = vadd.f32 %v2485, -0.16666654
        %v2487 = vmul.f32 %v2482, %v2486
        %v2488 = vadd.f32 %v2487, 1.0
        %v2489 = vmul.f32 %v2488, %v2473
        %vm2490 = vweird.f32 %v467
        %v2491 = vadd.s32 %v2474, 3
        %v2492 = vand.u32 %v2491, 3
        %vm2493 = vcmp.lt.s32.totalorder %v2492, 2
        %vm2494 = vcmp.eq.s32.totalorder %v2492, 0
        %v2495 = vxor.u32 %v2489, 2147483648
        %v2496 = vsel %vm2494, %v2481, %v2495
        %vm2497 = vcmp.eq.s32.totalorder %v2492, 2
        %v2498 = vxor.u32 %v2481, 2147483648
        %v2499 = vsel %vm2497, %v2498, %v2489
        %v2500 = vsel %vm2493, %v2496, %v2499
        %v2501 = vsel %vm2490, nan, %v2500
        %v2502 = vand.u32 2147483647, %v468
        %vm2503 = vcmp.le.f32.partialorder %v2502, 0.7853982
        %vm2504 = vcmp.lt.s32.totalorder %v468, 0
        %v2505 = vand.u32 %v468, 2139095040
        %v2506 = vshrl.u32 %v2505, 23
        %v2507 = vsub.s32 %v2506, 127
        %v2508 = vand.u32 2147483647, %v468
        %v2509 = vand.u32 %v2508, 8388607
        %v2510 = vor.u32 %v2509, 8388608
        %v2511 = vsub.s32 0, %v2510
        %v2512 = vadd.s32 %v2507, 1
        %vm2513 = vcmp.gt.s32.totalorder %v2512, 0
        %v2514 = vsel %vm2513, %v2512, 0
        %v2515 = vshrl.u32 %v2514, 5
        %v2516 = vand.u32 %v2514, 31
        %v2517 = vsub.s32 32, %v2516
        %v2518 = vshrl.u32 683565275, %v2517
        %v2519 = vshll.u32 683565275, %v2516
        %v2520 = vshrl.u32 2475754826, %v2517
        %v2521 = vor.u32 %v2519, %v2520
        %v2522 = vshll.u32 2475754826, %v2516
        %v2523 = vshrl.u32 2131351028, %v2517
        %v2524 = vor.u32 %v2522, %v2523
        %v2525 = vshll.u32 2131351028, %v2516
        %v2526 = vshrl.u32 2102212464, %v2517
        %v2527 = vor.u32 %v2525, %v2526
        %v2528 = vshll.u32 2102212464, %v2516
        %v2529 = vshrl.u32 920167782, %v2517
        %v2530 = vor.u32 %v2528, %v2529
        %v2531 = vshll.u32 920167782, %v2516
        %v2532 = vshrl.u32 1326507024, %v2517
        %v2533 = vor.u32 %v2531, %v2532
        %vm2534 = vcmp.lt.s32.totalorder %v2515, 1
        %vm2535 = vcmp.lt.s32.totalorder %v2515, 2
        %vm2536 = vcmp.lt.s32.totalorder %v2515, 3
        %vm2537 = vcmp.lt.s32.totalorder %v2515, 4
        %v2538 = vsel %vm2534, %v2518, %v2521
        %v2539 = vsel %vm2537, %v2527, 2102212464
        %v2540 = vsel %vm2536, %v2524, %v2539
        %v2541 = vsel %vm2535, %v2538, %v2540
        %v2542 = vsel %vm2534, %v2521, %v2524
        %v2543 = vsel %vm2537, %v2530, 920167782
        %v2544 = vsel %vm2536, %v2527, %v2543
        %v2545 = vsel %vm2535, %v2542, %v2544
        %v2546 = vsel %vm2534, %v2524, %v2527
        %v2547 = vsel %vm2537, %v2533, 1326507024
        %v2548 = vsel %vm2536, %v2530, %v2547
        %v2549 = vsel %vm2535, %v2546, %v2548
        %v2550 = vshll.u32 %v2510, 8
        %v2551 = vand.u32 %v2550, 65535
        %v2552 = vshrl.u32 %v2550, 16
        %v2553 = vand.u32 %v2549, 65535
        %v2554 = vshrl.u32 %v2549, 16
        %v2555 = vmul.u32 %v2551, %v2553
        %v2556 = vmul.u32 %v2551, %v2554
        %v2557 = vmul.u32 %v2552, %v2553
        %v2558 = vmul.u32 %v2552, %v2554
        %v2559 = vshll.u32 %v2556, 16
        %v2560 = vshrl.u32 %v2556, 16
        %v2561 = vshll.u32 %v2557, 16
        %v2562 = vshrl.u32 %v2557, 16
        %vm2563 = vc.u32 %v2555, %v2559
        %v2564 = vsel %vm2563, 1, 0
        %v2565 = vadd.s32 %v2555, %v2559
        %v2566 = vadd.s32 %v2558, %v2564
        %vm2567 = vc.u32 %v2565, %v2561
        %v2568 = vsel %vm2567, 1, 0
        %v2569 = vadd.s32 %v2565, %v2561
        %v2570 = vadd.s32 %v2566, %v2568
        %v2571 = vadd.s32 %v2570, %v2560
        %v2572 = vadd.s32 %v2571, %v2562
        %v2573 = vand.u32 %v2550, 65535
        %v2574 = vshrl.u32 %v2550, 16
        %v2575 = vand.u32 %v2545, 65535
        %v2576 = vshrl.u32 %v2545, 16
        %v2577 = vmul.u32 %v2573, %v2575
        %v2578 = vmul.u32 %v2573, %v2576
        %v2579 = vmul.u32 %v2574, %v2575
        %v2580 = vmul.u32 %v2574, %v2576
        %v2581 = vshll.u32 %v2578, 16
        %v2582 = vshrl.u32 %v2578, 16
        %v2583 = vshll.u32 %v2579, 16
        %v2584 = vshrl.u32 %v2579, 16
        %vm2585 = vc.u32 %v2577, %v2581
        %v2586 = vsel %vm2585, 1, 0
        %v2587 = vadd.s32 %v2577, %v2581
        %v2588 = vadd.s32 %v2580, %v2586
        %vm2589 = vc.u32 %v2587, %v2583
        %v2590 = vsel %vm2589, 1, 0
        %v2591 = vadd.s32 %v2587, %v2583
        %v2592 = vadd.s32 %v2588, %v2590
        %v2593 = vadd.s32 %v2592, %v2582
        %v2594 = vadd.s32 %v2593, %v2584
        %v2595 = vmul.u32 %v2550, %v2541
        %v2596 = vadd.s32 %v2572, %v2591
        %vm2597 = vc.u32 %v2572, %v2591
        %v2598 = vadd.s32 %v2594, 1
        %v2599 = vsel %vm2597, %v2598, %v2594
        %v2600 = vadd.s32 %v2595, %v2599
        %v2601 = vadd.s32 %v2600, 536870912
        %v2602 = vshrl.u32 %v2601, 30
        %v2603 = vshll.u32 %v2602, 30
        %v2604 = vsub.s32 %v2600, %v2603
        %vm2605 = vcmp.lt.s32.totalorder %v2604, 0
        %v2606 = vsub.s32 0, %v2604
        %v2607 = vsel %vm2605, %v2606, %v2604
        %v2608 = vclz %v2607
        %v2609 = vsub.s32 %v2608, 2
        %vm2610 = vcmp.gt.s32.totalorder 0, %v2609
        %v2611 = vsel %vm2610, 0, %v2609
        %v2612 = vsub.s32 32, %v2611
        %v2613 = vshll.u32 %v2604, %v2611
        %v2614 = vshrl.u32 %v2596, %v2612
        %v2615 = vor.u32 %v2613, %v2614
        %v2616 = vsub.s32 4294967266, %v2611
        %v2617 = vadd.s32 %v2616, 127
        %v2618 = vshll.u32 %v2617, 23
        %v2619 = vor.u32 4788187, %v2618
        %v2620 = vand.u32 2147483647, %v2619
        %v2622 = vcvt.s32.f32 %v2615
        %v2623 = vmul.f32 %v2622, %v2620
        %v2624 = vxor.u32 %v2623, 2147483648
        %v2625 = vsel %vm2504, %v2624, %v2623
        %v2626 = vsub.s32 4, %v2602
        %v2627 = vsel %vm2504, %v2626, %v2602
        %v2628 = vsel %vm2503, %v468, %v2625
        %v2629 = vsel %vm2503, 0, %v2627
        %v2630 = vmul.f32 %v2628, %v2628
        %v2631 = vmul.f32 %v2630, -0.001358992
        %v2632 = vadd.f32 %v2631, 0.041655596
        %v2633 = vmul.f32 %v2630, %v2632
        %v2634 = vadd.f32 %v2633, -0.4999988
        %v2635 = vmul.f32 %v2630, %v2634
        %v2636 = vadd.f32 1.0, %v2635
        %v2637 = vmul.f32 %v2628, %v2628
        %v2638 = vmul.f32 %v2637, -0.00019511016
        %v2639 = vadd.f32 %v2638, 0.008332121
        %v2640 = vmul.f32 %v2637, %v2639
        %v2641 = vadd.f32 %v2640, -0.16666654
        %v2642 = vmul.f32 %v2637, %v2641
        %v2643 = vadd.f32 %v2642, 1.0
        %v2644 = vmul.f32 %v2643, %v2628
        %vm2645 = vweird.f32 %v468
        %v2646 = vadd.s32 %v2629, 3
        %v2647 = vand.u32 %v2646, 3
        %vm2648 = vcmp.lt.s32.totalorder %v2647, 2
        %vm2649 = vcmp.eq.s32.totalorder %v2647, 0
        %v2650 = vxor.u32 %v2644, 2147483648
        %v2651 = vsel %vm2649, %v2636, %v2650
        %vm2652 = vcmp.eq.s32.totalorder %v2647, 2
        %v2653 = vxor.u32 %v2636, 2147483648
        %v2654 = vsel %vm2652, %v2653, %v2644
        %v2655 = vsel %vm2648, %v2651, %v2654
        %v2656 = vsel %vm2645, nan, %v2655
        %v2657 = vand.u32 2147483647, %v469
        %vm2658 = vcmp.le.f32.partialorder %v2657, 0.7853982
        %vm2659 = vcmp.lt.s32.totalorder %v469, 0
        %v2660 = vand.u32 %v469, 2139095040
        %v2661 = vshrl.u32 %v2660, 23
        %v2662 = vsub.s32 %v2661, 127
        %v2663 = vand.u32 2147483647, %v469
        %v2664 = vand.u32 %v2663, 8388607
        %v2665 = vor.u32 %v2664, 8388608
        %v2666 = vsub.s32 0, %v2665
        %v2667 = vadd.s32 %v2662, 1
        %vm2668 = vcmp.gt.s32.totalorder %v2667, 0
        %v2669 = vsel %vm2668, %v2667, 0
        %v2670 = vshrl.u32 %v2669, 5
        %v2671 = vand.u32 %v2669, 31
        %v2672 = vsub.s32 32, %v2671
        %v2673 = vshrl.u32 683565275, %v2672
        %v2674 = vshll.u32 683565275, %v2671
        %v2675 = vshrl.u32 2475754826, %v2672
        %v2676 = vor.u32 %v2674, %v2675
        %v2677 = vshll.u32 2475754826, %v2671
        %v2678 = vshrl.u32 2131351028, %v2672
        %v2679 = vor.u32 %v2677, %v2678
        %v2680 = vshll.u32 2131351028, %v2671
        %v2681 = vshrl.u32 2102212464, %v2672
        %v2682 = vor.u32 %v2680, %v2681
        %v2683 = vshll.u32 2102212464, %v2671
        %v2684 = vshrl.u32 920167782, %v2672
        %v2685 = vor.u32 %v2683, %v2684
        %v2686 = vshll.u32 920167782, %v2671
        %v2687 = vshrl.u32 1326507024, %v2672
        %v2688 = vor.u32 %v2686, %v2687
        %vm2689 = vcmp.lt.s32.totalorder %v2670, 1
        %vm2690 = vcmp.lt.s32.totalorder %v2670, 2
        %vm2691 = vcmp.lt.s32.totalorder %v2670, 3
        %vm2692 = vcmp.lt.s32.totalorder %v2670, 4
        %v2693 = vsel %vm2689, %v2673, %v2676
        %v2694 = vsel %vm2692, %v2682, 2102212464
        %v2695 = vsel %vm2691, %v2679, %v2694
        %v2696 = vsel %vm2690, %v2693, %v2695
        %v2697 = vsel %vm2689, %v2676, %v2679
        %v2698 = vsel %vm2692, %v2685, 920167782
        %v2699 = vsel %vm2691, %v2682, %v2698
        %v2700 = vsel %vm2690, %v2697, %v2699
        %v2701 = vsel %vm2689, %v2679, %v2682
        %v2702 = vsel %vm2692, %v2688, 1326507024
        %v2703 = vsel %vm2691, %v2685, %v2702
        %v2704 = vsel %vm2690, %v2701, %v2703
        %v2705 = vshll.u32 %v2665, 8
        %v2706 = vand.u32 %v2705, 65535
        %v2707 = vshrl.u32 %v2705, 16
        %v2708 = vand.u32 %v2704, 65535
        %v2709 = vshrl.u32 %v2704, 16
        %v2710 = vmul.u32 %v2706, %v2708
        %v2711 = vmul.u32 %v2706, %v2709
        %v2712 = vmul.u32 %v2707, %v2708
        %v2713 = vmul.u32 %v2707, %v2709
        %v2714 = vshll.u32 %v2711, 16
        %v2715 = vshrl.u32 %v2711, 16
        %v2716 = vshll.u32 %v2712, 16
        %v2717 = vshrl.u32 %v2712, 16
        %vm2718 = vc.u32 %v2710, %v2714
        %v2719 = vsel %vm2718, 1, 0
        %v2720 = vadd.s32 %v2710, %v2714
        %v2721 = vadd.s32 %v2713, %v2719
        %vm2722 = vc.u32 %v2720, %v2716
        %v2723 = vsel %vm2722, 1, 0
        %v2724 = vadd.s32 %v2720, %v2716
        %v2725 = vadd.s32 %v2721, %v2723
        %v2726 = vadd.s32 %v2725, %v2715
        %v2727 = vadd.s32 %v2726, %v2717
        %v2728 = vand.u32 %v2705, 65535
        %v2729 = vshrl.u32 %v2705, 16
        %v2730 = vand.u32 %v2700, 65535
        %v2731 = vshrl.u32 %v2700, 16
        %v2732 = vmul.u32 %v2728, %v2730
        %v2733 = vmul.u32 %v2728, %v2731
        %v2734 = vmul.u32 %v2729, %v2730
        %v2735 = vmul.u32 %v2729, %v2731
        %v2736 = vshll.u32 %v2733, 16
        %v2737 = vshrl.u32 %v2733, 16
        %v2738 = vshll.u32 %v2734, 16
        %v2739 = vshrl.u32 %v2734, 16
        %vm2740 = vc.u32 %v2732, %v2736
        %v2741 = vsel %vm2740, 1, 0
        %v2742 = vadd.s32 %v2732, %v2736
        %v2743 = vadd.s32 %v2735, %v2741
        %vm2744 = vc.u32 %v2742, %v2738
        %v2745 = vsel %vm2744, 1, 0
        %v2746 = vadd.s32 %v2742, %v2738
        %v2747 = vadd.s32 %v2743, %v2745
        %v2748 = vadd.s32 %v2747, %v2737
        %v2749 = vadd.s32 %v2748, %v2739
        %v2750 = vmul.u32 %v2705, %v2696
        %v2751 = vadd.s32 %v2727, %v2746
        %vm2752 = vc.u32 %v2727, %v2746
        %v2753 = vadd.s32 %v2749, 1
        %v2754 = vsel %vm2752, %v2753, %v2749
        %v2755 = vadd.s32 %v2750, %v2754
        %v2756 = vadd.s32 %v2755, 536870912
        %v2757 = vshrl.u32 %v2756, 30
        %v2758 = vshll.u32 %v2757, 30
        %v2759 = vsub.s32 %v2755, %v2758
        %vm2760 = vcmp.lt.s32.totalorder %v2759, 0
        %v2761 = vsub.s32 0, %v2759
        %v2762 = vsel %vm2760, %v2761, %v2759
        %v2763 = vclz %v2762
        %v2764 = vsub.s32 %v2763, 2
        %vm2765 = vcmp.gt.s32.totalorder 0, %v2764
        %v2766 = vsel %vm2765, 0, %v2764
        %v2767 = vsub.s32 32, %v2766
        %v2768 = vshll.u32 %v2759, %v2766
        %v2769 = vshrl.u32 %v2751, %v2767
        %v2770 = vor.u32 %v2768, %v2769
        %v2771 = vsub.s32 4294967266, %v2766
        %v2772 = vadd.s32 %v2771, 127
        %v2773 = vshll.u32 %v2772, 23
        %v2774 = vor.u32 4788187, %v2773
        %v2775 = vand.u32 2147483647, %v2774
        %v2777 = vcvt.s32.f32 %v2770
        %v2778 = vmul.f32 %v2777, %v2775
        %v2779 = vxor.u32 %v2778, 2147483648
        %v2780 = vsel %vm2659, %v2779, %v2778
        %v2781 = vsub.s32 4, %v2757
        %v2782 = vsel %vm2659, %v2781, %v2757
        %v2783 = vsel %vm2658, %v469, %v2780
        %v2784 = vsel %vm2658, 0, %v2782
        %v2785 = vmul.f32 %v2783, %v2783
        %v2786 = vmul.f32 %v2785, -0.001358992
        %v2787 = vadd.f32 %v2786, 0.041655596
        %v2788 = vmul.f32 %v2785, %v2787
        %v2789 = vadd.f32 %v2788, -0.4999988
        %v2790 = vmul.f32 %v2785, %v2789
        %v2791 = vadd.f32 1.0, %v2790
        %v2792 = vmul.f32 %v2783, %v2783
        %v2793 = vmul.f32 %v2792, -0.00019511016
        %v2794 = vadd.f32 %v2793, 0.008332121
        %v2795 = vmul.f32 %v2792, %v2794
        %v2796 = vadd.f32 %v2795, -0.16666654
        %v2797 = vmul.f32 %v2792, %v2796
        %v2798 = vadd.f32 %v2797, 1.0
        %v2799 = vmul.f32 %v2798, %v2783
        %vm2800 = vweird.f32 %v469
        %v2801 = vadd.s32 %v2784, 3
        %v2802 = vand.u32 %v2801, 3
        %vm2803 = vcmp.lt.s32.totalorder %v2802, 2
        %vm2804 = vcmp.eq.s32.totalorder %v2802, 0
        %v2805 = vxor.u32 %v2799, 2147483648
        %v2806 = vsel %vm2804, %v2791, %v2805
        %vm2807 = vcmp.eq.s32.totalorder %v2802, 2
        %v2808 = vxor.u32 %v2791, 2147483648
        %v2809 = vsel %vm2807, %v2808, %v2799
        %v2810 = vsel %vm2803, %v2806, %v2809
        %v2811 = vsel %vm2800, nan, %v2810
        %v2812 = vand.u32 2147483647, %v470
        %vm2813 = vcmp.le.f32.partialorder %v2812, 0.7853982
        %vm2814 = vcmp.lt.s32.totalorder %v470, 0
        %v2815 = vand.u32 %v470, 2139095040
        %v2816 = vshrl.u32 %v2815, 23
        %v2817 = vsub.s32 %v2816, 127
        %v2818 = vand.u32 2147483647, %v470
        %v2819 = vand.u32 %v2818, 8388607
        %v2820 = vor.u32 %v2819, 8388608
        %v2821 = vsub.s32 0, %v2820
        %v2822 = vadd.s32 %v2817, 1
        %vm2823 = vcmp.gt.s32.totalorder %v2822, 0
        %v2824 = vsel %vm2823, %v2822, 0
        %v2825 = vshrl.u32 %v2824, 5
        %v2826 = vand.u32 %v2824, 31
        %v2827 = vsub.s32 32, %v2826
        %v2828 = vshrl.u32 683565275, %v2827
        %v2829 = vshll.u32 683565275, %v2826
        %v2830 = vshrl.u32 2475754826, %v2827
        %v2831 = vor.u32 %v2829, %v2830
        %v2832 = vshll.u32 2475754826, %v2826
        %v2833 = vshrl.u32 2131351028, %v2827
        %v2834 = vor.u32 %v2832, %v2833
        %v2835 = vshll.u32 2131351028, %v2826
        %v2836 = vshrl.u32 2102212464, %v2827
        %v2837 = vor.u32 %v2835, %v2836
        %v2838 = vshll.u32 2102212464, %v2826
        %v2839 = vshrl.u32 920167782, %v2827
        %v2840 = vor.u32 %v2838, %v2839
        %v2841 = vshll.u32 920167782, %v2826
        %v2842 = vshrl.u32 1326507024, %v2827
        %v2843 = vor.u32 %v2841, %v2842
        %vm2844 = vcmp.lt.s32.totalorder %v2825, 1
        %vm2845 = vcmp.lt.s32.totalorder %v2825, 2
        %vm2846 = vcmp.lt.s32.totalorder %v2825, 3
        %vm2847 = vcmp.lt.s32.totalorder %v2825, 4
        %v2848 = vsel %vm2844, %v2828, %v2831
        %v2849 = vsel %vm2847, %v2837, 2102212464
        %v2850 = vsel %vm2846, %v2834, %v2849
        %v2851 = vsel %vm2845, %v2848, %v2850
        %v2852 = vsel %vm2844, %v2831, %v2834
        %v2853 = vsel %vm2847, %v2840, 920167782
        %v2854 = vsel %vm2846, %v2837, %v2853
        %v2855 = vsel %vm2845, %v2852, %v2854
        %v2856 = vsel %vm2844, %v2834, %v2837
        %v2857 = vsel %vm2847, %v2843, 1326507024
        %v2858 = vsel %vm2846, %v2840, %v2857
        %v2859 = vsel %vm2845, %v2856, %v2858
        %v2860 = vshll.u32 %v2820, 8
        %v2861 = vand.u32 %v2860, 65535
        %v2862 = vshrl.u32 %v2860, 16
        %v2863 = vand.u32 %v2859, 65535
        %v2864 = vshrl.u32 %v2859, 16
        %v2865 = vmul.u32 %v2861, %v2863
        %v2866 = vmul.u32 %v2861, %v2864
        %v2867 = vmul.u32 %v2862, %v2863
        %v2868 = vmul.u32 %v2862, %v2864
        %v2869 = vshll.u32 %v2866, 16
        %v2870 = vshrl.u32 %v2866, 16
        %v2871 = vshll.u32 %v2867, 16
        %v2872 = vshrl.u32 %v2867, 16
        %vm2873 = vc.u32 %v2865, %v2869
        %v2874 = vsel %vm2873, 1, 0
        %v2875 = vadd.s32 %v2865, %v2869
        %v2876 = vadd.s32 %v2868, %v2874
        %vm2877 = vc.u32 %v2875, %v2871
        %v2878 = vsel %vm2877, 1, 0
        %v2879 = vadd.s32 %v2875, %v2871
        %v2880 = vadd.s32 %v2876, %v2878
        %v2881 = vadd.s32 %v2880, %v2870
        %v2882 = vadd.s32 %v2881, %v2872
        %v2883 = vand.u32 %v2860, 65535
        %v2884 = vshrl.u32 %v2860, 16
        %v2885 = vand.u32 %v2855, 65535
        %v2886 = vshrl.u32 %v2855, 16
        %v2887 = vmul.u32 %v2883, %v2885
        %v2888 = vmul.u32 %v2883, %v2886
        %v2889 = vmul.u32 %v2884, %v2885
        %v2890 = vmul.u32 %v2884, %v2886
        %v2891 = vshll.u32 %v2888, 16
        %v2892 = vshrl.u32 %v2888, 16
        %v2893 = vshll.u32 %v2889, 16
        %v2894 = vshrl.u32 %v2889, 16
        %vm2895 = vc.u32 %v2887, %v2891
        %v2896 = vsel %vm2895, 1, 0
        %v2897 = vadd.s32 %v2887, %v2891
        %v2898 = vadd.s32 %v2890, %v2896
        %vm2899 = vc.u32 %v2897, %v2893
        %v2900 = vsel %vm2899, 1, 0
        %v2901 = vadd.s32 %v2897, %v2893
        %v2902 = vadd.s32 %v2898, %v2900
        %v2903 = vadd.s32 %v2902, %v2892
        %v2904 = vadd.s32 %v2903, %v2894
        %v2905 = vmul.u32 %v2860, %v2851
        %v2906 = vadd.s32 %v2882, %v2901
        %vm2907 = vc.u32 %v2882, %v2901
        %v2908 = vadd.s32 %v2904, 1
        %v2909 = vsel %vm2907, %v2908, %v2904
        %v2910 = vadd.s32 %v2905, %v2909
        %v2911 = vadd.s32 %v2910, 536870912
        %v2912 = vshrl.u32 %v2911, 30
        %v2913 = vshll.u32 %v2912, 30
        %v2914 = vsub.s32 %v2910, %v2913
        %vm2915 = vcmp.lt.s32.totalorder %v2914, 0
        %v2916 = vsub.s32 0, %v2914
        %v2917 = vsel %vm2915, %v2916, %v2914
        %v2918 = vclz %v2917
        %v2919 = vsub.s32 %v2918, 2
        %vm2920 = vcmp.gt.s32.totalorder 0, %v2919
        %v2921 = vsel %vm2920, 0, %v2919
        %v2922 = vsub.s32 32, %v2921
        %v2923 = vshll.u32 %v2914, %v2921
        %v2924 = vshrl.u32 %v2906, %v2922
        %v2925 = vor.u32 %v2923, %v2924
        %v2926 = vsub.s32 4294967266, %v2921
        %v2927 = vadd.s32 %v2926, 127
        %v2928 = vshll.u32 %v2927, 23
        %v2929 = vor.u32 4788187, %v2928
        %v2930 = vand.u32 2147483647, %v2929
        %v2932 = vcvt.s32.f32 %v2925
        %v2933 = vmul.f32 %v2932, %v2930
        %v2934 = vxor.u32 %v2933, 2147483648
        %v2935 = vsel %vm2814, %v2934, %v2933
        %v2936 = vsub.s32 4, %v2912
        %v2937 = vsel %vm2814, %v2936, %v2912
        %v2938 = vsel %vm2813, %v470, %v2935
        %v2939 = vsel %vm2813, 0, %v2937
        %v2940 = vmul.f32 %v2938, %v2938
        %v2941 = vmul.f32 %v2940, -0.001358992
        %v2942 = vadd.f32 %v2941, 0.041655596
        %v2943 = vmul.f32 %v2940, %v2942
        %v2944 = vadd.f32 %v2943, -0.4999988
        %v2945 = vmul.f32 %v2940, %v2944
        %v2946 = vadd.f32 1.0, %v2945
        %v2947 = vmul.f32 %v2938, %v2938
        %v2948 = vmul.f32 %v2947, -0.00019511016
        %v2949 = vadd.f32 %v2948, 0.008332121
        %v2950 = vmul.f32 %v2947, %v2949
        %v2951 = vadd.f32 %v2950, -0.16666654
        %v2952 = vmul.f32 %v2947, %v2951
        %v2953 = vadd.f32 %v2952, 1.0
        %v2954 = vmul.f32 %v2953, %v2938
        %vm2955 = vweird.f32 %v470
        %v2956 = vadd.s32 %v2939, 3
        %v2957 = vand.u32 %v2956, 3
        %vm2958 = vcmp.lt.s32.totalorder %v2957, 2
        %vm2959 = vcmp.eq.s32.totalorder %v2957, 0
        %v2960 = vxor.u32 %v2954, 2147483648
        %v2961 = vsel %vm2959, %v2946, %v2960
        %vm2962 = vcmp.eq.s32.totalorder %v2957, 2
        %v2963 = vxor.u32 %v2946, 2147483648
        %v2964 = vsel %vm2962, %v2963, %v2954
        %v2965 = vsel %vm2958, %v2961, %v2964
        %v2966 = vsel %vm2955, nan, %v2965
        %v2967 = vand.u32 2147483647, %v471
        %vm2968 = vcmp.le.f32.partialorder %v2967, 0.7853982
        %vm2969 = vcmp.lt.s32.totalorder %v471, 0
        %v2970 = vand.u32 %v471, 2139095040
        %v2971 = vshrl.u32 %v2970, 23
        %v2972 = vsub.s32 %v2971, 127
        %v2973 = vand.u32 2147483647, %v471
        %v2974 = vand.u32 %v2973, 8388607
        %v2975 = vor.u32 %v2974, 8388608
        %v2976 = vsub.s32 0, %v2975
        %v2977 = vadd.s32 %v2972, 1
        %vm2978 = vcmp.gt.s32.totalorder %v2977, 0
        %v2979 = vsel %vm2978, %v2977, 0
        %v2980 = vshrl.u32 %v2979, 5
        %v2981 = vand.u32 %v2979, 31
        %v2982 = vsub.s32 32, %v2981
        %v2983 = vshrl.u32 683565275, %v2982
        %v2984 = vshll.u32 683565275, %v2981
        %v2985 = vshrl.u32 2475754826, %v2982
        %v2986 = vor.u32 %v2984, %v2985
        %v2987 = vshll.u32 2475754826, %v2981
        %v2988 = vshrl.u32 2131351028, %v2982
        %v2989 = vor.u32 %v2987, %v2988
        %v2990 = vshll.u32 2131351028, %v2981
        %v2991 = vshrl.u32 2102212464, %v2982
        %v2992 = vor.u32 %v2990, %v2991
        %v2993 = vshll.u32 2102212464, %v2981
        %v2994 = vshrl.u32 920167782, %v2982
        %v2995 = vor.u32 %v2993, %v2994
        %v2996 = vshll.u32 920167782, %v2981
        %v2997 = vshrl.u32 1326507024, %v2982
        %v2998 = vor.u32 %v2996, %v2997
        %vm2999 = vcmp.lt.s32.totalorder %v2980, 1
        %vm3000 = vcmp.lt.s32.totalorder %v2980, 2
        %vm3001 = vcmp.lt.s32.totalorder %v2980, 3
        %vm3002 = vcmp.lt.s32.totalorder %v2980, 4
        %v3003 = vsel %vm2999, %v2983, %v2986
        %v3004 = vsel %vm3002, %v2992, 2102212464
        %v3005 = vsel %vm3001, %v2989, %v3004
        %v3006 = vsel %vm3000, %v3003, %v3005
        %v3007 = vsel %vm2999, %v2986, %v2989
        %v3008 = vsel %vm3002, %v2995, 920167782
        %v3009 = vsel %vm3001, %v2992, %v3008
        %v3010 = vsel %vm3000, %v3007, %v3009
        %v3011 = vsel %vm2999, %v2989, %v2992
        %v3012 = vsel %vm3002, %v2998, 1326507024
        %v3013 = vsel %vm3001, %v2995, %v3012
        %v3014 = vsel %vm3000, %v3011, %v3013
        %v3015 = vshll.u32 %v2975, 8
        %v3016 = vand.u32 %v3015, 65535
        %v3017 = vshrl.u32 %v3015, 16
        %v3018 = vand.u32 %v3014, 65535
        %v3019 = vshrl.u32 %v3014, 16
        %v3020 = vmul.u32 %v3016, %v3018
        %v3021 = vmul.u32 %v3016, %v3019
        %v3022 = vmul.u32 %v3017, %v3018
        %v3023 = vmul.u32 %v3017, %v3019
        %v3024 = vshll.u32 %v3021, 16
        %v3025 = vshrl.u32 %v3021, 16
        %v3026 = vshll.u32 %v3022, 16
        %v3027 = vshrl.u32 %v3022, 16
        %vm3028 = vc.u32 %v3020, %v3024
        %v3029 = vsel %vm3028, 1, 0
        %v3030 = vadd.s32 %v3020, %v3024
        %v3031 = vadd.s32 %v3023, %v3029
        %vm3032 = vc.u32 %v3030, %v3026
        %v3033 = vsel %vm3032, 1, 0
        %v3034 = vadd.s32 %v3030, %v3026
        %v3035 = vadd.s32 %v3031, %v3033
        %v3036 = vadd.s32 %v3035, %v3025
        %v3037 = vadd.s32 %v3036, %v3027
        %v3038 = vand.u32 %v3015, 65535
        %v3039 = vshrl.u32 %v3015, 16
        %v3040 = vand.u32 %v3010, 65535
        %v3041 = vshrl.u32 %v3010, 16
        %v3042 = vmul.u32 %v3038, %v3040
        %v3043 = vmul.u32 %v3038, %v3041
        %v3044 = vmul.u32 %v3039, %v3040
        %v3045 = vmul.u32 %v3039, %v3041
        %v3046 = vshll.u32 %v3043, 16
        %v3047 = vshrl.u32 %v3043, 16
        %v3048 = vshll.u32 %v3044, 16
        %v3049 = vshrl.u32 %v3044, 16
        %vm3050 = vc.u32 %v3042, %v3046
        %v3051 = vsel %vm3050, 1, 0
        %v3052 = vadd.s32 %v3042, %v3046
        %v3053 = vadd.s32 %v3045, %v3051
        %vm3054 = vc.u32 %v3052, %v3048
        %v3055 = vsel %vm3054, 1, 0
        %v3056 = vadd.s32 %v3052, %v3048
        %v3057 = vadd.s32 %v3053, %v3055
        %v3058 = vadd.s32 %v3057, %v3047
        %v3059 = vadd.s32 %v3058, %v3049
        %v3060 = vmul.u32 %v3015, %v3006
        %v3061 = vadd.s32 %v3037, %v3056
        %vm3062 = vc.u32 %v3037, %v3056
        %v3063 = vadd.s32 %v3059, 1
        %v3064 = vsel %vm3062, %v3063, %v3059
        %v3065 = vadd.s32 %v3060, %v3064
        %v3066 = vadd.s32 %v3065, 536870912
        %v3067 = vshrl.u32 %v3066, 30
        %v3068 = vshll.u32 %v3067, 30
        %v3069 = vsub.s32 %v3065, %v3068
        %vm3070 = vcmp.lt.s32.totalorder %v3069, 0
        %v3071 = vsub.s32 0, %v3069
        %v3072 = vsel %vm3070, %v3071, %v3069
        %v3073 = vclz %v3072
        %v3074 = vsub.s32 %v3073, 2
        %vm3075 = vcmp.gt.s32.totalorder 0, %v3074
        %v3076 = vsel %vm3075, 0, %v3074
        %v3077 = vsub.s32 32, %v3076
        %v3078 = vshll.u32 %v3069, %v3076
        %v3079 = vshrl.u32 %v3061, %v3077
        %v3080 = vor.u32 %v3078, %v3079
        %v3081 = vsub.s32 4294967266, %v3076
        %v3082 = vadd.s32 %v3081, 127
        %v3083 = vshll.u32 %v3082, 23
        %v3084 = vor.u32 4788187, %v3083
        %v3085 = vand.u32 2147483647, %v3084
        %v3087 = vcvt.s32.f32 %v3080
        %v3088 = vmul.f32 %v3087, %v3085
        %v3089 = vxor.u32 %v3088, 2147483648
        %v3090 = vsel %vm2969, %v3089, %v3088
        %v3091 = vsub.s32 4, %v3067
        %v3092 = vsel %vm2969, %v3091, %v3067
        %v3093 = vsel %vm2968, %v471, %v3090
        %v3094 = vsel %vm2968, 0, %v3092
        %v3095 = vmul.f32 %v3093, %v3093
        %v3096 = vmul.f32 %v3095, -0.001358992
        %v3097 = vadd.f32 %v3096, 0.041655596
        %v3098 = vmul.f32 %v3095, %v3097
        %v3099 = vadd.f32 %v3098, -0.4999988
        %v3100 = vmul.f32 %v3095, %v3099
        %v3101 = vadd.f32 1.0, %v3100
        %v3102 = vmul.f32 %v3093, %v3093
        %v3103 = vmul.f32 %v3102, -0.00019511016
        %v3104 = vadd.f32 %v3103, 0.008332121
        %v3105 = vmul.f32 %v3102, %v3104
        %v3106 = vadd.f32 %v3105, -0.16666654
        %v3107 = vmul.f32 %v3102, %v3106
        %v3108 = vadd.f32 %v3107, 1.0
        %v3109 = vmul.f32 %v3108, %v3093
        %vm3110 = vweird.f32 %v471
        %v3111 = vadd.s32 %v3094, 3
        %v3112 = vand.u32 %v3111, 3
        %vm3113 = vcmp.lt.s32.totalorder %v3112, 2
        %vm3114 = vcmp.eq.s32.totalorder %v3112, 0
        %v3115 = vxor.u32 %v3109, 2147483648
        %v3116 = vsel %vm3114, %v3101, %v3115
        %vm3117 = vcmp.eq.s32.totalorder %v3112, 2
        %v3118 = vxor.u32 %v3101, 2147483648
        %v3119 = vsel %vm3117, %v3118, %v3109
        %v3120 = vsel %vm3113, %v3116, %v3119
        %v3121 = vsel %vm3110, nan, %v3120
        %v3122 = vand.u32 2147483647, %v472
        %vm3123 = vcmp.le.f32.partialorder %v3122, 0.7853982
        %vm3124 = vcmp.lt.s32.totalorder %v472, 0
        %v3125 = vand.u32 %v472, 2139095040
        %v3126 = vshrl.u32 %v3125, 23
        %v3127 = vsub.s32 %v3126, 127
        %v3128 = vand.u32 2147483647, %v472
        %v3129 = vand.u32 %v3128, 8388607
        %v3130 = vor.u32 %v3129, 8388608
        %v3131 = vsub.s32 0, %v3130
        %v3132 = vadd.s32 %v3127, 1
        %vm3133 = vcmp.gt.s32.totalorder %v3132, 0
        %v3134 = vsel %vm3133, %v3132, 0
        %v3135 = vshrl.u32 %v3134, 5
        %v3136 = vand.u32 %v3134, 31
        %v3137 = vsub.s32 32, %v3136
        %v3138 = vshrl.u32 683565275, %v3137
        %v3139 = vshll.u32 683565275, %v3136
        %v3140 = vshrl.u32 2475754826, %v3137
        %v3141 = vor.u32 %v3139, %v3140
        %v3142 = vshll.u32 2475754826, %v3136
        %v3143 = vshrl.u32 2131351028, %v3137
        %v3144 = vor.u32 %v3142, %v3143
        %v3145 = vshll.u32 2131351028, %v3136
        %v3146 = vshrl.u32 2102212464, %v3137
        %v3147 = vor.u32 %v3145, %v3146
        %v3148 = vshll.u32 2102212464, %v3136
        %v3149 = vshrl.u32 920167782, %v3137
        %v3150 = vor.u32 %v3148, %v3149
        %v3151 = vshll.u32 920167782, %v3136
        %v3152 = vshrl.u32 1326507024, %v3137
        %v3153 = vor.u32 %v3151, %v3152
        %vm3154 = vcmp.lt.s32.totalorder %v3135, 1
        %vm3155 = vcmp.lt.s32.totalorder %v3135, 2
        %vm3156 = vcmp.lt.s32.totalorder %v3135, 3
        %vm3157 = vcmp.lt.s32.totalorder %v3135, 4
        %v3158 = vsel %vm3154, %v3138, %v3141
        %v3159 = vsel %vm3157, %v3147, 2102212464
        %v3160 = vsel %vm3156, %v3144, %v3159
        %v3161 = vsel %vm3155, %v3158, %v3160
        %v3162 = vsel %vm3154, %v3141, %v3144
        %v3163 = vsel %vm3157, %v3150, 920167782
        %v3164 = vsel %vm3156, %v3147, %v3163
        %v3165 = vsel %vm3155, %v3162, %v3164
        %v3166 = vsel %vm3154, %v3144, %v3147
        %v3167 = vsel %vm3157, %v3153, 1326507024
        %v3168 = vsel %vm3156, %v3150, %v3167
        %v3169 = vsel %vm3155, %v3166, %v3168
        %v3170 = vshll.u32 %v3130, 8
        %v3171 = vand.u32 %v3170, 65535
        %v3172 = vshrl.u32 %v3170, 16
        %v3173 = vand.u32 %v3169, 65535
        %v3174 = vshrl.u32 %v3169, 16
        %v3175 = vmul.u32 %v3171, %v3173
        %v3176 = vmul.u32 %v3171, %v3174
        %v3177 = vmul.u32 %v3172, %v3173
        %v3178 = vmul.u32 %v3172, %v3174
        %v3179 = vshll.u32 %v3176, 16
        %v3180 = vshrl.u32 %v3176, 16
        %v3181 = vshll.u32 %v3177, 16
        %v3182 = vshrl.u32 %v3177, 16
        %vm3183 = vc.u32 %v3175, %v3179
        %v3184 = vsel %vm3183, 1, 0
        %v3185 = vadd.s32 %v3175, %v3179
        %v3186 = vadd.s32 %v3178, %v3184
        %vm3187 = vc.u32 %v3185, %v3181
        %v3188 = vsel %vm3187, 1, 0
        %v3189 = vadd.s32 %v3185, %v3181
        %v3190 = vadd.s32 %v3186, %v3188
        %v3191 = vadd.s32 %v3190, %v3180
        %v3192 = vadd.s32 %v3191, %v3182
        %v3193 = vand.u32 %v3170, 65535
        %v3194 = vshrl.u32 %v3170, 16
        %v3195 = vand.u32 %v3165, 65535
        %v3196 = vshrl.u32 %v3165, 16
        %v3197 = vmul.u32 %v3193, %v3195
        %v3198 = vmul.u32 %v3193, %v3196
        %v3199 = vmul.u32 %v3194, %v3195
        %v3200 = vmul.u32 %v3194, %v3196
        %v3201 = vshll.u32 %v3198, 16
        %v3202 = vshrl.u32 %v3198, 16
        %v3203 = vshll.u32 %v3199, 16
        %v3204 = vshrl.u32 %v3199, 16
        %vm3205 = vc.u32 %v3197, %v3201
        %v3206 = vsel %vm3205, 1, 0
        %v3207 = vadd.s32 %v3197, %v3201
        %v3208 = vadd.s32 %v3200, %v3206
        %vm3209 = vc.u32 %v3207, %v3203
        %v3210 = vsel %vm3209, 1, 0
        %v3211 = vadd.s32 %v3207, %v3203
        %v3212 = vadd.s32 %v3208, %v3210
        %v3213 = vadd.s32 %v3212, %v3202
        %v3214 = vadd.s32 %v3213, %v3204
        %v3215 = vmul.u32 %v3170, %v3161
        %v3216 = vadd.s32 %v3192, %v3211
        %vm3217 = vc.u32 %v3192, %v3211
        %v3218 = vadd.s32 %v3214, 1
        %v3219 = vsel %vm3217, %v3218, %v3214
        %v3220 = vadd.s32 %v3215, %v3219
        %v3221 = vadd.s32 %v3220, 536870912
        %v3222 = vshrl.u32 %v3221, 30
        %v3223 = vshll.u32 %v3222, 30
        %v3224 = vsub.s32 %v3220, %v3223
        %vm3225 = vcmp.lt.s32.totalorder %v3224, 0
        %v3226 = vsub.s32 0, %v3224
        %v3227 = vsel %vm3225, %v3226, %v3224
        %v3228 = vclz %v3227
        %v3229 = vsub.s32 %v3228, 2
        %vm3230 = vcmp.gt.s32.totalorder 0, %v3229
        %v3231 = vsel %vm3230, 0, %v3229
        %v3232 = vsub.s32 32, %v3231
        %v3233 = vshll.u32 %v3224, %v3231
        %v3234 = vshrl.u32 %v3216, %v3232
        %v3235 = vor.u32 %v3233, %v3234
        %v3236 = vsub.s32 4294967266, %v3231
        %v3237 = vadd.s32 %v3236, 127
        %v3238 = vshll.u32 %v3237, 23
        %v3239 = vor.u32 4788187, %v3238
        %v3240 = vand.u32 2147483647, %v3239
        %v3242 = vcvt.s32.f32 %v3235
        %v3243 = vmul.f32 %v3242, %v3240
        %v3244 = vxor.u32 %v3243, 2147483648
        %v3245 = vsel %vm3124, %v3244, %v3243
        %v3246 = vsub.s32 4, %v3222
        %v3247 = vsel %vm3124, %v3246, %v3222
        %v3248 = vsel %vm3123, %v472, %v3245
        %v3249 = vsel %vm3123, 0, %v3247
        %v3250 = vmul.f32 %v3248, %v3248
        %v3251 = vmul.f32 %v3250, -0.001358992
        %v3252 = vadd.f32 %v3251, 0.041655596
        %v3253 = vmul.f32 %v3250, %v3252
        %v3254 = vadd.f32 %v3253, -0.4999988
        %v3255 = vmul.f32 %v3250, %v3254
        %v3256 = vadd.f32 1.0, %v3255
        %v3257 = vmul.f32 %v3248, %v3248
        %v3258 = vmul.f32 %v3257, -0.00019511016
        %v3259 = vadd.f32 %v3258, 0.008332121
        %v3260 = vmul.f32 %v3257, %v3259
        %v3261 = vadd.f32 %v3260, -0.16666654
        %v3262 = vmul.f32 %v3257, %v3261
        %v3263 = vadd.f32 %v3262, 1.0
        %v3264 = vmul.f32 %v3263, %v3248
        %vm3265 = vweird.f32 %v472
        %v3266 = vadd.s32 %v3249, 3
        %v3267 = vand.u32 %v3266, 3
        %vm3268 = vcmp.lt.s32.totalorder %v3267, 2
        %vm3269 = vcmp.eq.s32.totalorder %v3267, 0
        %v3270 = vxor.u32 %v3264, 2147483648
        %v3271 = vsel %vm3269, %v3256, %v3270
        %vm3272 = vcmp.eq.s32.totalorder %v3267, 2
        %v3273 = vxor.u32 %v3256, 2147483648
        %v3274 = vsel %vm3272, %v3273, %v3264
        %v3275 = vsel %vm3268, %v3271, %v3274
        %v3276 = vsel %vm3265, nan, %v3275
        %v3277 = vand.u32 2147483647, %v473
        %vm3278 = vcmp.le.f32.partialorder %v3277, 0.7853982
        %vm3279 = vcmp.lt.s32.totalorder %v473, 0
        %v3280 = vand.u32 %v473, 2139095040
        %v3281 = vshrl.u32 %v3280, 23
        %v3282 = vsub.s32 %v3281, 127
        %v3283 = vand.u32 2147483647, %v473
        %v3284 = vand.u32 %v3283, 8388607
        %v3285 = vor.u32 %v3284, 8388608
        %v3286 = vsub.s32 0, %v3285
        %v3287 = vadd.s32 %v3282, 1
        %vm3288 = vcmp.gt.s32.totalorder %v3287, 0
        %v3289 = vsel %vm3288, %v3287, 0
        %v3290 = vshrl.u32 %v3289, 5
        %v3291 = vand.u32 %v3289, 31
        %v3292 = vsub.s32 32, %v3291
        %v3293 = vshrl.u32 683565275, %v3292
        %v3294 = vshll.u32 683565275, %v3291
        %v3295 = vshrl.u32 2475754826, %v3292
        %v3296 = vor.u32 %v3294, %v3295
        %v3297 = vshll.u32 2475754826, %v3291
        %v3298 = vshrl.u32 2131351028, %v3292
        %v3299 = vor.u32 %v3297, %v3298
        %v3300 = vshll.u32 2131351028, %v3291
        %v3301 = vshrl.u32 2102212464, %v3292
        %v3302 = vor.u32 %v3300, %v3301
        %v3303 = vshll.u32 2102212464, %v3291
        %v3304 = vshrl.u32 920167782, %v3292
        %v3305 = vor.u32 %v3303, %v3304
        %v3306 = vshll.u32 920167782, %v3291
        %v3307 = vshrl.u32 1326507024, %v3292
        %v3308 = vor.u32 %v3306, %v3307
        %vm3309 = vcmp.lt.s32.totalorder %v3290, 1
        %vm3310 = vcmp.lt.s32.totalorder %v3290, 2
        %vm3311 = vcmp.lt.s32.totalorder %v3290, 3
        %vm3312 = vcmp.lt.s32.totalorder %v3290, 4
        %v3313 = vsel %vm3309, %v3293, %v3296
        %v3314 = vsel %vm3312, %v3302, 2102212464
        %v3315 = vsel %vm3311, %v3299, %v3314
        %v3316 = vsel %vm3310, %v3313, %v3315
        %v3317 = vsel %vm3309, %v3296, %v3299
        %v3318 = vsel %vm3312, %v3305, 920167782
        %v3319 = vsel %vm3311, %v3302, %v3318
        %v3320 = vsel %vm3310, %v3317, %v3319
        %v3321 = vsel %vm3309, %v3299, %v3302
        %v3322 = vsel %vm3312, %v3308, 1326507024
        %v3323 = vsel %vm3311, %v3305, %v3322
        %v3324 = vsel %vm3310, %v3321, %v3323
        %v3325 = vshll.u32 %v3285, 8
        %v3326 = vand.u32 %v3325, 65535
        %v3327 = vshrl.u32 %v3325, 16
        %v3328 = vand.u32 %v3324, 65535
        %v3329 = vshrl.u32 %v3324, 16
        %v3330 = vmul.u32 %v3326, %v3328
        %v3331 = vmul.u32 %v3326, %v3329
        %v3332 = vmul.u32 %v3327, %v3328
        %v3333 = vmul.u32 %v3327, %v3329
        %v3334 = vshll.u32 %v3331, 16
        %v3335 = vshrl.u32 %v3331, 16
        %v3336 = vshll.u32 %v3332, 16
        %v3337 = vshrl.u32 %v3332, 16
        %vm3338 = vc.u32 %v3330, %v3334
        %v3339 = vsel %vm3338, 1, 0
        %v3340 = vadd.s32 %v3330, %v3334
        %v3341 = vadd.s32 %v3333, %v3339
        %vm3342 = vc.u32 %v3340, %v3336
        %v3343 = vsel %vm3342, 1, 0
        %v3344 = vadd.s32 %v3340, %v3336
        %v3345 = vadd.s32 %v3341, %v3343
        %v3346 = vadd.s32 %v3345, %v3335
        %v3347 = vadd.s32 %v3346, %v3337
        %v3348 = vand.u32 %v3325, 65535
        %v3349 = vshrl.u32 %v3325, 16
        %v3350 = vand.u32 %v3320, 65535
        %v3351 = vshrl.u32 %v3320, 16
        %v3352 = vmul.u32 %v3348, %v3350
        %v3353 = vmul.u32 %v3348, %v3351
        %v3354 = vmul.u32 %v3349, %v3350
        %v3355 = vmul.u32 %v3349, %v3351
        %v3356 = vshll.u32 %v3353, 16
        %v3357 = vshrl.u32 %v3353, 16
        %v3358 = vshll.u32 %v3354, 16
        %v3359 = vshrl.u32 %v3354, 16
        %vm3360 = vc.u32 %v3352, %v3356
        %v3361 = vsel %vm3360, 1, 0
        %v3362 = vadd.s32 %v3352, %v3356
        %v3363 = vadd.s32 %v3355, %v3361
        %vm3364 = vc.u32 %v3362, %v3358
        %v3365 = vsel %vm3364, 1, 0
        %v3366 = vadd.s32 %v3362, %v3358
        %v3367 = vadd.s32 %v3363, %v3365
        %v3368 = vadd.s32 %v3367, %v3357
        %v3369 = vadd.s32 %v3368, %v3359
        %v3370 = vmul.u32 %v3325, %v3316
        %v3371 = vadd.s32 %v3347, %v3366
        %vm3372 = vc.u32 %v3347, %v3366
        %v3373 = vadd.s32 %v3369, 1
        %v3374 = vsel %vm3372, %v3373, %v3369
        %v3375 = vadd.s32 %v3370, %v3374
        %v3376 = vadd.s32 %v3375, 536870912
        %v3377 = vshrl.u32 %v3376, 30
        %v3378 = vshll.u32 %v3377, 30
        %v3379 = vsub.s32 %v3375, %v3378
        %vm3380 = vcmp.lt.s32.totalorder %v3379, 0
        %v3381 = vsub.s32 0, %v3379
        %v3382 = vsel %vm3380, %v3381, %v3379
        %v3383 = vclz %v3382
        %v3384 = vsub.s32 %v3383, 2
        %vm3385 = vcmp.gt.s32.totalorder 0, %v3384
        %v3386 = vsel %vm3385, 0, %v3384
        %v3387 = vsub.s32 32, %v3386
        %v3388 = vshll.u32 %v3379, %v3386
        %v3389 = vshrl.u32 %v3371, %v3387
        %v3390 = vor.u32 %v3388, %v3389
        %v3391 = vsub.s32 4294967266, %v3386
        %v3392 = vadd.s32 %v3391, 127
        %v3393 = vshll.u32 %v3392, 23
        %v3394 = vor.u32 4788187, %v3393
        %v3395 = vand.u32 2147483647, %v3394
        %v3397 = vcvt.s32.f32 %v3390
        %v3398 = vmul.f32 %v3397, %v3395
        %v3399 = vxor.u32 %v3398, 2147483648
        %v3400 = vsel %vm3279, %v3399, %v3398
        %v3401 = vsub.s32 4, %v3377
        %v3402 = vsel %vm3279, %v3401, %v3377
        %v3403 = vsel %vm3278, %v473, %v3400
        %v3404 = vsel %vm3278, 0, %v3402
        %v3405 = vmul.f32 %v3403, %v3403
        %v3406 = vmul.f32 %v3405, -0.001358992
        %v3407 = vadd.f32 %v3406, 0.041655596
        %v3408 = vmul.f32 %v3405, %v3407
        %v3409 = vadd.f32 %v3408, -0.4999988
        %v3410 = vmul.f32 %v3405, %v3409
        %v3411 = vadd.f32 1.0, %v3410
        %v3412 = vmul.f32 %v3403, %v3403
        %v3413 = vmul.f32 %v3412, -0.00019511016
        %v3414 = vadd.f32 %v3413, 0.008332121
        %v3415 = vmul.f32 %v3412, %v3414
        %v3416 = vadd.f32 %v3415, -0.16666654
        %v3417 = vmul.f32 %v3412, %v3416
        %v3418 = vadd.f32 %v3417, 1.0
        %v3419 = vmul.f32 %v3418, %v3403
        %vm3420 = vweird.f32 %v473
        %v3421 = vadd.s32 %v3404, 3
        %v3422 = vand.u32 %v3421, 3
        %vm3423 = vcmp.lt.s32.totalorder %v3422, 2
        %vm3424 = vcmp.eq.s32.totalorder %v3422, 0
        %v3425 = vxor.u32 %v3419, 2147483648
        %v3426 = vsel %vm3424, %v3411, %v3425
        %vm3427 = vcmp.eq.s32.totalorder %v3422, 2
        %v3428 = vxor.u32 %v3411, 2147483648
        %v3429 = vsel %vm3427, %v3428, %v3419
        %v3430 = vsel %vm3423, %v3426, %v3429
        %v3431 = vsel %vm3420, nan, %v3430
        %v3432 = vand.u32 2147483647, %v474
        %vm3433 = vcmp.le.f32.partialorder %v3432, 0.7853982
        %vm3434 = vcmp.lt.s32.totalorder %v474, 0
        %v3435 = vand.u32 %v474, 2139095040
        %v3436 = vshrl.u32 %v3435, 23
        %v3437 = vsub.s32 %v3436, 127
        %v3438 = vand.u32 2147483647, %v474
        %v3439 = vand.u32 %v3438, 8388607
        %v3440 = vor.u32 %v3439, 8388608
        %v3441 = vsub.s32 0, %v3440
        %v3442 = vadd.s32 %v3437, 1
        %vm3443 = vcmp.gt.s32.totalorder %v3442, 0
        %v3444 = vsel %vm3443, %v3442, 0
        %v3445 = vshrl.u32 %v3444, 5
        %v3446 = vand.u32 %v3444, 31
        %v3447 = vsub.s32 32, %v3446
        %v3448 = vshrl.u32 683565275, %v3447
        %v3449 = vshll.u32 683565275, %v3446
        %v3450 = vshrl.u32 2475754826, %v3447
        %v3451 = vor.u32 %v3449, %v3450
        %v3452 = vshll.u32 2475754826, %v3446
        %v3453 = vshrl.u32 2131351028, %v3447
        %v3454 = vor.u32 %v3452, %v3453
        %v3455 = vshll.u32 2131351028, %v3446
        %v3456 = vshrl.u32 2102212464, %v3447
        %v3457 = vor.u32 %v3455, %v3456
        %v3458 = vshll.u32 2102212464, %v3446
        %v3459 = vshrl.u32 920167782, %v3447
        %v3460 = vor.u32 %v3458, %v3459
        %v3461 = vshll.u32 920167782, %v3446
        %v3462 = vshrl.u32 1326507024, %v3447
        %v3463 = vor.u32 %v3461, %v3462
        %vm3464 = vcmp.lt.s32.totalorder %v3445, 1
        %vm3465 = vcmp.lt.s32.totalorder %v3445, 2
        %vm3466 = vcmp.lt.s32.totalorder %v3445, 3
        %vm3467 = vcmp.lt.s32.totalorder %v3445, 4
        %v3468 = vsel %vm3464, %v3448, %v3451
        %v3469 = vsel %vm3467, %v3457, 2102212464
        %v3470 = vsel %vm3466, %v3454, %v3469
        %v3471 = vsel %vm3465, %v3468, %v3470
        %v3472 = vsel %vm3464, %v3451, %v3454
        %v3473 = vsel %vm3467, %v3460, 920167782
        %v3474 = vsel %vm3466, %v3457, %v3473
        %v3475 = vsel %vm3465, %v3472, %v3474
        %v3476 = vsel %vm3464, %v3454, %v3457
        %v3477 = vsel %vm3467, %v3463, 1326507024
        %v3478 = vsel %vm3466, %v3460, %v3477
        %v3479 = vsel %vm3465, %v3476, %v3478
        %v3480 = vshll.u32 %v3440, 8
        %v3481 = vand.u32 %v3480, 65535
        %v3482 = vshrl.u32 %v3480, 16
        %v3483 = vand.u32 %v3479, 65535
        %v3484 = vshrl.u32 %v3479, 16
        %v3485 = vmul.u32 %v3481, %v3483
        %v3486 = vmul.u32 %v3481, %v3484
        %v3487 = vmul.u32 %v3482, %v3483
        %v3488 = vmul.u32 %v3482, %v3484
        %v3489 = vshll.u32 %v3486, 16
        %v3490 = vshrl.u32 %v3486, 16
        %v3491 = vshll.u32 %v3487, 16
        %v3492 = vshrl.u32 %v3487, 16
        %vm3493 = vc.u32 %v3485, %v3489
        %v3494 = vsel %vm3493, 1, 0
        %v3495 = vadd.s32 %v3485, %v3489
        %v3496 = vadd.s32 %v3488, %v3494
        %vm3497 = vc.u32 %v3495, %v3491
        %v3498 = vsel %vm3497, 1, 0
        %v3499 = vadd.s32 %v3495, %v3491
        %v3500 = vadd.s32 %v3496, %v3498
        %v3501 = vadd.s32 %v3500, %v3490
        %v3502 = vadd.s32 %v3501, %v3492
        %v3503 = vand.u32 %v3480, 65535
        %v3504 = vshrl.u32 %v3480, 16
        %v3505 = vand.u32 %v3475, 65535
        %v3506 = vshrl.u32 %v3475, 16
        %v3507 = vmul.u32 %v3503, %v3505
        %v3508 = vmul.u32 %v3503, %v3506
        %v3509 = vmul.u32 %v3504, %v3505
        %v3510 = vmul.u32 %v3504, %v3506
        %v3511 = vshll.u32 %v3508, 16
        %v3512 = vshrl.u32 %v3508, 16
        %v3513 = vshll.u32 %v3509, 16
        %v3514 = vshrl.u32 %v3509, 16
        %vm3515 = vc.u32 %v3507, %v3511
        %v3516 = vsel %vm3515, 1, 0
        %v3517 = vadd.s32 %v3507, %v3511
        %v3518 = vadd.s32 %v3510, %v3516
        %vm3519 = vc.u32 %v3517, %v3513
        %v3520 = vsel %vm3519, 1, 0
        %v3521 = vadd.s32 %v3517, %v3513
        %v3522 = vadd.s32 %v3518, %v3520
        %v3523 = vadd.s32 %v3522, %v3512
        %v3524 = vadd.s32 %v3523, %v3514
        %v3525 = vmul.u32 %v3480, %v3471
        %v3526 = vadd.s32 %v3502, %v3521
        %vm3527 = vc.u32 %v3502, %v3521
        %v3528 = vadd.s32 %v3524, 1
        %v3529 = vsel %vm3527, %v3528, %v3524
        %v3530 = vadd.s32 %v3525, %v3529
        %v3531 = vadd.s32 %v3530, 536870912
        %v3532 = vshrl.u32 %v3531, 30
        %v3533 = vshll.u32 %v3532, 30
        %v3534 = vsub.s32 %v3530, %v3533
        %vm3535 = vcmp.lt.s32.totalorder %v3534, 0
        %v3536 = vsub.s32 0, %v3534
        %v3537 = vsel %vm3535, %v3536, %v3534
        %v3538 = vclz %v3537
        %v3539 = vsub.s32 %v3538, 2
        %vm3540 = vcmp.gt.s32.totalorder 0, %v3539
        %v3541 = vsel %vm3540, 0, %v3539
        %v3542 = vsub.s32 32, %v3541
        %v3543 = vshll.u32 %v3534, %v3541
        %v3544 = vshrl.u32 %v3526, %v3542
        %v3545 = vor.u32 %v3543, %v3544
        %v3546 = vsub.s32 4294967266, %v3541
        %v3547 = vadd.s32 %v3546, 127
        %v3548 = vshll.u32 %v3547, 23
        %v3549 = vor.u32 4788187, %v3548
        %v3550 = vand.u32 2147483647, %v3549
        %v3552 = vcvt.s32.f32 %v3545
        %v3553 = vmul.f32 %v3552, %v3550
        %v3554 = vxor.u32 %v3553, 2147483648
        %v3555 = vsel %vm3434, %v3554, %v3553
        %v3556 = vsub.s32 4, %v3532
        %v3557 = vsel %vm3434, %v3556, %v3532
        %v3558 = vsel %vm3433, %v474, %v3555
        %v3559 = vsel %vm3433, 0, %v3557
        %v3560 = vmul.f32 %v3558, %v3558
        %v3561 = vmul.f32 %v3560, -0.001358992
        %v3562 = vadd.f32 %v3561, 0.041655596
        %v3563 = vmul.f32 %v3560, %v3562
        %v3564 = vadd.f32 %v3563, -0.4999988
        %v3565 = vmul.f32 %v3560, %v3564
        %v3566 = vadd.f32 1.0, %v3565
        %v3567 = vmul.f32 %v3558, %v3558
        %v3568 = vmul.f32 %v3567, -0.00019511016
        %v3569 = vadd.f32 %v3568, 0.008332121
        %v3570 = vmul.f32 %v3567, %v3569
        %v3571 = vadd.f32 %v3570, -0.16666654
        %v3572 = vmul.f32 %v3567, %v3571
        %v3573 = vadd.f32 %v3572, 1.0
        %v3574 = vmul.f32 %v3573, %v3558
        %vm3575 = vweird.f32 %v474
        %v3576 = vadd.s32 %v3559, 3
        %v3577 = vand.u32 %v3576, 3
        %vm3578 = vcmp.lt.s32.totalorder %v3577, 2
        %vm3579 = vcmp.eq.s32.totalorder %v3577, 0
        %v3580 = vxor.u32 %v3574, 2147483648
        %v3581 = vsel %vm3579, %v3566, %v3580
        %vm3582 = vcmp.eq.s32.totalorder %v3577, 2
        %v3583 = vxor.u32 %v3566, 2147483648
        %v3584 = vsel %vm3582, %v3583, %v3574
        %v3585 = vsel %vm3578, %v3581, %v3584
        %v3586 = vsel %vm3575, nan, %v3585
        %v3587 = vand.u32 2147483647, %v475
        %vm3588 = vcmp.le.f32.partialorder %v3587, 0.7853982
        %vm3589 = vcmp.lt.s32.totalorder %v475, 0
        %v3590 = vand.u32 %v475, 2139095040
        %v3591 = vshrl.u32 %v3590, 23
        %v3592 = vsub.s32 %v3591, 127
        %v3593 = vand.u32 2147483647, %v475
        %v3594 = vand.u32 %v3593, 8388607
        %v3595 = vor.u32 %v3594, 8388608
        %v3596 = vsub.s32 0, %v3595
        %v3597 = vadd.s32 %v3592, 1
        %vm3598 = vcmp.gt.s32.totalorder %v3597, 0
        %v3599 = vsel %vm3598, %v3597, 0
        %v3600 = vshrl.u32 %v3599, 5
        %v3601 = vand.u32 %v3599, 31
        %v3602 = vsub.s32 32, %v3601
        %v3603 = vshrl.u32 683565275, %v3602
        %v3604 = vshll.u32 683565275, %v3601
        %v3605 = vshrl.u32 2475754826, %v3602
        %v3606 = vor.u32 %v3604, %v3605
        %v3607 = vshll.u32 2475754826, %v3601
        %v3608 = vshrl.u32 2131351028, %v3602
        %v3609 = vor.u32 %v3607, %v3608
        %v3610 = vshll.u32 2131351028, %v3601
        %v3611 = vshrl.u32 2102212464, %v3602
        %v3612 = vor.u32 %v3610, %v3611
        %v3613 = vshll.u32 2102212464, %v3601
        %v3614 = vshrl.u32 920167782, %v3602
        %v3615 = vor.u32 %v3613, %v3614
        %v3616 = vshll.u32 920167782, %v3601
        %v3617 = vshrl.u32 1326507024, %v3602
        %v3618 = vor.u32 %v3616, %v3617
        %vm3619 = vcmp.lt.s32.totalorder %v3600, 1
        %vm3620 = vcmp.lt.s32.totalorder %v3600, 2
        %vm3621 = vcmp.lt.s32.totalorder %v3600, 3
        %vm3622 = vcmp.lt.s32.totalorder %v3600, 4
        %v3623 = vsel %vm3619, %v3603, %v3606
        %v3624 = vsel %vm3622, %v3612, 2102212464
        %v3625 = vsel %vm3621, %v3609, %v3624
        %v3626 = vsel %vm3620, %v3623, %v3625
        %v3627 = vsel %vm3619, %v3606, %v3609
        %v3628 = vsel %vm3622, %v3615, 920167782
        %v3629 = vsel %vm3621, %v3612, %v3628
        %v3630 = vsel %vm3620, %v3627, %v3629
        %v3631 = vsel %vm3619, %v3609, %v3612
        %v3632 = vsel %vm3622, %v3618, 1326507024
        %v3633 = vsel %vm3621, %v3615, %v3632
        %v3634 = vsel %vm3620, %v3631, %v3633
        %v3635 = vshll.u32 %v3595, 8
        %v3636 = vand.u32 %v3635, 65535
        %v3637 = vshrl.u32 %v3635, 16
        %v3638 = vand.u32 %v3634, 65535
        %v3639 = vshrl.u32 %v3634, 16
        %v3640 = vmul.u32 %v3636, %v3638
        %v3641 = vmul.u32 %v3636, %v3639
        %v3642 = vmul.u32 %v3637, %v3638
        %v3643 = vmul.u32 %v3637, %v3639
        %v3644 = vshll.u32 %v3641, 16
        %v3645 = vshrl.u32 %v3641, 16
        %v3646 = vshll.u32 %v3642, 16
        %v3647 = vshrl.u32 %v3642, 16
        %vm3648 = vc.u32 %v3640, %v3644
        %v3649 = vsel %vm3648, 1, 0
        %v3650 = vadd.s32 %v3640, %v3644
        %v3651 = vadd.s32 %v3643, %v3649
        %vm3652 = vc.u32 %v3650, %v3646
        %v3653 = vsel %vm3652, 1, 0
        %v3654 = vadd.s32 %v3650, %v3646
        %v3655 = vadd.s32 %v3651, %v3653
        %v3656 = vadd.s32 %v3655, %v3645
        %v3657 = vadd.s32 %v3656, %v3647
        %v3658 = vand.u32 %v3635, 65535
        %v3659 = vshrl.u32 %v3635, 16
        %v3660 = vand.u32 %v3630, 65535
        %v3661 = vshrl.u32 %v3630, 16
        %v3662 = vmul.u32 %v3658, %v3660
        %v3663 = vmul.u32 %v3658, %v3661
        %v3664 = vmul.u32 %v3659, %v3660
        %v3665 = vmul.u32 %v3659, %v3661
        %v3666 = vshll.u32 %v3663, 16
        %v3667 = vshrl.u32 %v3663, 16
        %v3668 = vshll.u32 %v3664, 16
        %v3669 = vshrl.u32 %v3664, 16
        %vm3670 = vc.u32 %v3662, %v3666
        %v3671 = vsel %vm3670, 1, 0
        %v3672 = vadd.s32 %v3662, %v3666
        %v3673 = vadd.s32 %v3665, %v3671
        %vm3674 = vc.u32 %v3672, %v3668
        %v3675 = vsel %vm3674, 1, 0
        %v3676 = vadd.s32 %v3672, %v3668
        %v3677 = vadd.s32 %v3673, %v3675
        %v3678 = vadd.s32 %v3677, %v3667
        %v3679 = vadd.s32 %v3678, %v3669
        %v3680 = vmul.u32 %v3635, %v3626
        %v3681 = vadd.s32 %v3657, %v3676
        %vm3682 = vc.u32 %v3657, %v3676
        %v3683 = vadd.s32 %v3679, 1
        %v3684 = vsel %vm3682, %v3683, %v3679
        %v3685 = vadd.s32 %v3680, %v3684
        %v3686 = vadd.s32 %v3685, 536870912
        %v3687 = vshrl.u32 %v3686, 30
        %v3688 = vshll.u32 %v3687, 30
        %v3689 = vsub.s32 %v3685, %v3688
        %vm3690 = vcmp.lt.s32.totalorder %v3689, 0
        %v3691 = vsub.s32 0, %v3689
        %v3692 = vsel %vm3690, %v3691, %v3689
        %v3693 = vclz %v3692
        %v3694 = vsub.s32 %v3693, 2
        %vm3695 = vcmp.gt.s32.totalorder 0, %v3694
        %v3696 = vsel %vm3695, 0, %v3694
        %v3697 = vsub.s32 32, %v3696
        %v3698 = vshll.u32 %v3689, %v3696
        %v3699 = vshrl.u32 %v3681, %v3697
        %v3700 = vor.u32 %v3698, %v3699
        %v3701 = vsub.s32 4294967266, %v3696
        %v3702 = vadd.s32 %v3701, 127
        %v3703 = vshll.u32 %v3702, 23
        %v3704 = vor.u32 4788187, %v3703
        %v3705 = vand.u32 2147483647, %v3704
        %v3707 = vcvt.s32.f32 %v3700
        %v3708 = vmul.f32 %v3707, %v3705
        %v3709 = vxor.u32 %v3708, 2147483648
        %v3710 = vsel %vm3589, %v3709, %v3708
        %v3711 = vsub.s32 4, %v3687
        %v3712 = vsel %vm3589, %v3711, %v3687
        %v3713 = vsel %vm3588, %v475, %v3710
        %v3714 = vsel %vm3588, 0, %v3712
        %v3715 = vmul.f32 %v3713, %v3713
        %v3716 = vmul.f32 %v3715, -0.001358992
        %v3717 = vadd.f32 %v3716, 0.041655596
        %v3718 = vmul.f32 %v3715, %v3717
        %v3719 = vadd.f32 %v3718, -0.4999988
        %v3720 = vmul.f32 %v3715, %v3719
        %v3721 = vadd.f32 1.0, %v3720
        %v3722 = vmul.f32 %v3713, %v3713
        %v3723 = vmul.f32 %v3722, -0.00019511016
        %v3724 = vadd.f32 %v3723, 0.008332121
        %v3725 = vmul.f32 %v3722, %v3724
        %v3726 = vadd.f32 %v3725, -0.16666654
        %v3727 = vmul.f32 %v3722, %v3726
        %v3728 = vadd.f32 %v3727, 1.0
        %v3729 = vmul.f32 %v3728, %v3713
        %vm3730 = vweird.f32 %v475
        %v3731 = vadd.s32 %v3714, 3
        %v3732 = vand.u32 %v3731, 3
        %vm3733 = vcmp.lt.s32.totalorder %v3732, 2
        %vm3734 = vcmp.eq.s32.totalorder %v3732, 0
        %v3735 = vxor.u32 %v3729, 2147483648
        %v3736 = vsel %vm3734, %v3721, %v3735
        %vm3737 = vcmp.eq.s32.totalorder %v3732, 2
        %v3738 = vxor.u32 %v3721, 2147483648
        %v3739 = vsel %vm3737, %v3738, %v3729
        %v3740 = vsel %vm3733, %v3736, %v3739
        %v3741 = vsel %vm3730, nan, %v3740
        %v3742 = vand.u32 2147483647, %v476
        %vm3743 = vcmp.le.f32.partialorder %v3742, 0.7853982
        %vm3744 = vcmp.lt.s32.totalorder %v476, 0
        %v3745 = vand.u32 %v476, 2139095040
        %v3746 = vshrl.u32 %v3745, 23
        %v3747 = vsub.s32 %v3746, 127
        %v3748 = vand.u32 2147483647, %v476
        %v3749 = vand.u32 %v3748, 8388607
        %v3750 = vor.u32 %v3749, 8388608
        %v3751 = vsub.s32 0, %v3750
        %v3752 = vadd.s32 %v3747, 1
        %vm3753 = vcmp.gt.s32.totalorder %v3752, 0
        %v3754 = vsel %vm3753, %v3752, 0
        %v3755 = vshrl.u32 %v3754, 5
        %v3756 = vand.u32 %v3754, 31
        %v3757 = vsub.s32 32, %v3756
        %v3758 = vshrl.u32 683565275, %v3757
        %v3759 = vshll.u32 683565275, %v3756
        %v3760 = vshrl.u32 2475754826, %v3757
        %v3761 = vor.u32 %v3759, %v3760
        %v3762 = vshll.u32 2475754826, %v3756
        %v3763 = vshrl.u32 2131351028, %v3757
        %v3764 = vor.u32 %v3762, %v3763
        %v3765 = vshll.u32 2131351028, %v3756
        %v3766 = vshrl.u32 2102212464, %v3757
        %v3767 = vor.u32 %v3765, %v3766
        %v3768 = vshll.u32 2102212464, %v3756
        %v3769 = vshrl.u32 920167782, %v3757
        %v3770 = vor.u32 %v3768, %v3769
        %v3771 = vshll.u32 920167782, %v3756
        %v3772 = vshrl.u32 1326507024, %v3757
        %v3773 = vor.u32 %v3771, %v3772
        %vm3774 = vcmp.lt.s32.totalorder %v3755, 1
        %vm3775 = vcmp.lt.s32.totalorder %v3755, 2
        %vm3776 = vcmp.lt.s32.totalorder %v3755, 3
        %vm3777 = vcmp.lt.s32.totalorder %v3755, 4
        %v3778 = vsel %vm3774, %v3758, %v3761
        %v3779 = vsel %vm3777, %v3767, 2102212464
        %v3780 = vsel %vm3776, %v3764, %v3779
        %v3781 = vsel %vm3775, %v3778, %v3780
        %v3782 = vsel %vm3774, %v3761, %v3764
        %v3783 = vsel %vm3777, %v3770, 920167782
        %v3784 = vsel %vm3776, %v3767, %v3783
        %v3785 = vsel %vm3775, %v3782, %v3784
        %v3786 = vsel %vm3774, %v3764, %v3767
        %v3787 = vsel %vm3777, %v3773, 1326507024
        %v3788 = vsel %vm3776, %v3770, %v3787
        %v3789 = vsel %vm3775, %v3786, %v3788
        %v3790 = vshll.u32 %v3750, 8
        %v3791 = vand.u32 %v3790, 65535
        %v3792 = vshrl.u32 %v3790, 16
        %v3793 = vand.u32 %v3789, 65535
        %v3794 = vshrl.u32 %v3789, 16
        %v3795 = vmul.u32 %v3791, %v3793
        %v3796 = vmul.u32 %v3791, %v3794
        %v3797 = vmul.u32 %v3792, %v3793
        %v3798 = vmul.u32 %v3792, %v3794
        %v3799 = vshll.u32 %v3796, 16
        %v3800 = vshrl.u32 %v3796, 16
        %v3801 = vshll.u32 %v3797, 16
        %v3802 = vshrl.u32 %v3797, 16
        %vm3803 = vc.u32 %v3795, %v3799
        %v3804 = vsel %vm3803, 1, 0
        %v3805 = vadd.s32 %v3795, %v3799
        %v3806 = vadd.s32 %v3798, %v3804
        %vm3807 = vc.u32 %v3805, %v3801
        %v3808 = vsel %vm3807, 1, 0
        %v3809 = vadd.s32 %v3805, %v3801
        %v3810 = vadd.s32 %v3806, %v3808
        %v3811 = vadd.s32 %v3810, %v3800
        %v3812 = vadd.s32 %v3811, %v3802
        %v3813 = vand.u32 %v3790, 65535
        %v3814 = vshrl.u32 %v3790, 16
        %v3815 = vand.u32 %v3785, 65535
        %v3816 = vshrl.u32 %v3785, 16
        %v3817 = vmul.u32 %v3813, %v3815
        %v3818 = vmul.u32 %v3813, %v3816
        %v3819 = vmul.u32 %v3814, %v3815
        %v3820 = vmul.u32 %v3814, %v3816
        %v3821 = vshll.u32 %v3818, 16
        %v3822 = vshrl.u32 %v3818, 16
        %v3823 = vshll.u32 %v3819, 16
        %v3824 = vshrl.u32 %v3819, 16
        %vm3825 = vc.u32 %v3817, %v3821
        %v3826 = vsel %vm3825, 1, 0
        %v3827 = vadd.s32 %v3817, %v3821
        %v3828 = vadd.s32 %v3820, %v3826
        %vm3829 = vc.u32 %v3827, %v3823
        %v3830 = vsel %vm3829, 1, 0
        %v3831 = vadd.s32 %v3827, %v3823
        %v3832 = vadd.s32 %v3828, %v3830
        %v3833 = vadd.s32 %v3832, %v3822
        %v3834 = vadd.s32 %v3833, %v3824
        %v3835 = vmul.u32 %v3790, %v3781
        %v3836 = vadd.s32 %v3812, %v3831
        %vm3837 = vc.u32 %v3812, %v3831
        %v3838 = vadd.s32 %v3834, 1
        %v3839 = vsel %vm3837, %v3838, %v3834
        %v3840 = vadd.s32 %v3835, %v3839
        %v3841 = vadd.s32 %v3840, 536870912
        %v3842 = vshrl.u32 %v3841, 30
        %v3843 = vshll.u32 %v3842, 30
        %v3844 = vsub.s32 %v3840, %v3843
        %vm3845 = vcmp.lt.s32.totalorder %v3844, 0
        %v3846 = vsub.s32 0, %v3844
        %v3847 = vsel %vm3845, %v3846, %v3844
        %v3848 = vclz %v3847
        %v3849 = vsub.s32 %v3848, 2
        %vm3850 = vcmp.gt.s32.totalorder 0, %v3849
        %v3851 = vsel %vm3850, 0, %v3849
        %v3852 = vsub.s32 32, %v3851
        %v3853 = vshll.u32 %v3844, %v3851
        %v3854 = vshrl.u32 %v3836, %v3852
        %v3855 = vor.u32 %v3853, %v3854
        %v3856 = vsub.s32 4294967266, %v3851
        %v3857 = vadd.s32 %v3856, 127
        %v3858 = vshll.u32 %v3857, 23
        %v3859 = vor.u32 4788187, %v3858
        %v3860 = vand.u32 2147483647, %v3859
        %v3862 = vcvt.s32.f32 %v3855
        %v3863 = vmul.f32 %v3862, %v3860
        %v3864 = vxor.u32 %v3863, 2147483648
        %v3865 = vsel %vm3744, %v3864, %v3863
        %v3866 = vsub.s32 4, %v3842
        %v3867 = vsel %vm3744, %v3866, %v3842
        %v3868 = vsel %vm3743, %v476, %v3865
        %v3869 = vsel %vm3743, 0, %v3867
        %v3870 = vmul.f32 %v3868, %v3868
        %v3871 = vmul.f32 %v3870, -0.001358992
        %v3872 = vadd.f32 %v3871, 0.041655596
        %v3873 = vmul.f32 %v3870, %v3872
        %v3874 = vadd.f32 %v3873, -0.4999988
        %v3875 = vmul.f32 %v3870, %v3874
        %v3876 = vadd.f32 1.0, %v3875
        %v3877 = vmul.f32 %v3868, %v3868
        %v3878 = vmul.f32 %v3877, -0.00019511016
        %v3879 = vadd.f32 %v3878, 0.008332121
        %v3880 = vmul.f32 %v3877, %v3879
        %v3881 = vadd.f32 %v3880, -0.16666654
        %v3882 = vmul.f32 %v3877, %v3881
        %v3883 = vadd.f32 %v3882, 1.0
        %v3884 = vmul.f32 %v3883, %v3868
        %vm3885 = vweird.f32 %v476
        %v3886 = vadd.s32 %v3869, 3
        %v3887 = vand.u32 %v3886, 3
        %vm3888 = vcmp.lt.s32.totalorder %v3887, 2
        %vm3889 = vcmp.eq.s32.totalorder %v3887, 0
        %v3890 = vxor.u32 %v3884, 2147483648
        %v3891 = vsel %vm3889, %v3876, %v3890
        %vm3892 = vcmp.eq.s32.totalorder %v3887, 2
        %v3893 = vxor.u32 %v3876, 2147483648
        %v3894 = vsel %vm3892, %v3893, %v3884
        %v3895 = vsel %vm3888, %v3891, %v3894
        %v3896 = vsel %vm3885, nan, %v3895
        %v3897 = vand.u32 2147483647, %v477
        %vm3898 = vcmp.le.f32.partialorder %v3897, 0.7853982
        %vm3899 = vcmp.lt.s32.totalorder %v477, 0
        %v3900 = vand.u32 %v477, 2139095040
        %v3901 = vshrl.u32 %v3900, 23
        %v3902 = vsub.s32 %v3901, 127
        %v3903 = vand.u32 2147483647, %v477
        %v3904 = vand.u32 %v3903, 8388607
        %v3905 = vor.u32 %v3904, 8388608
        %v3906 = vsub.s32 0, %v3905
        %v3907 = vadd.s32 %v3902, 1
        %vm3908 = vcmp.gt.s32.totalorder %v3907, 0
        %v3909 = vsel %vm3908, %v3907, 0
        %v3910 = vshrl.u32 %v3909, 5
        %v3911 = vand.u32 %v3909, 31
        %v3912 = vsub.s32 32, %v3911
        %v3913 = vshrl.u32 683565275, %v3912
        %v3914 = vshll.u32 683565275, %v3911
        %v3915 = vshrl.u32 2475754826, %v3912
        %v3916 = vor.u32 %v3914, %v3915
        %v3917 = vshll.u32 2475754826, %v3911
        %v3918 = vshrl.u32 2131351028, %v3912
        %v3919 = vor.u32 %v3917, %v3918
        %v3920 = vshll.u32 2131351028, %v3911
        %v3921 = vshrl.u32 2102212464, %v3912
        %v3922 = vor.u32 %v3920, %v3921
        %v3923 = vshll.u32 2102212464, %v3911
        %v3924 = vshrl.u32 920167782, %v3912
        %v3925 = vor.u32 %v3923, %v3924
        %v3926 = vshll.u32 920167782, %v3911
        %v3927 = vshrl.u32 1326507024, %v3912
        %v3928 = vor.u32 %v3926, %v3927
        %vm3929 = vcmp.lt.s32.totalorder %v3910, 1
        %vm3930 = vcmp.lt.s32.totalorder %v3910, 2
        %vm3931 = vcmp.lt.s32.totalorder %v3910, 3
        %vm3932 = vcmp.lt.s32.totalorder %v3910, 4
        %v3933 = vsel %vm3929, %v3913, %v3916
        %v3934 = vsel %vm3932, %v3922, 2102212464
        %v3935 = vsel %vm3931, %v3919, %v3934
        %v3936 = vsel %vm3930, %v3933, %v3935
        %v3937 = vsel %vm3929, %v3916, %v3919
        %v3938 = vsel %vm3932, %v3925, 920167782
        %v3939 = vsel %vm3931, %v3922, %v3938
        %v3940 = vsel %vm3930, %v3937, %v3939
        %v3941 = vsel %vm3929, %v3919, %v3922
        %v3942 = vsel %vm3932, %v3928, 1326507024
        %v3943 = vsel %vm3931, %v3925, %v3942
        %v3944 = vsel %vm3930, %v3941, %v3943
        %v3945 = vshll.u32 %v3905, 8
        %v3946 = vand.u32 %v3945, 65535
        %v3947 = vshrl.u32 %v3945, 16
        %v3948 = vand.u32 %v3944, 65535
        %v3949 = vshrl.u32 %v3944, 16
        %v3950 = vmul.u32 %v3946, %v3948
        %v3951 = vmul.u32 %v3946, %v3949
        %v3952 = vmul.u32 %v3947, %v3948
        %v3953 = vmul.u32 %v3947, %v3949
        %v3954 = vshll.u32 %v3951, 16
        %v3955 = vshrl.u32 %v3951, 16
        %v3956 = vshll.u32 %v3952, 16
        %v3957 = vshrl.u32 %v3952, 16
        %vm3958 = vc.u32 %v3950, %v3954
        %v3959 = vsel %vm3958, 1, 0
        %v3960 = vadd.s32 %v3950, %v3954
        %v3961 = vadd.s32 %v3953, %v3959
        %vm3962 = vc.u32 %v3960, %v3956
        %v3963 = vsel %vm3962, 1, 0
        %v3964 = vadd.s32 %v3960, %v3956
        %v3965 = vadd.s32 %v3961, %v3963
        %v3966 = vadd.s32 %v3965, %v3955
        %v3967 = vadd.s32 %v3966, %v3957
        %v3968 = vand.u32 %v3945, 65535
        %v3969 = vshrl.u32 %v3945, 16
        %v3970 = vand.u32 %v3940, 65535
        %v3971 = vshrl.u32 %v3940, 16
        %v3972 = vmul.u32 %v3968, %v3970
        %v3973 = vmul.u32 %v3968, %v3971
        %v3974 = vmul.u32 %v3969, %v3970
        %v3975 = vmul.u32 %v3969, %v3971
        %v3976 = vshll.u32 %v3973, 16
        %v3977 = vshrl.u32 %v3973, 16
        %v3978 = vshll.u32 %v3974, 16
        %v3979 = vshrl.u32 %v3974, 16
        %vm3980 = vc.u32 %v3972, %v3976
        %v3981 = vsel %vm3980, 1, 0
        %v3982 = vadd.s32 %v3972, %v3976
        %v3983 = vadd.s32 %v3975, %v3981
        %vm3984 = vc.u32 %v3982, %v3978
        %v3985 = vsel %vm3984, 1, 0
        %v3986 = vadd.s32 %v3982, %v3978
        %v3987 = vadd.s32 %v3983, %v3985
        %v3988 = vadd.s32 %v3987, %v3977
        %v3989 = vadd.s32 %v3988, %v3979
        %v3990 = vmul.u32 %v3945, %v3936
        %v3991 = vadd.s32 %v3967, %v3986
        %vm3992 = vc.u32 %v3967, %v3986
        %v3993 = vadd.s32 %v3989, 1
        %v3994 = vsel %vm3992, %v3993, %v3989
        %v3995 = vadd.s32 %v3990, %v3994
        %v3996 = vadd.s32 %v3995, 536870912
        %v3997 = vshrl.u32 %v3996, 30
        %v3998 = vshll.u32 %v3997, 30
        %v3999 = vsub.s32 %v3995, %v3998
        %vm4000 = vcmp.lt.s32.totalorder %v3999, 0
        %v4001 = vsub.s32 0, %v3999
        %v4002 = vsel %vm4000, %v4001, %v3999
        %v4003 = vclz %v4002
        %v4004 = vsub.s32 %v4003, 2
        %vm4005 = vcmp.gt.s32.totalorder 0, %v4004
        %v4006 = vsel %vm4005, 0, %v4004
        %v4007 = vsub.s32 32, %v4006
        %v4008 = vshll.u32 %v3999, %v4006
        %v4009 = vshrl.u32 %v3991, %v4007
        %v4010 = vor.u32 %v4008, %v4009
        %v4011 = vsub.s32 4294967266, %v4006
        %v4012 = vadd.s32 %v4011, 127
        %v4013 = vshll.u32 %v4012, 23
        %v4014 = vor.u32 4788187, %v4013
        %v4015 = vand.u32 2147483647, %v4014
        %v4017 = vcvt.s32.f32 %v4010
        %v4018 = vmul.f32 %v4017, %v4015
        %v4019 = vxor.u32 %v4018, 2147483648
        %v4020 = vsel %vm3899, %v4019, %v4018
        %v4021 = vsub.s32 4, %v3997
        %v4022 = vsel %vm3899, %v4021, %v3997
        %v4023 = vsel %vm3898, %v477, %v4020
        %v4024 = vsel %vm3898, 0, %v4022
        %v4025 = vmul.f32 %v4023, %v4023
        %v4026 = vmul.f32 %v4025, -0.001358992
        %v4027 = vadd.f32 %v4026, 0.041655596
        %v4028 = vmul.f32 %v4025, %v4027
        %v4029 = vadd.f32 %v4028, -0.4999988
        %v4030 = vmul.f32 %v4025, %v4029
        %v4031 = vadd.f32 1.0, %v4030
        %v4032 = vmul.f32 %v4023, %v4023
        %v4033 = vmul.f32 %v4032, -0.00019511016
        %v4034 = vadd.f32 %v4033, 0.008332121
        %v4035 = vmul.f32 %v4032, %v4034
        %v4036 = vadd.f32 %v4035, -0.16666654
        %v4037 = vmul.f32 %v4032, %v4036
        %v4038 = vadd.f32 %v4037, 1.0
        %v4039 = vmul.f32 %v4038, %v4023
        %vm4040 = vweird.f32 %v477
        %v4041 = vadd.s32 %v4024, 3
        %v4042 = vand.u32 %v4041, 3
        %vm4043 = vcmp.lt.s32.totalorder %v4042, 2
        %vm4044 = vcmp.eq.s32.totalorder %v4042, 0
        %v4045 = vxor.u32 %v4039, 2147483648
        %v4046 = vsel %vm4044, %v4031, %v4045
        %vm4047 = vcmp.eq.s32.totalorder %v4042, 2
        %v4048 = vxor.u32 %v4031, 2147483648
        %v4049 = vsel %vm4047, %v4048, %v4039
        %v4050 = vsel %vm4043, %v4046, %v4049
        %v4051 = vsel %vm4040, nan, %v4050
        %v4052 = vand.u32 2147483647, %v478
        %vm4053 = vcmp.le.f32.partialorder %v4052, 0.7853982
        %vm4054 = vcmp.lt.s32.totalorder %v478, 0
        %v4055 = vand.u32 %v478, 2139095040
        %v4056 = vshrl.u32 %v4055, 23
        %v4057 = vsub.s32 %v4056, 127
        %v4058 = vand.u32 2147483647, %v478
        %v4059 = vand.u32 %v4058, 8388607
        %v4060 = vor.u32 %v4059, 8388608
        %v4061 = vsub.s32 0, %v4060
        %v4062 = vadd.s32 %v4057, 1
        %vm4063 = vcmp.gt.s32.totalorder %v4062, 0
        %v4064 = vsel %vm4063, %v4062, 0
        %v4065 = vshrl.u32 %v4064, 5
        %v4066 = vand.u32 %v4064, 31
        %v4067 = vsub.s32 32, %v4066
        %v4068 = vshrl.u32 683565275, %v4067
        %v4069 = vshll.u32 683565275, %v4066
        %v4070 = vshrl.u32 2475754826, %v4067
        %v4071 = vor.u32 %v4069, %v4070
        %v4072 = vshll.u32 2475754826, %v4066
        %v4073 = vshrl.u32 2131351028, %v4067
        %v4074 = vor.u32 %v4072, %v4073
        %v4075 = vshll.u32 2131351028, %v4066
        %v4076 = vshrl.u32 2102212464, %v4067
        %v4077 = vor.u32 %v4075, %v4076
        %v4078 = vshll.u32 2102212464, %v4066
        %v4079 = vshrl.u32 920167782, %v4067
        %v4080 = vor.u32 %v4078, %v4079
        %v4081 = vshll.u32 920167782, %v4066
        %v4082 = vshrl.u32 1326507024, %v4067
        %v4083 = vor.u32 %v4081, %v4082
        %vm4084 = vcmp.lt.s32.totalorder %v4065, 1
        %vm4085 = vcmp.lt.s32.totalorder %v4065, 2
        %vm4086 = vcmp.lt.s32.totalorder %v4065, 3
        %vm4087 = vcmp.lt.s32.totalorder %v4065, 4
        %v4088 = vsel %vm4084, %v4068, %v4071
        %v4089 = vsel %vm4087, %v4077, 2102212464
        %v4090 = vsel %vm4086, %v4074, %v4089
        %v4091 = vsel %vm4085, %v4088, %v4090
        %v4092 = vsel %vm4084, %v4071, %v4074
        %v4093 = vsel %vm4087, %v4080, 920167782
        %v4094 = vsel %vm4086, %v4077, %v4093
        %v4095 = vsel %vm4085, %v4092, %v4094
        %v4096 = vsel %vm4084, %v4074, %v4077
        %v4097 = vsel %vm4087, %v4083, 1326507024
        %v4098 = vsel %vm4086, %v4080, %v4097
        %v4099 = vsel %vm4085, %v4096, %v4098
        %v4100 = vshll.u32 %v4060, 8
        %v4101 = vand.u32 %v4100, 65535
        %v4102 = vshrl.u32 %v4100, 16
        %v4103 = vand.u32 %v4099, 65535
        %v4104 = vshrl.u32 %v4099, 16
        %v4105 = vmul.u32 %v4101, %v4103
        %v4106 = vmul.u32 %v4101, %v4104
        %v4107 = vmul.u32 %v4102, %v4103
        %v4108 = vmul.u32 %v4102, %v4104
        %v4109 = vshll.u32 %v4106, 16
        %v4110 = vshrl.u32 %v4106, 16
        %v4111 = vshll.u32 %v4107, 16
        %v4112 = vshrl.u32 %v4107, 16
        %vm4113 = vc.u32 %v4105, %v4109
        %v4114 = vsel %vm4113, 1, 0
        %v4115 = vadd.s32 %v4105, %v4109
        %v4116 = vadd.s32 %v4108, %v4114
        %vm4117 = vc.u32 %v4115, %v4111
        %v4118 = vsel %vm4117, 1, 0
        %v4119 = vadd.s32 %v4115, %v4111
        %v4120 = vadd.s32 %v4116, %v4118
        %v4121 = vadd.s32 %v4120, %v4110
        %v4122 = vadd.s32 %v4121, %v4112
        %v4123 = vand.u32 %v4100, 65535
        %v4124 = vshrl.u32 %v4100, 16
        %v4125 = vand.u32 %v4095, 65535
        %v4126 = vshrl.u32 %v4095, 16
        %v4127 = vmul.u32 %v4123, %v4125
        %v4128 = vmul.u32 %v4123, %v4126
        %v4129 = vmul.u32 %v4124, %v4125
        %v4130 = vmul.u32 %v4124, %v4126
        %v4131 = vshll.u32 %v4128, 16
        %v4132 = vshrl.u32 %v4128, 16
        %v4133 = vshll.u32 %v4129, 16
        %v4134 = vshrl.u32 %v4129, 16
        %vm4135 = vc.u32 %v4127, %v4131
        %v4136 = vsel %vm4135, 1, 0
        %v4137 = vadd.s32 %v4127, %v4131
        %v4138 = vadd.s32 %v4130, %v4136
        %vm4139 = vc.u32 %v4137, %v4133
        %v4140 = vsel %vm4139, 1, 0
        %v4141 = vadd.s32 %v4137, %v4133
        %v4142 = vadd.s32 %v4138, %v4140
        %v4143 = vadd.s32 %v4142, %v4132
        %v4144 = vadd.s32 %v4143, %v4134
        %v4145 = vmul.u32 %v4100, %v4091
        %v4146 = vadd.s32 %v4122, %v4141
        %vm4147 = vc.u32 %v4122, %v4141
        %v4148 = vadd.s32 %v4144, 1
        %v4149 = vsel %vm4147, %v4148, %v4144
        %v4150 = vadd.s32 %v4145, %v4149
        %v4151 = vadd.s32 %v4150, 536870912
        %v4152 = vshrl.u32 %v4151, 30
        %v4153 = vshll.u32 %v4152, 30
        %v4154 = vsub.s32 %v4150, %v4153
        %vm4155 = vcmp.lt.s32.totalorder %v4154, 0
        %v4156 = vsub.s32 0, %v4154
        %v4157 = vsel %vm4155, %v4156, %v4154
        %v4158 = vclz %v4157
        %v4159 = vsub.s32 %v4158, 2
        %vm4160 = vcmp.gt.s32.totalorder 0, %v4159
        %v4161 = vsel %vm4160, 0, %v4159
        %v4162 = vsub.s32 32, %v4161
        %v4163 = vshll.u32 %v4154, %v4161
        %v4164 = vshrl.u32 %v4146, %v4162
        %v4165 = vor.u32 %v4163, %v4164
        %v4166 = vsub.s32 4294967266, %v4161
        %v4167 = vadd.s32 %v4166, 127
        %v4168 = vshll.u32 %v4167, 23
        %v4169 = vor.u32 4788187, %v4168
        %v4170 = vand.u32 2147483647, %v4169
        %v4172 = vcvt.s32.f32 %v4165
        %v4173 = vmul.f32 %v4172, %v4170
        %v4174 = vxor.u32 %v4173, 2147483648
        %v4175 = vsel %vm4054, %v4174, %v4173
        %v4176 = vsub.s32 4, %v4152
        %v4177 = vsel %vm4054, %v4176, %v4152
        %v4178 = vsel %vm4053, %v478, %v4175
        %v4179 = vsel %vm4053, 0, %v4177
        %v4180 = vmul.f32 %v4178, %v4178
        %v4181 = vmul.f32 %v4180, -0.001358992
        %v4182 = vadd.f32 %v4181, 0.041655596
        %v4183 = vmul.f32 %v4180, %v4182
        %v4184 = vadd.f32 %v4183, -0.4999988
        %v4185 = vmul.f32 %v4180, %v4184
        %v4186 = vadd.f32 1.0, %v4185
        %v4187 = vmul.f32 %v4178, %v4178
        %v4188 = vmul.f32 %v4187, -0.00019511016
        %v4189 = vadd.f32 %v4188, 0.008332121
        %v4190 = vmul.f32 %v4187, %v4189
        %v4191 = vadd.f32 %v4190, -0.16666654
        %v4192 = vmul.f32 %v4187, %v4191
        %v4193 = vadd.f32 %v4192, 1.0
        %v4194 = vmul.f32 %v4193, %v4178
        %vm4195 = vweird.f32 %v478
        %v4196 = vadd.s32 %v4179, 3
        %v4197 = vand.u32 %v4196, 3
        %vm4198 = vcmp.lt.s32.totalorder %v4197, 2
        %vm4199 = vcmp.eq.s32.totalorder %v4197, 0
        %v4200 = vxor.u32 %v4194, 2147483648
        %v4201 = vsel %vm4199, %v4186, %v4200
        %vm4202 = vcmp.eq.s32.totalorder %v4197, 2
        %v4203 = vxor.u32 %v4186, 2147483648
        %v4204 = vsel %vm4202, %v4203, %v4194
        %v4205 = vsel %vm4198, %v4201, %v4204
        %v4206 = vsel %vm4195, nan, %v4205
        %v4207 = vand.u32 2147483647, %v479
        %vm4208 = vcmp.le.f32.partialorder %v4207, 0.7853982
        %vm4209 = vcmp.lt.s32.totalorder %v479, 0
        %v4210 = vand.u32 %v479, 2139095040
        %v4211 = vshrl.u32 %v4210, 23
        %v4212 = vsub.s32 %v4211, 127
        %v4213 = vand.u32 2147483647, %v479
        %v4214 = vand.u32 %v4213, 8388607
        %v4215 = vor.u32 %v4214, 8388608
        %v4216 = vsub.s32 0, %v4215
        %v4217 = vadd.s32 %v4212, 1
        %vm4218 = vcmp.gt.s32.totalorder %v4217, 0
        %v4219 = vsel %vm4218, %v4217, 0
        %v4220 = vshrl.u32 %v4219, 5
        %v4221 = vand.u32 %v4219, 31
        %v4222 = vsub.s32 32, %v4221
        %v4223 = vshrl.u32 683565275, %v4222
        %v4224 = vshll.u32 683565275, %v4221
        %v4225 = vshrl.u32 2475754826, %v4222
        %v4226 = vor.u32 %v4224, %v4225
        %v4227 = vshll.u32 2475754826, %v4221
        %v4228 = vshrl.u32 2131351028, %v4222
        %v4229 = vor.u32 %v4227, %v4228
        %v4230 = vshll.u32 2131351028, %v4221
        %v4231 = vshrl.u32 2102212464, %v4222
        %v4232 = vor.u32 %v4230, %v4231
        %v4233 = vshll.u32 2102212464, %v4221
        %v4234 = vshrl.u32 920167782, %v4222
        %v4235 = vor.u32 %v4233, %v4234
        %v4236 = vshll.u32 920167782, %v4221
        %v4237 = vshrl.u32 1326507024, %v4222
        %v4238 = vor.u32 %v4236, %v4237
        %vm4239 = vcmp.lt.s32.totalorder %v4220, 1
        %vm4240 = vcmp.lt.s32.totalorder %v4220, 2
        %vm4241 = vcmp.lt.s32.totalorder %v4220, 3
        %vm4242 = vcmp.lt.s32.totalorder %v4220, 4
        %v4243 = vsel %vm4239, %v4223, %v4226
        %v4244 = vsel %vm4242, %v4232, 2102212464
        %v4245 = vsel %vm4241, %v4229, %v4244
        %v4246 = vsel %vm4240, %v4243, %v4245
        %v4247 = vsel %vm4239, %v4226, %v4229
        %v4248 = vsel %vm4242, %v4235, 920167782
        %v4249 = vsel %vm4241, %v4232, %v4248
        %v4250 = vsel %vm4240, %v4247, %v4249
        %v4251 = vsel %vm4239, %v4229, %v4232
        %v4252 = vsel %vm4242, %v4238, 1326507024
        %v4253 = vsel %vm4241, %v4235, %v4252
        %v4254 = vsel %vm4240, %v4251, %v4253
        %v4255 = vshll.u32 %v4215, 8
        %v4256 = vand.u32 %v4255, 65535
        %v4257 = vshrl.u32 %v4255, 16
        %v4258 = vand.u32 %v4254, 65535
        %v4259 = vshrl.u32 %v4254, 16
        %v4260 = vmul.u32 %v4256, %v4258
        %v4261 = vmul.u32 %v4256, %v4259
        %v4262 = vmul.u32 %v4257, %v4258
        %v4263 = vmul.u32 %v4257, %v4259
        %v4264 = vshll.u32 %v4261, 16
        %v4265 = vshrl.u32 %v4261, 16
        %v4266 = vshll.u32 %v4262, 16
        %v4267 = vshrl.u32 %v4262, 16
        %vm4268 = vc.u32 %v4260, %v4264
        %v4269 = vsel %vm4268, 1, 0
        %v4270 = vadd.s32 %v4260, %v4264
        %v4271 = vadd.s32 %v4263, %v4269
        %vm4272 = vc.u32 %v4270, %v4266
        %v4273 = vsel %vm4272, 1, 0
        %v4274 = vadd.s32 %v4270, %v4266
        %v4275 = vadd.s32 %v4271, %v4273
        %v4276 = vadd.s32 %v4275, %v4265
        %v4277 = vadd.s32 %v4276, %v4267
        %v4278 = vand.u32 %v4255, 65535
        %v4279 = vshrl.u32 %v4255, 16
        %v4280 = vand.u32 %v4250, 65535
        %v4281 = vshrl.u32 %v4250, 16
        %v4282 = vmul.u32 %v4278, %v4280
        %v4283 = vmul.u32 %v4278, %v4281
        %v4284 = vmul.u32 %v4279, %v4280
        %v4285 = vmul.u32 %v4279, %v4281
        %v4286 = vshll.u32 %v4283, 16
        %v4287 = vshrl.u32 %v4283, 16
        %v4288 = vshll.u32 %v4284, 16
        %v4289 = vshrl.u32 %v4284, 16
        %vm4290 = vc.u32 %v4282, %v4286
        %v4291 = vsel %vm4290, 1, 0
        %v4292 = vadd.s32 %v4282, %v4286
        %v4293 = vadd.s32 %v4285, %v4291
        %vm4294 = vc.u32 %v4292, %v4288
        %v4295 = vsel %vm4294, 1, 0
        %v4296 = vadd.s32 %v4292, %v4288
        %v4297 = vadd.s32 %v4293, %v4295
        %v4298 = vadd.s32 %v4297, %v4287
        %v4299 = vadd.s32 %v4298, %v4289
        %v4300 = vmul.u32 %v4255, %v4246
        %v4301 = vadd.s32 %v4277, %v4296
        %vm4302 = vc.u32 %v4277, %v4296
        %v4303 = vadd.s32 %v4299, 1
        %v4304 = vsel %vm4302, %v4303, %v4299
        %v4305 = vadd.s32 %v4300, %v4304
        %v4306 = vadd.s32 %v4305, 536870912
        %v4307 = vshrl.u32 %v4306, 30
        %v4308 = vshll.u32 %v4307, 30
        %v4309 = vsub.s32 %v4305, %v4308
        %vm4310 = vcmp.lt.s32.totalorder %v4309, 0
        %v4311 = vsub.s32 0, %v4309
        %v4312 = vsel %vm4310, %v4311, %v4309
        %v4313 = vclz %v4312
        %v4314 = vsub.s32 %v4313, 2
        %vm4315 = vcmp.gt.s32.totalorder 0, %v4314
        %v4316 = vsel %vm4315, 0, %v4314
        %v4317 = vsub.s32 32, %v4316
        %v4318 = vshll.u32 %v4309, %v4316
        %v4319 = vshrl.u32 %v4301, %v4317
        %v4320 = vor.u32 %v4318, %v4319
        %v4321 = vsub.s32 4294967266, %v4316
        %v4322 = vadd.s32 %v4321, 127
        %v4323 = vshll.u32 %v4322, 23
        %v4324 = vor.u32 4788187, %v4323
        %v4325 = vand.u32 2147483647, %v4324
        %v4327 = vcvt.s32.f32 %v4320
        %v4328 = vmul.f32 %v4327, %v4325
        %v4329 = vxor.u32 %v4328, 2147483648
        %v4330 = vsel %vm4209, %v4329, %v4328
        %v4331 = vsub.s32 4, %v4307
        %v4332 = vsel %vm4209, %v4331, %v4307
        %v4333 = vsel %vm4208, %v479, %v4330
        %v4334 = vsel %vm4208, 0, %v4332
        %v4335 = vmul.f32 %v4333, %v4333
        %v4336 = vmul.f32 %v4335, -0.001358992
        %v4337 = vadd.f32 %v4336, 0.041655596
        %v4338 = vmul.f32 %v4335, %v4337
        %v4339 = vadd.f32 %v4338, -0.4999988
        %v4340 = vmul.f32 %v4335, %v4339
        %v4341 = vadd.f32 1.0, %v4340
        %v4342 = vmul.f32 %v4333, %v4333
        %v4343 = vmul.f32 %v4342, -0.00019511016
        %v4344 = vadd.f32 %v4343, 0.008332121
        %v4345 = vmul.f32 %v4342, %v4344
        %v4346 = vadd.f32 %v4345, -0.16666654
        %v4347 = vmul.f32 %v4342, %v4346
        %v4348 = vadd.f32 %v4347, 1.0
        %v4349 = vmul.f32 %v4348, %v4333
        %vm4350 = vweird.f32 %v479
        %v4351 = vadd.s32 %v4334, 3
        %v4352 = vand.u32 %v4351, 3
        %vm4353 = vcmp.lt.s32.totalorder %v4352, 2
        %vm4354 = vcmp.eq.s32.totalorder %v4352, 0
        %v4355 = vxor.u32 %v4349, 2147483648
        %v4356 = vsel %vm4354, %v4341, %v4355
        %vm4357 = vcmp.eq.s32.totalorder %v4352, 2
        %v4358 = vxor.u32 %v4341, 2147483648
        %v4359 = vsel %vm4357, %v4358, %v4349
        %v4360 = vsel %vm4353, %v4356, %v4359
        %v4361 = vsel %vm4350, nan, %v4360
        %v4362 = vand.u32 2147483647, %v480
        %vm4363 = vcmp.le.f32.partialorder %v4362, 0.7853982
        %vm4364 = vcmp.lt.s32.totalorder %v480, 0
        %v4365 = vand.u32 %v480, 2139095040
        %v4366 = vshrl.u32 %v4365, 23
        %v4367 = vsub.s32 %v4366, 127
        %v4368 = vand.u32 2147483647, %v480
        %v4369 = vand.u32 %v4368, 8388607
        %v4370 = vor.u32 %v4369, 8388608
        %v4371 = vsub.s32 0, %v4370
        %v4372 = vadd.s32 %v4367, 1
        %vm4373 = vcmp.gt.s32.totalorder %v4372, 0
        %v4374 = vsel %vm4373, %v4372, 0
        %v4375 = vshrl.u32 %v4374, 5
        %v4376 = vand.u32 %v4374, 31
        %v4377 = vsub.s32 32, %v4376
        %v4378 = vshrl.u32 683565275, %v4377
        %v4379 = vshll.u32 683565275, %v4376
        %v4380 = vshrl.u32 2475754826, %v4377
        %v4381 = vor.u32 %v4379, %v4380
        %v4382 = vshll.u32 2475754826, %v4376
        %v4383 = vshrl.u32 2131351028, %v4377
        %v4384 = vor.u32 %v4382, %v4383
        %v4385 = vshll.u32 2131351028, %v4376
        %v4386 = vshrl.u32 2102212464, %v4377
        %v4387 = vor.u32 %v4385, %v4386
        %v4388 = vshll.u32 2102212464, %v4376
        %v4389 = vshrl.u32 920167782, %v4377
        %v4390 = vor.u32 %v4388, %v4389
        %v4391 = vshll.u32 920167782, %v4376
        %v4392 = vshrl.u32 1326507024, %v4377
        %v4393 = vor.u32 %v4391, %v4392
        %vm4394 = vcmp.lt.s32.totalorder %v4375, 1
        %vm4395 = vcmp.lt.s32.totalorder %v4375, 2
        %vm4396 = vcmp.lt.s32.totalorder %v4375, 3
        %vm4397 = vcmp.lt.s32.totalorder %v4375, 4
        %v4398 = vsel %vm4394, %v4378, %v4381
        %v4399 = vsel %vm4397, %v4387, 2102212464
        %v4400 = vsel %vm4396, %v4384, %v4399
        %v4401 = vsel %vm4395, %v4398, %v4400
        %v4402 = vsel %vm4394, %v4381, %v4384
        %v4403 = vsel %vm4397, %v4390, 920167782
        %v4404 = vsel %vm4396, %v4387, %v4403
        %v4405 = vsel %vm4395, %v4402, %v4404
        %v4406 = vsel %vm4394, %v4384, %v4387
        %v4407 = vsel %vm4397, %v4393, 1326507024
        %v4408 = vsel %vm4396, %v4390, %v4407
        %v4409 = vsel %vm4395, %v4406, %v4408
        %v4410 = vshll.u32 %v4370, 8
        %v4411 = vand.u32 %v4410, 65535
        %v4412 = vshrl.u32 %v4410, 16
        %v4413 = vand.u32 %v4409, 65535
        %v4414 = vshrl.u32 %v4409, 16
        %v4415 = vmul.u32 %v4411, %v4413
        %v4416 = vmul.u32 %v4411, %v4414
        %v4417 = vmul.u32 %v4412, %v4413
        %v4418 = vmul.u32 %v4412, %v4414
        %v4419 = vshll.u32 %v4416, 16
        %v4420 = vshrl.u32 %v4416, 16
        %v4421 = vshll.u32 %v4417, 16
        %v4422 = vshrl.u32 %v4417, 16
        %vm4423 = vc.u32 %v4415, %v4419
        %v4424 = vsel %vm4423, 1, 0
        %v4425 = vadd.s32 %v4415, %v4419
        %v4426 = vadd.s32 %v4418, %v4424
        %vm4427 = vc.u32 %v4425, %v4421
        %v4428 = vsel %vm4427, 1, 0
        %v4429 = vadd.s32 %v4425, %v4421
        %v4430 = vadd.s32 %v4426, %v4428
        %v4431 = vadd.s32 %v4430, %v4420
        %v4432 = vadd.s32 %v4431, %v4422
        %v4433 = vand.u32 %v4410, 65535
        %v4434 = vshrl.u32 %v4410, 16
        %v4435 = vand.u32 %v4405, 65535
        %v4436 = vshrl.u32 %v4405, 16
        %v4437 = vmul.u32 %v4433, %v4435
        %v4438 = vmul.u32 %v4433, %v4436
        %v4439 = vmul.u32 %v4434, %v4435
        %v4440 = vmul.u32 %v4434, %v4436
        %v4441 = vshll.u32 %v4438, 16
        %v4442 = vshrl.u32 %v4438, 16
        %v4443 = vshll.u32 %v4439, 16
        %v4444 = vshrl.u32 %v4439, 16
        %vm4445 = vc.u32 %v4437, %v4441
        %v4446 = vsel %vm4445, 1, 0
        %v4447 = vadd.s32 %v4437, %v4441
        %v4448 = vadd.s32 %v4440, %v4446
        %vm4449 = vc.u32 %v4447, %v4443
        %v4450 = vsel %vm4449, 1, 0
        %v4451 = vadd.s32 %v4447, %v4443
        %v4452 = vadd.s32 %v4448, %v4450
        %v4453 = vadd.s32 %v4452, %v4442
        %v4454 = vadd.s32 %v4453, %v4444
        %v4455 = vmul.u32 %v4410, %v4401
        %v4456 = vadd.s32 %v4432, %v4451
        %vm4457 = vc.u32 %v4432, %v4451
        %v4458 = vadd.s32 %v4454, 1
        %v4459 = vsel %vm4457, %v4458, %v4454
        %v4460 = vadd.s32 %v4455, %v4459
        %v4461 = vadd.s32 %v4460, 536870912
        %v4462 = vshrl.u32 %v4461, 30
        %v4463 = vshll.u32 %v4462, 30
        %v4464 = vsub.s32 %v4460, %v4463
        %vm4465 = vcmp.lt.s32.totalorder %v4464, 0
        %v4466 = vsub.s32 0, %v4464
        %v4467 = vsel %vm4465, %v4466, %v4464
        %v4468 = vclz %v4467
        %v4469 = vsub.s32 %v4468, 2
        %vm4470 = vcmp.gt.s32.totalorder 0, %v4469
        %v4471 = vsel %vm4470, 0, %v4469
        %v4472 = vsub.s32 32, %v4471
        %v4473 = vshll.u32 %v4464, %v4471
        %v4474 = vshrl.u32 %v4456, %v4472
        %v4475 = vor.u32 %v4473, %v4474
        %v4476 = vsub.s32 4294967266, %v4471
        %v4477 = vadd.s32 %v4476, 127
        %v4478 = vshll.u32 %v4477, 23
        %v4479 = vor.u32 4788187, %v4478
        %v4480 = vand.u32 2147483647, %v4479
        %v4482 = vcvt.s32.f32 %v4475
        %v4483 = vmul.f32 %v4482, %v4480
        %v4484 = vxor.u32 %v4483, 2147483648
        %v4485 = vsel %vm4364, %v4484, %v4483
        %v4486 = vsub.s32 4, %v4462
        %v4487 = vsel %vm4364, %v4486, %v4462
        %v4488 = vsel %vm4363, %v480, %v4485
        %v4489 = vsel %vm4363, 0, %v4487
        %v4490 = vmul.f32 %v4488, %v4488
        %v4491 = vmul.f32 %v4490, -0.001358992
        %v4492 = vadd.f32 %v4491, 0.041655596
        %v4493 = vmul.f32 %v4490, %v4492
        %v4494 = vadd.f32 %v4493, -0.4999988
        %v4495 = vmul.f32 %v4490, %v4494
        %v4496 = vadd.f32 1.0, %v4495
        %v4497 = vmul.f32 %v4488, %v4488
        %v4498 = vmul.f32 %v4497, -0.00019511016
        %v4499 = vadd.f32 %v4498, 0.008332121
        %v4500 = vmul.f32 %v4497, %v4499
        %v4501 = vadd.f32 %v4500, -0.16666654
        %v4502 = vmul.f32 %v4497, %v4501
        %v4503 = vadd.f32 %v4502, 1.0
        %v4504 = vmul.f32 %v4503, %v4488
        %vm4505 = vweird.f32 %v480
        %v4506 = vadd.s32 %v4489, 3
        %v4507 = vand.u32 %v4506, 3
        %vm4508 = vcmp.lt.s32.totalorder %v4507, 2
        %vm4509 = vcmp.eq.s32.totalorder %v4507, 0
        %v4510 = vxor.u32 %v4504, 2147483648
        %v4511 = vsel %vm4509, %v4496, %v4510
        %vm4512 = vcmp.eq.s32.totalorder %v4507, 2
        %v4513 = vxor.u32 %v4496, 2147483648
        %v4514 = vsel %vm4512, %v4513, %v4504
        %v4515 = vsel %vm4508, %v4511, %v4514
        %v4516 = vsel %vm4505, nan, %v4515
        %v4517 = vand.u32 2147483647, %v481
        %vm4518 = vcmp.le.f32.partialorder %v4517, 0.7853982
        %vm4519 = vcmp.lt.s32.totalorder %v481, 0
        %v4520 = vand.u32 %v481, 2139095040
        %v4521 = vshrl.u32 %v4520, 23
        %v4522 = vsub.s32 %v4521, 127
        %v4523 = vand.u32 2147483647, %v481
        %v4524 = vand.u32 %v4523, 8388607
        %v4525 = vor.u32 %v4524, 8388608
        %v4526 = vsub.s32 0, %v4525
        %v4527 = vadd.s32 %v4522, 1
        %vm4528 = vcmp.gt.s32.totalorder %v4527, 0
        %v4529 = vsel %vm4528, %v4527, 0
        %v4530 = vshrl.u32 %v4529, 5
        %v4531 = vand.u32 %v4529, 31
        %v4532 = vsub.s32 32, %v4531
        %v4533 = vshrl.u32 683565275, %v4532
        %v4534 = vshll.u32 683565275, %v4531
        %v4535 = vshrl.u32 2475754826, %v4532
        %v4536 = vor.u32 %v4534, %v4535
        %v4537 = vshll.u32 2475754826, %v4531
        %v4538 = vshrl.u32 2131351028, %v4532
        %v4539 = vor.u32 %v4537, %v4538
        %v4540 = vshll.u32 2131351028, %v4531
        %v4541 = vshrl.u32 2102212464, %v4532
        %v4542 = vor.u32 %v4540, %v4541
        %v4543 = vshll.u32 2102212464, %v4531
        %v4544 = vshrl.u32 920167782, %v4532
        %v4545 = vor.u32 %v4543, %v4544
        %v4546 = vshll.u32 920167782, %v4531
        %v4547 = vshrl.u32 1326507024, %v4532
        %v4548 = vor.u32 %v4546, %v4547
        %vm4549 = vcmp.lt.s32.totalorder %v4530, 1
        %vm4550 = vcmp.lt.s32.totalorder %v4530, 2
        %vm4551 = vcmp.lt.s32.totalorder %v4530, 3
        %vm4552 = vcmp.lt.s32.totalorder %v4530, 4
        %v4553 = vsel %vm4549, %v4533, %v4536
        %v4554 = vsel %vm4552, %v4542, 2102212464
        %v4555 = vsel %vm4551, %v4539, %v4554
        %v4556 = vsel %vm4550, %v4553, %v4555
        %v4557 = vsel %vm4549, %v4536, %v4539
        %v4558 = vsel %vm4552, %v4545, 920167782
        %v4559 = vsel %vm4551, %v4542, %v4558
        %v4560 = vsel %vm4550, %v4557, %v4559
        %v4561 = vsel %vm4549, %v4539, %v4542
        %v4562 = vsel %vm4552, %v4548, 1326507024
        %v4563 = vsel %vm4551, %v4545, %v4562
        %v4564 = vsel %vm4550, %v4561, %v4563
        %v4565 = vshll.u32 %v4525, 8
        %v4566 = vand.u32 %v4565, 65535
        %v4567 = vshrl.u32 %v4565, 16
        %v4568 = vand.u32 %v4564, 65535
        %v4569 = vshrl.u32 %v4564, 16
        %v4570 = vmul.u32 %v4566, %v4568
        %v4571 = vmul.u32 %v4566, %v4569
        %v4572 = vmul.u32 %v4567, %v4568
        %v4573 = vmul.u32 %v4567, %v4569
        %v4574 = vshll.u32 %v4571, 16
        %v4575 = vshrl.u32 %v4571, 16
        %v4576 = vshll.u32 %v4572, 16
        %v4577 = vshrl.u32 %v4572, 16
        %vm4578 = vc.u32 %v4570, %v4574
        %v4579 = vsel %vm4578, 1, 0
        %v4580 = vadd.s32 %v4570, %v4574
        %v4581 = vadd.s32 %v4573, %v4579
        %vm4582 = vc.u32 %v4580, %v4576
        %v4583 = vsel %vm4582, 1, 0
        %v4584 = vadd.s32 %v4580, %v4576
        %v4585 = vadd.s32 %v4581, %v4583
        %v4586 = vadd.s32 %v4585, %v4575
        %v4587 = vadd.s32 %v4586, %v4577
        %v4588 = vand.u32 %v4565, 65535
        %v4589 = vshrl.u32 %v4565, 16
        %v4590 = vand.u32 %v4560, 65535
        %v4591 = vshrl.u32 %v4560, 16
        %v4592 = vmul.u32 %v4588, %v4590
        %v4593 = vmul.u32 %v4588, %v4591
        %v4594 = vmul.u32 %v4589, %v4590
        %v4595 = vmul.u32 %v4589, %v4591
        %v4596 = vshll.u32 %v4593, 16
        %v4597 = vshrl.u32 %v4593, 16
        %v4598 = vshll.u32 %v4594, 16
        %v4599 = vshrl.u32 %v4594, 16
        %vm4600 = vc.u32 %v4592, %v4596
        %v4601 = vsel %vm4600, 1, 0
        %v4602 = vadd.s32 %v4592, %v4596
        %v4603 = vadd.s32 %v4595, %v4601
        %vm4604 = vc.u32 %v4602, %v4598
        %v4605 = vsel %vm4604, 1, 0
        %v4606 = vadd.s32 %v4602, %v4598
        %v4607 = vadd.s32 %v4603, %v4605
        %v4608 = vadd.s32 %v4607, %v4597
        %v4609 = vadd.s32 %v4608, %v4599
        %v4610 = vmul.u32 %v4565, %v4556
        %v4611 = vadd.s32 %v4587, %v4606
        %vm4612 = vc.u32 %v4587, %v4606
        %v4613 = vadd.s32 %v4609, 1
        %v4614 = vsel %vm4612, %v4613, %v4609
        %v4615 = vadd.s32 %v4610, %v4614
        %v4616 = vadd.s32 %v4615, 536870912
        %v4617 = vshrl.u32 %v4616, 30
        %v4618 = vshll.u32 %v4617, 30
        %v4619 = vsub.s32 %v4615, %v4618
        %vm4620 = vcmp.lt.s32.totalorder %v4619, 0
        %v4621 = vsub.s32 0, %v4619
        %v4622 = vsel %vm4620, %v4621, %v4619
        %v4623 = vclz %v4622
        %v4624 = vsub.s32 %v4623, 2
        %vm4625 = vcmp.gt.s32.totalorder 0, %v4624
        %v4626 = vsel %vm4625, 0, %v4624
        %v4627 = vsub.s32 32, %v4626
        %v4628 = vshll.u32 %v4619, %v4626
        %v4629 = vshrl.u32 %v4611, %v4627
        %v4630 = vor.u32 %v4628, %v4629
        %v4631 = vsub.s32 4294967266, %v4626
        %v4632 = vadd.s32 %v4631, 127
        %v4633 = vshll.u32 %v4632, 23
        %v4634 = vor.u32 4788187, %v4633
        %v4635 = vand.u32 2147483647, %v4634
        %v4637 = vcvt.s32.f32 %v4630
        %v4638 = vmul.f32 %v4637, %v4635
        %v4639 = vxor.u32 %v4638, 2147483648
        %v4640 = vsel %vm4519, %v4639, %v4638
        %v4641 = vsub.s32 4, %v4617
        %v4642 = vsel %vm4519, %v4641, %v4617
        %v4643 = vsel %vm4518, %v481, %v4640
        %v4644 = vsel %vm4518, 0, %v4642
        %v4645 = vmul.f32 %v4643, %v4643
        %v4646 = vmul.f32 %v4645, -0.001358992
        %v4647 = vadd.f32 %v4646, 0.041655596
        %v4648 = vmul.f32 %v4645, %v4647
        %v4649 = vadd.f32 %v4648, -0.4999988
        %v4650 = vmul.f32 %v4645, %v4649
        %v4651 = vadd.f32 1.0, %v4650
        %v4652 = vmul.f32 %v4643, %v4643
        %v4653 = vmul.f32 %v4652, -0.00019511016
        %v4654 = vadd.f32 %v4653, 0.008332121
        %v4655 = vmul.f32 %v4652, %v4654
        %v4656 = vadd.f32 %v4655, -0.16666654
        %v4657 = vmul.f32 %v4652, %v4656
        %v4658 = vadd.f32 %v4657, 1.0
        %v4659 = vmul.f32 %v4658, %v4643
        %vm4660 = vweird.f32 %v481
        %v4661 = vadd.s32 %v4644, 3
        %v4662 = vand.u32 %v4661, 3
        %vm4663 = vcmp.lt.s32.totalorder %v4662, 2
        %vm4664 = vcmp.eq.s32.totalorder %v4662, 0
        %v4665 = vxor.u32 %v4659, 2147483648
        %v4666 = vsel %vm4664, %v4651, %v4665
        %vm4667 = vcmp.eq.s32.totalorder %v4662, 2
        %v4668 = vxor.u32 %v4651, 2147483648
        %v4669 = vsel %vm4667, %v4668, %v4659
        %v4670 = vsel %vm4663, %v4666, %v4669
        %v4671 = vsel %vm4660, nan, %v4670
        %v4672 = vand.u32 2147483647, %v482
        %vm4673 = vcmp.le.f32.partialorder %v4672, 0.7853982
        %vm4674 = vcmp.lt.s32.totalorder %v482, 0
        %v4675 = vand.u32 %v482, 2139095040
        %v4676 = vshrl.u32 %v4675, 23
        %v4677 = vsub.s32 %v4676, 127
        %v4678 = vand.u32 2147483647, %v482
        %v4679 = vand.u32 %v4678, 8388607
        %v4680 = vor.u32 %v4679, 8388608
        %v4681 = vsub.s32 0, %v4680
        %v4682 = vadd.s32 %v4677, 1
        %vm4683 = vcmp.gt.s32.totalorder %v4682, 0
        %v4684 = vsel %vm4683, %v4682, 0
        %v4685 = vshrl.u32 %v4684, 5
        %v4686 = vand.u32 %v4684, 31
        %v4687 = vsub.s32 32, %v4686
        %v4688 = vshrl.u32 683565275, %v4687
        %v4689 = vshll.u32 683565275, %v4686
        %v4690 = vshrl.u32 2475754826, %v4687
        %v4691 = vor.u32 %v4689, %v4690
        %v4692 = vshll.u32 2475754826, %v4686
        %v4693 = vshrl.u32 2131351028, %v4687
        %v4694 = vor.u32 %v4692, %v4693
        %v4695 = vshll.u32 2131351028, %v4686
        %v4696 = vshrl.u32 2102212464, %v4687
        %v4697 = vor.u32 %v4695, %v4696
        %v4698 = vshll.u32 2102212464, %v4686
        %v4699 = vshrl.u32 920167782, %v4687
        %v4700 = vor.u32 %v4698, %v4699
        %v4701 = vshll.u32 920167782, %v4686
        %v4702 = vshrl.u32 1326507024, %v4687
        %v4703 = vor.u32 %v4701, %v4702
        %vm4704 = vcmp.lt.s32.totalorder %v4685, 1
        %vm4705 = vcmp.lt.s32.totalorder %v4685, 2
        %vm4706 = vcmp.lt.s32.totalorder %v4685, 3
        %vm4707 = vcmp.lt.s32.totalorder %v4685, 4
        %v4708 = vsel %vm4704, %v4688, %v4691
        %v4709 = vsel %vm4707, %v4697, 2102212464
        %v4710 = vsel %vm4706, %v4694, %v4709
        %v4711 = vsel %vm4705, %v4708, %v4710
        %v4712 = vsel %vm4704, %v4691, %v4694
        %v4713 = vsel %vm4707, %v4700, 920167782
        %v4714 = vsel %vm4706, %v4697, %v4713
        %v4715 = vsel %vm4705, %v4712, %v4714
        %v4716 = vsel %vm4704, %v4694, %v4697
        %v4717 = vsel %vm4707, %v4703, 1326507024
        %v4718 = vsel %vm4706, %v4700, %v4717
        %v4719 = vsel %vm4705, %v4716, %v4718
        %v4720 = vshll.u32 %v4680, 8
        %v4721 = vand.u32 %v4720, 65535
        %v4722 = vshrl.u32 %v4720, 16
        %v4723 = vand.u32 %v4719, 65535
        %v4724 = vshrl.u32 %v4719, 16
        %v4725 = vmul.u32 %v4721, %v4723
        %v4726 = vmul.u32 %v4721, %v4724
        %v4727 = vmul.u32 %v4722, %v4723
        %v4728 = vmul.u32 %v4722, %v4724
        %v4729 = vshll.u32 %v4726, 16
        %v4730 = vshrl.u32 %v4726, 16
        %v4731 = vshll.u32 %v4727, 16
        %v4732 = vshrl.u32 %v4727, 16
        %vm4733 = vc.u32 %v4725, %v4729
        %v4734 = vsel %vm4733, 1, 0
        %v4735 = vadd.s32 %v4725, %v4729
        %v4736 = vadd.s32 %v4728, %v4734
        %vm4737 = vc.u32 %v4735, %v4731
        %v4738 = vsel %vm4737, 1, 0
        %v4739 = vadd.s32 %v4735, %v4731
        %v4740 = vadd.s32 %v4736, %v4738
        %v4741 = vadd.s32 %v4740, %v4730
        %v4742 = vadd.s32 %v4741, %v4732
        %v4743 = vand.u32 %v4720, 65535
        %v4744 = vshrl.u32 %v4720, 16
        %v4745 = vand.u32 %v4715, 65535
        %v4746 = vshrl.u32 %v4715, 16
        %v4747 = vmul.u32 %v4743, %v4745
        %v4748 = vmul.u32 %v4743, %v4746
        %v4749 = vmul.u32 %v4744, %v4745
        %v4750 = vmul.u32 %v4744, %v4746
        %v4751 = vshll.u32 %v4748, 16
        %v4752 = vshrl.u32 %v4748, 16
        %v4753 = vshll.u32 %v4749, 16
        %v4754 = vshrl.u32 %v4749, 16
        %vm4755 = vc.u32 %v4747, %v4751
        %v4756 = vsel %vm4755, 1, 0
        %v4757 = vadd.s32 %v4747, %v4751
        %v4758 = vadd.s32 %v4750, %v4756
        %vm4759 = vc.u32 %v4757, %v4753
        %v4760 = vsel %vm4759, 1, 0
        %v4761 = vadd.s32 %v4757, %v4753
        %v4762 = vadd.s32 %v4758, %v4760
        %v4763 = vadd.s32 %v4762, %v4752
        %v4764 = vadd.s32 %v4763, %v4754
        %v4765 = vmul.u32 %v4720, %v4711
        %v4766 = vadd.s32 %v4742, %v4761
        %vm4767 = vc.u32 %v4742, %v4761
        %v4768 = vadd.s32 %v4764, 1
        %v4769 = vsel %vm4767, %v4768, %v4764
        %v4770 = vadd.s32 %v4765, %v4769
        %v4771 = vadd.s32 %v4770, 536870912
        %v4772 = vshrl.u32 %v4771, 30
        %v4773 = vshll.u32 %v4772, 30
        %v4774 = vsub.s32 %v4770, %v4773
        %vm4775 = vcmp.lt.s32.totalorder %v4774, 0
        %v4776 = vsub.s32 0, %v4774
        %v4777 = vsel %vm4775, %v4776, %v4774
        %v4778 = vclz %v4777
        %v4779 = vsub.s32 %v4778, 2
        %vm4780 = vcmp.gt.s32.totalorder 0, %v4779
        %v4781 = vsel %vm4780, 0, %v4779
        %v4782 = vsub.s32 32, %v4781
        %v4783 = vshll.u32 %v4774, %v4781
        %v4784 = vshrl.u32 %v4766, %v4782
        %v4785 = vor.u32 %v4783, %v4784
        %v4786 = vsub.s32 4294967266, %v4781
        %v4787 = vadd.s32 %v4786, 127
        %v4788 = vshll.u32 %v4787, 23
        %v4789 = vor.u32 4788187, %v4788
        %v4790 = vand.u32 2147483647, %v4789
        %v4792 = vcvt.s32.f32 %v4785
        %v4793 = vmul.f32 %v4792, %v4790
        %v4794 = vxor.u32 %v4793, 2147483648
        %v4795 = vsel %vm4674, %v4794, %v4793
        %v4796 = vsub.s32 4, %v4772
        %v4797 = vsel %vm4674, %v4796, %v4772
        %v4798 = vsel %vm4673, %v482, %v4795
        %v4799 = vsel %vm4673, 0, %v4797
        %v4800 = vmul.f32 %v4798, %v4798
        %v4801 = vmul.f32 %v4800, -0.001358992
        %v4802 = vadd.f32 %v4801, 0.041655596
        %v4803 = vmul.f32 %v4800, %v4802
        %v4804 = vadd.f32 %v4803, -0.4999988
        %v4805 = vmul.f32 %v4800, %v4804
        %v4806 = vadd.f32 1.0, %v4805
        %v4807 = vmul.f32 %v4798, %v4798
        %v4808 = vmul.f32 %v4807, -0.00019511016
        %v4809 = vadd.f32 %v4808, 0.008332121
        %v4810 = vmul.f32 %v4807, %v4809
        %v4811 = vadd.f32 %v4810, -0.16666654
        %v4812 = vmul.f32 %v4807, %v4811
        %v4813 = vadd.f32 %v4812, 1.0
        %v4814 = vmul.f32 %v4813, %v4798
        %vm4815 = vweird.f32 %v482
        %v4816 = vadd.s32 %v4799, 3
        %v4817 = vand.u32 %v4816, 3
        %vm4818 = vcmp.lt.s32.totalorder %v4817, 2
        %vm4819 = vcmp.eq.s32.totalorder %v4817, 0
        %v4820 = vxor.u32 %v4814, 2147483648
        %v4821 = vsel %vm4819, %v4806, %v4820
        %vm4822 = vcmp.eq.s32.totalorder %v4817, 2
        %v4823 = vxor.u32 %v4806, 2147483648
        %v4824 = vsel %vm4822, %v4823, %v4814
        %v4825 = vsel %vm4818, %v4821, %v4824
        %v4826 = vsel %vm4815, nan, %v4825
        %v4827 = vand.u32 2147483647, %v483
        %vm4828 = vcmp.le.f32.partialorder %v4827, 0.7853982
        %vm4829 = vcmp.lt.s32.totalorder %v483, 0
        %v4830 = vand.u32 %v483, 2139095040
        %v4831 = vshrl.u32 %v4830, 23
        %v4832 = vsub.s32 %v4831, 127
        %v4833 = vand.u32 2147483647, %v483
        %v4834 = vand.u32 %v4833, 8388607
        %v4835 = vor.u32 %v4834, 8388608
        %v4836 = vsub.s32 0, %v4835
        %v4837 = vadd.s32 %v4832, 1
        %vm4838 = vcmp.gt.s32.totalorder %v4837, 0
        %v4839 = vsel %vm4838, %v4837, 0
        %v4840 = vshrl.u32 %v4839, 5
        %v4841 = vand.u32 %v4839, 31
        %v4842 = vsub.s32 32, %v4841
        %v4843 = vshrl.u32 683565275, %v4842
        %v4844 = vshll.u32 683565275, %v4841
        %v4845 = vshrl.u32 2475754826, %v4842
        %v4846 = vor.u32 %v4844, %v4845
        %v4847 = vshll.u32 2475754826, %v4841
        %v4848 = vshrl.u32 2131351028, %v4842
        %v4849 = vor.u32 %v4847, %v4848
        %v4850 = vshll.u32 2131351028, %v4841
        %v4851 = vshrl.u32 2102212464, %v4842
        %v4852 = vor.u32 %v4850, %v4851
        %v4853 = vshll.u32 2102212464, %v4841
        %v4854 = vshrl.u32 920167782, %v4842
        %v4855 = vor.u32 %v4853, %v4854
        %v4856 = vshll.u32 920167782, %v4841
        %v4857 = vshrl.u32 1326507024, %v4842
        %v4858 = vor.u32 %v4856, %v4857
        %vm4859 = vcmp.lt.s32.totalorder %v4840, 1
        %vm4860 = vcmp.lt.s32.totalorder %v4840, 2
        %vm4861 = vcmp.lt.s32.totalorder %v4840, 3
        %vm4862 = vcmp.lt.s32.totalorder %v4840, 4
        %v4863 = vsel %vm4859, %v4843, %v4846
        %v4864 = vsel %vm4862, %v4852, 2102212464
        %v4865 = vsel %vm4861, %v4849, %v4864
        %v4866 = vsel %vm4860, %v4863, %v4865
        %v4867 = vsel %vm4859, %v4846, %v4849
        %v4868 = vsel %vm4862, %v4855, 920167782
        %v4869 = vsel %vm4861, %v4852, %v4868
        %v4870 = vsel %vm4860, %v4867, %v4869
        %v4871 = vsel %vm4859, %v4849, %v4852
        %v4872 = vsel %vm4862, %v4858, 1326507024
        %v4873 = vsel %vm4861, %v4855, %v4872
        %v4874 = vsel %vm4860, %v4871, %v4873
        %v4875 = vshll.u32 %v4835, 8
        %v4876 = vand.u32 %v4875, 65535
        %v4877 = vshrl.u32 %v4875, 16
        %v4878 = vand.u32 %v4874, 65535
        %v4879 = vshrl.u32 %v4874, 16
        %v4880 = vmul.u32 %v4876, %v4878
        %v4881 = vmul.u32 %v4876, %v4879
        %v4882 = vmul.u32 %v4877, %v4878
        %v4883 = vmul.u32 %v4877, %v4879
        %v4884 = vshll.u32 %v4881, 16
        %v4885 = vshrl.u32 %v4881, 16
        %v4886 = vshll.u32 %v4882, 16
        %v4887 = vshrl.u32 %v4882, 16
        %vm4888 = vc.u32 %v4880, %v4884
        %v4889 = vsel %vm4888, 1, 0
        %v4890 = vadd.s32 %v4880, %v4884
        %v4891 = vadd.s32 %v4883, %v4889
        %vm4892 = vc.u32 %v4890, %v4886
        %v4893 = vsel %vm4892, 1, 0
        %v4894 = vadd.s32 %v4890, %v4886
        %v4895 = vadd.s32 %v4891, %v4893
        %v4896 = vadd.s32 %v4895, %v4885
        %v4897 = vadd.s32 %v4896, %v4887
        %v4898 = vand.u32 %v4875, 65535
        %v4899 = vshrl.u32 %v4875, 16
        %v4900 = vand.u32 %v4870, 65535
        %v4901 = vshrl.u32 %v4870, 16
        %v4902 = vmul.u32 %v4898, %v4900
        %v4903 = vmul.u32 %v4898, %v4901
        %v4904 = vmul.u32 %v4899, %v4900
        %v4905 = vmul.u32 %v4899, %v4901
        %v4906 = vshll.u32 %v4903, 16
        %v4907 = vshrl.u32 %v4903, 16
        %v4908 = vshll.u32 %v4904, 16
        %v4909 = vshrl.u32 %v4904, 16
        %vm4910 = vc.u32 %v4902, %v4906
        %v4911 = vsel %vm4910, 1, 0
        %v4912 = vadd.s32 %v4902, %v4906
        %v4913 = vadd.s32 %v4905, %v4911
        %vm4914 = vc.u32 %v4912, %v4908
        %v4915 = vsel %vm4914, 1, 0
        %v4916 = vadd.s32 %v4912, %v4908
        %v4917 = vadd.s32 %v4913, %v4915
        %v4918 = vadd.s32 %v4917, %v4907
        %v4919 = vadd.s32 %v4918, %v4909
        %v4920 = vmul.u32 %v4875, %v4866
        %v4921 = vadd.s32 %v4897, %v4916
        %vm4922 = vc.u32 %v4897, %v4916
        %v4923 = vadd.s32 %v4919, 1
        %v4924 = vsel %vm4922, %v4923, %v4919
        %v4925 = vadd.s32 %v4920, %v4924
        %v4926 = vadd.s32 %v4925, 536870912
        %v4927 = vshrl.u32 %v4926, 30
        %v4928 = vshll.u32 %v4927, 30
        %v4929 = vsub.s32 %v4925, %v4928
        %vm4930 = vcmp.lt.s32.totalorder %v4929, 0
        %v4931 = vsub.s32 0, %v4929
        %v4932 = vsel %vm4930, %v4931, %v4929
        %v4933 = vclz %v4932
        %v4934 = vsub.s32 %v4933, 2
        %vm4935 = vcmp.gt.s32.totalorder 0, %v4934
        %v4936 = vsel %vm4935, 0, %v4934
        %v4937 = vsub.s32 32, %v4936
        %v4938 = vshll.u32 %v4929, %v4936
        %v4939 = vshrl.u32 %v4921, %v4937
        %v4940 = vor.u32 %v4938, %v4939
        %v4941 = vsub.s32 4294967266, %v4936
        %v4942 = vadd.s32 %v4941, 127
        %v4943 = vshll.u32 %v4942, 23
        %v4944 = vor.u32 4788187, %v4943
        %v4945 = vand.u32 2147483647, %v4944
        %v4947 = vcvt.s32.f32 %v4940
        %v4948 = vmul.f32 %v4947, %v4945
        %v4949 = vxor.u32 %v4948, 2147483648
        %v4950 = vsel %vm4829, %v4949, %v4948
        %v4951 = vsub.s32 4, %v4927
        %v4952 = vsel %vm4829, %v4951, %v4927
        %v4953 = vsel %vm4828, %v483, %v4950
        %v4954 = vsel %vm4828, 0, %v4952
        %v4955 = vmul.f32 %v4953, %v4953
        %v4956 = vmul.f32 %v4955, -0.001358992
        %v4957 = vadd.f32 %v4956, 0.041655596
        %v4958 = vmul.f32 %v4955, %v4957
        %v4959 = vadd.f32 %v4958, -0.4999988
        %v4960 = vmul.f32 %v4955, %v4959
        %v4961 = vadd.f32 1.0, %v4960
        %v4962 = vmul.f32 %v4953, %v4953
        %v4963 = vmul.f32 %v4962, -0.00019511016
        %v4964 = vadd.f32 %v4963, 0.008332121
        %v4965 = vmul.f32 %v4962, %v4964
        %v4966 = vadd.f32 %v4965, -0.16666654
        %v4967 = vmul.f32 %v4962, %v4966
        %v4968 = vadd.f32 %v4967, 1.0
        %v4969 = vmul.f32 %v4968, %v4953
        %vm4970 = vweird.f32 %v483
        %v4971 = vadd.s32 %v4954, 3
        %v4972 = vand.u32 %v4971, 3
        %vm4973 = vcmp.lt.s32.totalorder %v4972, 2
        %vm4974 = vcmp.eq.s32.totalorder %v4972, 0
        %v4975 = vxor.u32 %v4969, 2147483648
        %v4976 = vsel %vm4974, %v4961, %v4975
        %vm4977 = vcmp.eq.s32.totalorder %v4972, 2
        %v4978 = vxor.u32 %v4961, 2147483648
        %v4979 = vsel %vm4977, %v4978, %v4969
        %v4980 = vsel %vm4973, %v4976, %v4979
        %v4981 = vsel %vm4970, nan, %v4980
        %v4982 = vand.u32 2147483647, %v484
        %vm4983 = vcmp.le.f32.partialorder %v4982, 0.7853982
        %vm4984 = vcmp.lt.s32.totalorder %v484, 0
        %v4985 = vand.u32 %v484, 2139095040
        %v4986 = vshrl.u32 %v4985, 23
        %v4987 = vsub.s32 %v4986, 127
        %v4988 = vand.u32 2147483647, %v484
        %v4989 = vand.u32 %v4988, 8388607
        %v4990 = vor.u32 %v4989, 8388608
        %v4991 = vsub.s32 0, %v4990
        %v4992 = vadd.s32 %v4987, 1
        %vm4993 = vcmp.gt.s32.totalorder %v4992, 0
        %v4994 = vsel %vm4993, %v4992, 0
        %v4995 = vshrl.u32 %v4994, 5
        %v4996 = vand.u32 %v4994, 31
        %v4997 = vsub.s32 32, %v4996
        %v4998 = vshrl.u32 683565275, %v4997
        %v4999 = vshll.u32 683565275, %v4996
        %v5000 = vshrl.u32 2475754826, %v4997
        %v5001 = vor.u32 %v4999, %v5000
        %v5002 = vshll.u32 2475754826, %v4996
        %v5003 = vshrl.u32 2131351028, %v4997
        %v5004 = vor.u32 %v5002, %v5003
        %v5005 = vshll.u32 2131351028, %v4996
        %v5006 = vshrl.u32 2102212464, %v4997
        %v5007 = vor.u32 %v5005, %v5006
        %v5008 = vshll.u32 2102212464, %v4996
        %v5009 = vshrl.u32 920167782, %v4997
        %v5010 = vor.u32 %v5008, %v5009
        %v5011 = vshll.u32 920167782, %v4996
        %v5012 = vshrl.u32 1326507024, %v4997
        %v5013 = vor.u32 %v5011, %v5012
        %vm5014 = vcmp.lt.s32.totalorder %v4995, 1
        %vm5015 = vcmp.lt.s32.totalorder %v4995, 2
        %vm5016 = vcmp.lt.s32.totalorder %v4995, 3
        %vm5017 = vcmp.lt.s32.totalorder %v4995, 4
        %v5018 = vsel %vm5014, %v4998, %v5001
        %v5019 = vsel %vm5017, %v5007, 2102212464
        %v5020 = vsel %vm5016, %v5004, %v5019
        %v5021 = vsel %vm5015, %v5018, %v5020
        %v5022 = vsel %vm5014, %v5001, %v5004
        %v5023 = vsel %vm5017, %v5010, 920167782
        %v5024 = vsel %vm5016, %v5007, %v5023
        %v5025 = vsel %vm5015, %v5022, %v5024
        %v5026 = vsel %vm5014, %v5004, %v5007
        %v5027 = vsel %vm5017, %v5013, 1326507024
        %v5028 = vsel %vm5016, %v5010, %v5027
        %v5029 = vsel %vm5015, %v5026, %v5028
        %v5030 = vshll.u32 %v4990, 8
        %v5031 = vand.u32 %v5030, 65535
        %v5032 = vshrl.u32 %v5030, 16
        %v5033 = vand.u32 %v5029, 65535
        %v5034 = vshrl.u32 %v5029, 16
        %v5035 = vmul.u32 %v5031, %v5033
        %v5036 = vmul.u32 %v5031, %v5034
        %v5037 = vmul.u32 %v5032, %v5033
        %v5038 = vmul.u32 %v5032, %v5034
        %v5039 = vshll.u32 %v5036, 16
        %v5040 = vshrl.u32 %v5036, 16
        %v5041 = vshll.u32 %v5037, 16
        %v5042 = vshrl.u32 %v5037, 16
        %vm5043 = vc.u32 %v5035, %v5039
        %v5044 = vsel %vm5043, 1, 0
        %v5045 = vadd.s32 %v5035, %v5039
        %v5046 = vadd.s32 %v5038, %v5044
        %vm5047 = vc.u32 %v5045, %v5041
        %v5048 = vsel %vm5047, 1, 0
        %v5049 = vadd.s32 %v5045, %v5041
        %v5050 = vadd.s32 %v5046, %v5048
        %v5051 = vadd.s32 %v5050, %v5040
        %v5052 = vadd.s32 %v5051, %v5042
        %v5053 = vand.u32 %v5030, 65535
        %v5054 = vshrl.u32 %v5030, 16
        %v5055 = vand.u32 %v5025, 65535
        %v5056 = vshrl.u32 %v5025, 16
        %v5057 = vmul.u32 %v5053, %v5055
        %v5058 = vmul.u32 %v5053, %v5056
        %v5059 = vmul.u32 %v5054, %v5055
        %v5060 = vmul.u32 %v5054, %v5056
        %v5061 = vshll.u32 %v5058, 16
        %v5062 = vshrl.u32 %v5058, 16
        %v5063 = vshll.u32 %v5059, 16
        %v5064 = vshrl.u32 %v5059, 16
        %vm5065 = vc.u32 %v5057, %v5061
        %v5066 = vsel %vm5065, 1, 0
        %v5067 = vadd.s32 %v5057, %v5061
        %v5068 = vadd.s32 %v5060, %v5066
        %vm5069 = vc.u32 %v5067, %v5063
        %v5070 = vsel %vm5069, 1, 0
        %v5071 = vadd.s32 %v5067, %v5063
        %v5072 = vadd.s32 %v5068, %v5070
        %v5073 = vadd.s32 %v5072, %v5062
        %v5074 = vadd.s32 %v5073, %v5064
        %v5075 = vmul.u32 %v5030, %v5021
        %v5076 = vadd.s32 %v5052, %v5071
        %vm5077 = vc.u32 %v5052, %v5071
        %v5078 = vadd.s32 %v5074, 1
        %v5079 = vsel %vm5077, %v5078, %v5074
        %v5080 = vadd.s32 %v5075, %v5079
        %v5081 = vadd.s32 %v5080, 536870912
        %v5082 = vshrl.u32 %v5081, 30
        %v5083 = vshll.u32 %v5082, 30
        %v5084 = vsub.s32 %v5080, %v5083
        %vm5085 = vcmp.lt.s32.totalorder %v5084, 0
        %v5086 = vsub.s32 0, %v5084
        %v5087 = vsel %vm5085, %v5086, %v5084
        %v5088 = vclz %v5087
        %v5089 = vsub.s32 %v5088, 2
        %vm5090 = vcmp.gt.s32.totalorder 0, %v5089
        %v5091 = vsel %vm5090, 0, %v5089
        %v5092 = vsub.s32 32, %v5091
        %v5093 = vshll.u32 %v5084, %v5091
        %v5094 = vshrl.u32 %v5076, %v5092
        %v5095 = vor.u32 %v5093, %v5094
        %v5096 = vsub.s32 4294967266, %v5091
        %v5097 = vadd.s32 %v5096, 127
        %v5098 = vshll.u32 %v5097, 23
        %v5099 = vor.u32 4788187, %v5098
        %v5100 = vand.u32 2147483647, %v5099
        %v5102 = vcvt.s32.f32 %v5095
        %v5103 = vmul.f32 %v5102, %v5100
        %v5104 = vxor.u32 %v5103, 2147483648
        %v5105 = vsel %vm4984, %v5104, %v5103
        %v5106 = vsub.s32 4, %v5082
        %v5107 = vsel %vm4984, %v5106, %v5082
        %v5108 = vsel %vm4983, %v484, %v5105
        %v5109 = vsel %vm4983, 0, %v5107
        %v5110 = vmul.f32 %v5108, %v5108
        %v5111 = vmul.f32 %v5110, -0.001358992
        %v5112 = vadd.f32 %v5111, 0.041655596
        %v5113 = vmul.f32 %v5110, %v5112
        %v5114 = vadd.f32 %v5113, -0.4999988
        %v5115 = vmul.f32 %v5110, %v5114
        %v5116 = vadd.f32 1.0, %v5115
        %v5117 = vmul.f32 %v5108, %v5108
        %v5118 = vmul.f32 %v5117, -0.00019511016
        %v5119 = vadd.f32 %v5118, 0.008332121
        %v5120 = vmul.f32 %v5117, %v5119
        %v5121 = vadd.f32 %v5120, -0.16666654
        %v5122 = vmul.f32 %v5117, %v5121
        %v5123 = vadd.f32 %v5122, 1.0
        %v5124 = vmul.f32 %v5123, %v5108
        %vm5125 = vweird.f32 %v484
        %v5126 = vadd.s32 %v5109, 3
        %v5127 = vand.u32 %v5126, 3
        %vm5128 = vcmp.lt.s32.totalorder %v5127, 2
        %vm5129 = vcmp.eq.s32.totalorder %v5127, 0
        %v5130 = vxor.u32 %v5124, 2147483648
        %v5131 = vsel %vm5129, %v5116, %v5130
        %vm5132 = vcmp.eq.s32.totalorder %v5127, 2
        %v5133 = vxor.u32 %v5116, 2147483648
        %v5134 = vsel %vm5132, %v5133, %v5124
        %v5135 = vsel %vm5128, %v5131, %v5134
        %v5136 = vsel %vm5125, nan, %v5135
        %v5137 = vand.u32 2147483647, %v485
        %vm5138 = vcmp.le.f32.partialorder %v5137, 0.7853982
        %vm5139 = vcmp.lt.s32.totalorder %v485, 0
        %v5140 = vand.u32 %v485, 2139095040
        %v5141 = vshrl.u32 %v5140, 23
        %v5142 = vsub.s32 %v5141, 127
        %v5143 = vand.u32 2147483647, %v485
        %v5144 = vand.u32 %v5143, 8388607
        %v5145 = vor.u32 %v5144, 8388608
        %v5146 = vsub.s32 0, %v5145
        %v5147 = vadd.s32 %v5142, 1
        %vm5148 = vcmp.gt.s32.totalorder %v5147, 0
        %v5149 = vsel %vm5148, %v5147, 0
        %v5150 = vshrl.u32 %v5149, 5
        %v5151 = vand.u32 %v5149, 31
        %v5152 = vsub.s32 32, %v5151
        %v5153 = vshrl.u32 683565275, %v5152
        %v5154 = vshll.u32 683565275, %v5151
        %v5155 = vshrl.u32 2475754826, %v5152
        %v5156 = vor.u32 %v5154, %v5155
        %v5157 = vshll.u32 2475754826, %v5151
        %v5158 = vshrl.u32 2131351028, %v5152
        %v5159 = vor.u32 %v5157, %v5158
        %v5160 = vshll.u32 2131351028, %v5151
        %v5161 = vshrl.u32 2102212464, %v5152
        %v5162 = vor.u32 %v5160, %v5161
        %v5163 = vshll.u32 2102212464, %v5151
        %v5164 = vshrl.u32 920167782, %v5152
        %v5165 = vor.u32 %v5163, %v5164
        %v5166 = vshll.u32 920167782, %v5151
        %v5167 = vshrl.u32 1326507024, %v5152
        %v5168 = vor.u32 %v5166, %v5167
        %vm5169 = vcmp.lt.s32.totalorder %v5150, 1
        %vm5170 = vcmp.lt.s32.totalorder %v5150, 2
        %vm5171 = vcmp.lt.s32.totalorder %v5150, 3
        %vm5172 = vcmp.lt.s32.totalorder %v5150, 4
        %v5173 = vsel %vm5169, %v5153, %v5156
        %v5174 = vsel %vm5172, %v5162, 2102212464
        %v5175 = vsel %vm5171, %v5159, %v5174
        %v5176 = vsel %vm5170, %v5173, %v5175
        %v5177 = vsel %vm5169, %v5156, %v5159
        %v5178 = vsel %vm5172, %v5165, 920167782
        %v5179 = vsel %vm5171, %v5162, %v5178
        %v5180 = vsel %vm5170, %v5177, %v5179
        %v5181 = vsel %vm5169, %v5159, %v5162
        %v5182 = vsel %vm5172, %v5168, 1326507024
        %v5183 = vsel %vm5171, %v5165, %v5182
        %v5184 = vsel %vm5170, %v5181, %v5183
        %v5185 = vshll.u32 %v5145, 8
        %v5186 = vand.u32 %v5185, 65535
        %v5187 = vshrl.u32 %v5185, 16
        %v5188 = vand.u32 %v5184, 65535
        %v5189 = vshrl.u32 %v5184, 16
        %v5190 = vmul.u32 %v5186, %v5188
        %v5191 = vmul.u32 %v5186, %v5189
        %v5192 = vmul.u32 %v5187, %v5188
        %v5193 = vmul.u32 %v5187, %v5189
        %v5194 = vshll.u32 %v5191, 16
        %v5195 = vshrl.u32 %v5191, 16
        %v5196 = vshll.u32 %v5192, 16
        %v5197 = vshrl.u32 %v5192, 16
        %vm5198 = vc.u32 %v5190, %v5194
        %v5199 = vsel %vm5198, 1, 0
        %v5200 = vadd.s32 %v5190, %v5194
        %v5201 = vadd.s32 %v5193, %v5199
        %vm5202 = vc.u32 %v5200, %v5196
        %v5203 = vsel %vm5202, 1, 0
        %v5204 = vadd.s32 %v5200, %v5196
        %v5205 = vadd.s32 %v5201, %v5203
        %v5206 = vadd.s32 %v5205, %v5195
        %v5207 = vadd.s32 %v5206, %v5197
        %v5208 = vand.u32 %v5185, 65535
        %v5209 = vshrl.u32 %v5185, 16
        %v5210 = vand.u32 %v5180, 65535
        %v5211 = vshrl.u32 %v5180, 16
        %v5212 = vmul.u32 %v5208, %v5210
        %v5213 = vmul.u32 %v5208, %v5211
        %v5214 = vmul.u32 %v5209, %v5210
        %v5215 = vmul.u32 %v5209, %v5211
        %v5216 = vshll.u32 %v5213, 16
        %v5217 = vshrl.u32 %v5213, 16
        %v5218 = vshll.u32 %v5214, 16
        %v5219 = vshrl.u32 %v5214, 16
        %vm5220 = vc.u32 %v5212, %v5216
        %v5221 = vsel %vm5220, 1, 0
        %v5222 = vadd.s32 %v5212, %v5216
        %v5223 = vadd.s32 %v5215, %v5221
        %vm5224 = vc.u32 %v5222, %v5218
        %v5225 = vsel %vm5224, 1, 0
        %v5226 = vadd.s32 %v5222, %v5218
        %v5227 = vadd.s32 %v5223, %v5225
        %v5228 = vadd.s32 %v5227, %v5217
        %v5229 = vadd.s32 %v5228, %v5219
        %v5230 = vmul.u32 %v5185, %v5176
        %v5231 = vadd.s32 %v5207, %v5226
        %vm5232 = vc.u32 %v5207, %v5226
        %v5233 = vadd.s32 %v5229, 1
        %v5234 = vsel %vm5232, %v5233, %v5229
        %v5235 = vadd.s32 %v5230, %v5234
        %v5236 = vadd.s32 %v5235, 536870912
        %v5237 = vshrl.u32 %v5236, 30
        %v5238 = vshll.u32 %v5237, 30
        %v5239 = vsub.s32 %v5235, %v5238
        %vm5240 = vcmp.lt.s32.totalorder %v5239, 0
        %v5241 = vsub.s32 0, %v5239
        %v5242 = vsel %vm5240, %v5241, %v5239
        %v5243 = vclz %v5242
        %v5244 = vsub.s32 %v5243, 2
        %vm5245 = vcmp.gt.s32.totalorder 0, %v5244
        %v5246 = vsel %vm5245, 0, %v5244
        %v5247 = vsub.s32 32, %v5246
        %v5248 = vshll.u32 %v5239, %v5246
        %v5249 = vshrl.u32 %v5231, %v5247
        %v5250 = vor.u32 %v5248, %v5249
        %v5251 = vsub.s32 4294967266, %v5246
        %v5252 = vadd.s32 %v5251, 127
        %v5253 = vshll.u32 %v5252, 23
        %v5254 = vor.u32 4788187, %v5253
        %v5255 = vand.u32 2147483647, %v5254
        %v5257 = vcvt.s32.f32 %v5250
        %v5258 = vmul.f32 %v5257, %v5255
        %v5259 = vxor.u32 %v5258, 2147483648
        %v5260 = vsel %vm5139, %v5259, %v5258
        %v5261 = vsub.s32 4, %v5237
        %v5262 = vsel %vm5139, %v5261, %v5237
        %v5263 = vsel %vm5138, %v485, %v5260
        %v5264 = vsel %vm5138, 0, %v5262
        %v5265 = vmul.f32 %v5263, %v5263
        %v5266 = vmul.f32 %v5265, -0.001358992
        %v5267 = vadd.f32 %v5266, 0.041655596
        %v5268 = vmul.f32 %v5265, %v5267
        %v5269 = vadd.f32 %v5268, -0.4999988
        %v5270 = vmul.f32 %v5265, %v5269
        %v5271 = vadd.f32 1.0, %v5270
        %v5272 = vmul.f32 %v5263, %v5263
        %v5273 = vmul.f32 %v5272, -0.00019511016
        %v5274 = vadd.f32 %v5273, 0.008332121
        %v5275 = vmul.f32 %v5272, %v5274
        %v5276 = vadd.f32 %v5275, -0.16666654
        %v5277 = vmul.f32 %v5272, %v5276
        %v5278 = vadd.f32 %v5277, 1.0
        %v5279 = vmul.f32 %v5278, %v5263
        %vm5280 = vweird.f32 %v485
        %v5281 = vadd.s32 %v5264, 3
        %v5282 = vand.u32 %v5281, 3
        %vm5283 = vcmp.lt.s32.totalorder %v5282, 2
        %vm5284 = vcmp.eq.s32.totalorder %v5282, 0
        %v5285 = vxor.u32 %v5279, 2147483648
        %v5286 = vsel %vm5284, %v5271, %v5285
        %vm5287 = vcmp.eq.s32.totalorder %v5282, 2
        %v5288 = vxor.u32 %v5271, 2147483648
        %v5289 = vsel %vm5287, %v5288, %v5279
        %v5290 = vsel %vm5283, %v5286, %v5289
        %v5291 = vsel %vm5280, nan, %v5290
        %v5292 = vand.u32 2147483647, %v486
        %vm5293 = vcmp.le.f32.partialorder %v5292, 0.7853982
        %vm5294 = vcmp.lt.s32.totalorder %v486, 0
        %v5295 = vand.u32 %v486, 2139095040
        %v5296 = vshrl.u32 %v5295, 23
        %v5297 = vsub.s32 %v5296, 127
        %v5298 = vand.u32 2147483647, %v486
        %v5299 = vand.u32 %v5298, 8388607
        %v5300 = vor.u32 %v5299, 8388608
        %v5301 = vsub.s32 0, %v5300
        %v5302 = vadd.s32 %v5297, 1
        %vm5303 = vcmp.gt.s32.totalorder %v5302, 0
        %v5304 = vsel %vm5303, %v5302, 0
        %v5305 = vshrl.u32 %v5304, 5
        %v5306 = vand.u32 %v5304, 31
        %v5307 = vsub.s32 32, %v5306
        %v5308 = vshrl.u32 683565275, %v5307
        %v5309 = vshll.u32 683565275, %v5306
        %v5310 = vshrl.u32 2475754826, %v5307
        %v5311 = vor.u32 %v5309, %v5310
        %v5312 = vshll.u32 2475754826, %v5306
        %v5313 = vshrl.u32 2131351028, %v5307
        %v5314 = vor.u32 %v5312, %v5313
        %v5315 = vshll.u32 2131351028, %v5306
        %v5316 = vshrl.u32 2102212464, %v5307
        %v5317 = vor.u32 %v5315, %v5316
        %v5318 = vshll.u32 2102212464, %v5306
        %v5319 = vshrl.u32 920167782, %v5307
        %v5320 = vor.u32 %v5318, %v5319
        %v5321 = vshll.u32 920167782, %v5306
        %v5322 = vshrl.u32 1326507024, %v5307
        %v5323 = vor.u32 %v5321, %v5322
        %vm5324 = vcmp.lt.s32.totalorder %v5305, 1
        %vm5325 = vcmp.lt.s32.totalorder %v5305, 2
        %vm5326 = vcmp.lt.s32.totalorder %v5305, 3
        %vm5327 = vcmp.lt.s32.totalorder %v5305, 4
        %v5328 = vsel %vm5324, %v5308, %v5311
        %v5329 = vsel %vm5327, %v5317, 2102212464
        %v5330 = vsel %vm5326, %v5314, %v5329
        %v5331 = vsel %vm5325, %v5328, %v5330
        %v5332 = vsel %vm5324, %v5311, %v5314
        %v5333 = vsel %vm5327, %v5320, 920167782
        %v5334 = vsel %vm5326, %v5317, %v5333
        %v5335 = vsel %vm5325, %v5332, %v5334
        %v5336 = vsel %vm5324, %v5314, %v5317
        %v5337 = vsel %vm5327, %v5323, 1326507024
        %v5338 = vsel %vm5326, %v5320, %v5337
        %v5339 = vsel %vm5325, %v5336, %v5338
        %v5340 = vshll.u32 %v5300, 8
        %v5341 = vand.u32 %v5340, 65535
        %v5342 = vshrl.u32 %v5340, 16
        %v5343 = vand.u32 %v5339, 65535
        %v5344 = vshrl.u32 %v5339, 16
        %v5345 = vmul.u32 %v5341, %v5343
        %v5346 = vmul.u32 %v5341, %v5344
        %v5347 = vmul.u32 %v5342, %v5343
        %v5348 = vmul.u32 %v5342, %v5344
        %v5349 = vshll.u32 %v5346, 16
        %v5350 = vshrl.u32 %v5346, 16
        %v5351 = vshll.u32 %v5347, 16
        %v5352 = vshrl.u32 %v5347, 16
        %vm5353 = vc.u32 %v5345, %v5349
        %v5354 = vsel %vm5353, 1, 0
        %v5355 = vadd.s32 %v5345, %v5349
        %v5356 = vadd.s32 %v5348, %v5354
        %vm5357 = vc.u32 %v5355, %v5351
        %v5358 = vsel %vm5357, 1, 0
        %v5359 = vadd.s32 %v5355, %v5351
        %v5360 = vadd.s32 %v5356, %v5358
        %v5361 = vadd.s32 %v5360, %v5350
        %v5362 = vadd.s32 %v5361, %v5352
        %v5363 = vand.u32 %v5340, 65535
        %v5364 = vshrl.u32 %v5340, 16
        %v5365 = vand.u32 %v5335, 65535
        %v5366 = vshrl.u32 %v5335, 16
        %v5367 = vmul.u32 %v5363, %v5365
        %v5368 = vmul.u32 %v5363, %v5366
        %v5369 = vmul.u32 %v5364, %v5365
        %v5370 = vmul.u32 %v5364, %v5366
        %v5371 = vshll.u32 %v5368, 16
        %v5372 = vshrl.u32 %v5368, 16
        %v5373 = vshll.u32 %v5369, 16
        %v5374 = vshrl.u32 %v5369, 16
        %vm5375 = vc.u32 %v5367, %v5371
        %v5376 = vsel %vm5375, 1, 0
        %v5377 = vadd.s32 %v5367, %v5371
        %v5378 = vadd.s32 %v5370, %v5376
        %vm5379 = vc.u32 %v5377, %v5373
        %v5380 = vsel %vm5379, 1, 0
        %v5381 = vadd.s32 %v5377, %v5373
        %v5382 = vadd.s32 %v5378, %v5380
        %v5383 = vadd.s32 %v5382, %v5372
        %v5384 = vadd.s32 %v5383, %v5374
        %v5385 = vmul.u32 %v5340, %v5331
        %v5386 = vadd.s32 %v5362, %v5381
        %vm5387 = vc.u32 %v5362, %v5381
        %v5388 = vadd.s32 %v5384, 1
        %v5389 = vsel %vm5387, %v5388, %v5384
        %v5390 = vadd.s32 %v5385, %v5389
        %v5391 = vadd.s32 %v5390, 536870912
        %v5392 = vshrl.u32 %v5391, 30
        %v5393 = vshll.u32 %v5392, 30
        %v5394 = vsub.s32 %v5390, %v5393
        %vm5395 = vcmp.lt.s32.totalorder %v5394, 0
        %v5396 = vsub.s32 0, %v5394
        %v5397 = vsel %vm5395, %v5396, %v5394
        %v5398 = vclz %v5397
        %v5399 = vsub.s32 %v5398, 2
        %vm5400 = vcmp.gt.s32.totalorder 0, %v5399
        %v5401 = vsel %vm5400, 0, %v5399
        %v5402 = vsub.s32 32, %v5401
        %v5403 = vshll.u32 %v5394, %v5401
        %v5404 = vshrl.u32 %v5386, %v5402
        %v5405 = vor.u32 %v5403, %v5404
        %v5406 = vsub.s32 4294967266, %v5401
        %v5407 = vadd.s32 %v5406, 127
        %v5408 = vshll.u32 %v5407, 23
        %v5409 = vor.u32 4788187, %v5408
        %v5410 = vand.u32 2147483647, %v5409
        %v5412 = vcvt.s32.f32 %v5405
        %v5413 = vmul.f32 %v5412, %v5410
        %v5414 = vxor.u32 %v5413, 2147483648
        %v5415 = vsel %vm5294, %v5414, %v5413
        %v5416 = vsub.s32 4, %v5392
        %v5417 = vsel %vm5294, %v5416, %v5392
        %v5418 = vsel %vm5293, %v486, %v5415
        %v5419 = vsel %vm5293, 0, %v5417
        %v5420 = vmul.f32 %v5418, %v5418
        %v5421 = vmul.f32 %v5420, -0.001358992
        %v5422 = vadd.f32 %v5421, 0.041655596
        %v5423 = vmul.f32 %v5420, %v5422
        %v5424 = vadd.f32 %v5423, -0.4999988
        %v5425 = vmul.f32 %v5420, %v5424
        %v5426 = vadd.f32 1.0, %v5425
        %v5427 = vmul.f32 %v5418, %v5418
        %v5428 = vmul.f32 %v5427, -0.00019511016
        %v5429 = vadd.f32 %v5428, 0.008332121
        %v5430 = vmul.f32 %v5427, %v5429
        %v5431 = vadd.f32 %v5430, -0.16666654
        %v5432 = vmul.f32 %v5427, %v5431
        %v5433 = vadd.f32 %v5432, 1.0
        %v5434 = vmul.f32 %v5433, %v5418
        %vm5435 = vweird.f32 %v486
        %v5436 = vadd.s32 %v5419, 3
        %v5437 = vand.u32 %v5436, 3
        %vm5438 = vcmp.lt.s32.totalorder %v5437, 2
        %vm5439 = vcmp.eq.s32.totalorder %v5437, 0
        %v5440 = vxor.u32 %v5434, 2147483648
        %v5441 = vsel %vm5439, %v5426, %v5440
        %vm5442 = vcmp.eq.s32.totalorder %v5437, 2
        %v5443 = vxor.u32 %v5426, 2147483648
        %v5444 = vsel %vm5442, %v5443, %v5434
        %v5445 = vsel %vm5438, %v5441, %v5444
        %v5446 = vsel %vm5435, nan, %v5445
        %5447 = vst [vmem:[%s121] sm:$0xff] %v641
        %5448 = vst [vmem:[%s121 + $0x8] sm:$0xff] %v796
        %5449 = vst [vmem:[%s121 + $0x10] sm:$0xff] %v951
        %5450 = vst [vmem:[%s121 + $0x18] sm:$0xff] %v1106
        %5451 = vst [vmem:[%s121 + $0x20] sm:$0xff] %v1261
        %5452 = vst [vmem:[%s121 + $0x28] sm:$0xff] %v1416
        %5453 = vst [vmem:[%s121 + $0x30] sm:$0xff] %v1571
        %5454 = vst [vmem:[%s121 + $0x38] sm:$0xff] %v1726
        %5455 = vst [vmem:[%s121 + $0x40] sm:$0xff] %v1881
        %5456 = vst [vmem:[%s121 + $0x48] sm:$0xff] %v2036
        %5457 = vst [vmem:[%s121 + $0x50] sm:$0xff] %v2191
        %5458 = vst [vmem:[%s121 + $0x58] sm:$0xff] %v2346
        %5459 = vst [vmem:[%s121 + $0x60] sm:$0xff] %v2501
        %5460 = vst [vmem:[%s121 + $0x68] sm:$0xff] %v2656
        %5461 = vst [vmem:[%s121 + $0x70] sm:$0xff] %v2811
        %5462 = vst [vmem:[%s121 + $0x78] sm:$0xff] %v2966
        %5463 = vst [vmem:[%s121 + $0x80] sm:$0xff] %v3121
        %5464 = vst [vmem:[%s121 + $0x88] sm:$0xff] %v3276
        %5465 = vst [vmem:[%s121 + $0x90] sm:$0xff] %v3431
        %5466 = vst [vmem:[%s121 + $0x98] sm:$0xff] %v3586
        %5467 = vst [vmem:[%s121 + $0xa0] sm:$0xff] %v3741
        %5468 = vst [vmem:[%s121 + $0xa8] sm:$0xff] %v3896
        %5469 = vst [vmem:[%s121 + $0xb0] sm:$0xff] %v4051
        %5470 = vst [vmem:[%s121 + $0xb8] sm:$0xff] %v4206
        %5471 = vst [vmem:[%s121 + $0xc0] sm:$0xff] %v4361
        %5472 = vst [vmem:[%s121 + $0xc8] sm:$0xff] %v4516
        %5473 = vst [vmem:[%s121 + $0xd0] sm:$0xff] %v4671
        %5474 = vst [vmem:[%s121 + $0xd8] sm:$0xff] %v4826
        %5475 = vst [vmem:[%s121 + $0xe0] sm:$0xff] %v4981
        %5476 = vst [vmem:[%s121 + $0xe8] sm:$0xff] %v5136
        %5477 = vst [vmem:[%s121 + $0xf0] sm:$0xff] %v5291
        %5478 = vst [vmem:[%s121 + $0xf8] sm:$0xff] %v5446
        %s5479 = sand.u32 %s66, 1
        %s5480 = scalar_lea.sflag [#allocation3], %s5479
        %s5481 = sand.u32 %s66, 1
        %s5482 = smul.addr %s5481, 256
        %s5483 = scalar_lea.vmem [#allocation2], %s5482
        // Predicated region
        $region29: #{tpu_custom_call.1} parent=27 // pred_check
          %p5484 = pneg %p76
        $region30: #{tpu_custom_call.1} parent=27 // pred_check_branch
          %5486 = sbr.rel (%p5484) target = $region32
        $region31: #{tpu_custom_call.1} parent=27 // pred_region
          %5488 = vsyncadd %s5480, 0
          %s5489 = smul.addr %s16, 32
          %s5490 = smul.addr %s5489, 8
          %s5491 = scalar_lea.hbm %s2, %s5490
          %s5492 = sshll.u32 %s5483, 4
          %s5493 = int_to_ptr.vmem [resolvable:$true] %s5492
          %s5494 = sshll.u32 %s5491, 4
          %s5495 = int_to_ptr.hbm [resolvable:$true] %s5494
          %5500 = dma.vmem_to_hbm [thread:$0]  %s5493, 4096, %s5495, %s5480, 256, 256, 16
        $region32: #{tpu_custom_call.1} parent=27 // pred_fallthru
          _
      $region28: #{tpu_custom_call.1} parent=5 // pred_fallthru
        _
      %p5501 = scmp.le.s32.totalorder 2, %s11
      // Predicated region
      $region33: #{tpu_custom_call.1} parent=5 // pred_check
        %p5502 = pneg %p5501
      $region34: #{tpu_custom_call.1} parent=5 // pred_check_branch
        %5504 = sbr.rel (%p5502) target = $region36
      $region35: #{tpu_custom_call.1} parent=5 // pred_region
        %s5505 = ssub.s32 %s11, 2
        // Predicated region
        $region37: #{tpu_custom_call.1} parent=35 // pred_check
          %p5506 = pneg %p82
        $region38: #{tpu_custom_call.1} parent=35 // pred_check_branch
          %5508 = sbr.rel (%p5506) target = $region40
        $region39: #{tpu_custom_call.1} parent=35 // pred_region
          %s5509 = sand.u32 %s67, 1
          %s5510 = scalar_lea.sflag [#allocation3], %s5509
          %s5511 = sand.u32 %s67, 1
          %s5512 = smul.addr %s5511, 256
          %s5513 = scalar_lea.vmem [#allocation2], %s5512
          %5515 = dma.done %s5510, 4096
        $region40: #{tpu_custom_call.1} parent=35 // pred_fallthru
          _
      $region36: #{tpu_custom_call.1} parent=5 // pred_fallthru
        _
    $region6: #{tpu_custom_call.1} parent=1 // loop_footer
      %s15 = sadd.s32 1, %s11
    $region7: #{tpu_custom_call.1} parent=1 // loop_footer_branch
      %10 = sbr.rel target = $region3
    $region8: #{tpu_custom_call.1} parent=1 // loop_exit
      _
    %5516 = vsyncpa [#allocation3], 1
    %s5517 = scalar_lea.sflag [#allocation3], 1
    %5518 = vsyncpa %s5517, 1

</llo_original>
